<compile_context>
chip_gen: v7x
topology: tpu7x:2x2x1
jax: 0.10.0
libtpu: 0.0.40
codegen_flags: <defaults>
</compile_context>

<pallas_src>
import math

import jax
import jax.numpy as jnp
from jax import lax
from jax.experimental import pallas as pl
from jax.experimental.pallas import tpu as pltpu

d_model = 512
num_heads = 8
d_k = d_model // num_heads  # 64


def _pick_tq(s, cap=256):
    """Largest query tile <= cap that divides s (multiple of 8 when tiling)."""
    if s <= cap:
        return s
    for t in range(cap, 7, -8):
        if s % t == 0:
            return t
    return s  # awkward lengths fall back to a single (full) tile


# --------------------------- shared attention core ---------------------------
def _attention_core(q, k, v, wo_ref, bo_ref, o_ref, acc_ref):
    """Multi-head attention + fused W_o projection.

    q: [tq, D] f32 (1/sqrt(d_k) already folded into W_q), k/v: [Skv, D] f32.
    Heads are 64-lane column slices of the lane-dense slabs (no split/combine
    transposes).  Head-pair outputs go into the [tq, D] f32 scratch via
    128-lane-aligned column stores; one dense W_o matmul runs off the scratch.
    """
    qb = q.astype(jnp.bfloat16)
    kb = k.astype(jnp.bfloat16)
    vb = v.astype(jnp.bfloat16)

    for hp in range(num_heads // 2):  # static unroll over head pairs
        pair = []
        for h in (2 * hp, 2 * hp + 1):
            lo = h * d_k
            # Q @ K^T without transposing K: contract last dims (bf16 in, f32 acc).
            s = lax.dot_general(
                qb[:, lo:lo + d_k], kb[:, lo:lo + d_k],
                (((1,), (1,)), ((), ())),
                preferred_element_type=jnp.float32)            # [tq, Skv]
            # TODO(synk): attention mask (masked_fill with -1e9) path not wired in.
            m = jnp.max(s, axis=-1, keepdims=True)
            p = jnp.exp(s - m)
            inv = pl.reciprocal(jnp.sum(p, axis=-1, keepdims=True), approx=False)
            # Normalize after the PV matmul: [tq, d_k] multiply, not [tq, Skv].
            o_h = jnp.dot(p.astype(jnp.bfloat16), vb[:, lo:lo + d_k],
                          preferred_element_type=jnp.float32) * inv
            pair.append(o_h)
        acc_ref[:, 2 * hp * d_k:2 * (hp + 1) * d_k] = jnp.concatenate(pair, axis=-1)

    out = jnp.dot(acc_ref[...].astype(jnp.bfloat16), wo_ref[...],
                  preferred_element_type=jnp.float32) + bo_ref[...]
    o_ref[...] = out.astype(o_ref.dtype)


# ------------------------------ fused kernels --------------------------------
def _make_self_attn_kernel(tq):
    """Self-attention: one [S, D] activation slab -> fused QKV + attn + W_o."""

    def kernel(x_ref, wqkv_ref, bqkv_ref, wo_ref, bo_ref, o_ref, acc_ref):
        qi = pl.program_id(1)
        xb = x_ref[...].astype(jnp.bfloat16)                   # [S, D]
        k = jnp.dot(xb, wqkv_ref[:, d_model:2 * d_model],
                    preferred_element_type=jnp.float32) + bqkv_ref[:, d_model:2 * d_model]
        v = jnp.dot(xb, wqkv_ref[:, 2 * d_model:3 * d_model],
                    preferred_element_type=jnp.float32) + bqkv_ref[:, 2 * d_model:3 * d_model]
        # TODO(synk): K/V projection is recomputed per query tile; for very long S
        # switch to an online-softmax (flash) KV-tiled loop with K/V in scratch.
        row0 = pl.multiple_of(qi * tq, 8)
        xq = x_ref[pl.ds(row0, tq), :].astype(jnp.bfloat16)    # [tq, D]
        q = jnp.dot(xq, wqkv_ref[:, :d_model],
                    preferred_element_type=jnp.float32) + bqkv_ref[:, :d_model]
        _attention_core(q, k, v, wo_ref, bo_ref, o_ref, acc_ref)

    return kernel


def _cross_attn_kernel(xq_ref, xk_ref, xv_ref, wqkv_ref, bqkv_ref,
                       wo_ref, bo_ref, o_ref, acc_ref):
    """Cross-attention: query tile + resident K/V slabs -> fused projections."""
    xqb = xq_ref[...].astype(jnp.bfloat16)                     # [tq, D]
    xkb = xk_ref[...].astype(jnp.bfloat16)                     # [Skv, D]
    xvb = xv_ref[...].astype(jnp.bfloat16)                     # [Skv, D]
    q = jnp.dot(xqb, wqkv_ref[:, :d_model],
                preferred_element_type=jnp.float32) + bqkv_ref[:, :d_model]
    k = jnp.dot(xkb, wqkv_ref[:, d_model:2 * d_model],
                preferred_element_type=jnp.float32) + bqkv_ref[:, d_model:2 * d_model]
    v = jnp.dot(xvb, wqkv_ref[:, 2 * d_model:3 * d_model],
                preferred_element_type=jnp.float32) + bqkv_ref[:, 2 * d_model:3 * d_model]
    _attention_core(q, k, v, wo_ref, bo_ref, o_ref, acc_ref)


# ----------------------------- host-side wrappers -----------------------------
def prepare_params(raw):
    """One-time weight prep (done once, not per forward call).

    raw: float32, torch.nn.Linear convention pre-transposed
         (wq_t/wk_t/wv_t/wo_t: [d_in, d_out], bq/bk/bv/bo: [d_out]).
    Folds 1/sqrt(d_k) into W_q/b_q, concatenates Q/K/V weights into one
    resident [512, 1536] slab, casts matmul operands to bf16 (accumulation is
    f32 on the MXU), keeps biases f32.
    """
    scale = 1.0 / math.sqrt(d_k)
    w_qkv = jnp.concatenate([raw["wq_t"] * scale, raw["wk_t"], raw["wv_t"]], axis=1)
    b_qkv = jnp.concatenate([raw["bq"] * scale, raw["bk"], raw["bv"]])
    return {
        "w_qkv": w_qkv.astype(jnp.bfloat16),                     # [512, 1536]
        "b_qkv": b_qkv.reshape(1, 3 * d_model).astype(jnp.float32),
        "w_o": raw["wo_t"].astype(jnp.bfloat16),                 # [512, 512]
        "b_o": raw["bo"].reshape(1, d_model).astype(jnp.float32),
    }


def multi_head_attention(Q, K, V, params, mask=None):
    """Forward pass of the PyTorch MultiHeadAttention module (mask=None path)."""
    # TODO(synk): mask argument (masked_fill with -1e9 before softmax) not supported.
    assert mask is None
    B, Sq, D = Q.shape
    assert D == d_model and K.shape == V.shape
    assert K.shape[0] == B and K.shape[2] == d_model
    Skv = K.shape[1]

    tq = _pick_tq(Sq)
    grid = (B, Sq // tq)

    w_specs = [
        pl.BlockSpec((d_model, 3 * d_model), lambda b, i: (0, 0)),  # W_qkv resident
        pl.BlockSpec((1, 3 * d_model), lambda b, i: (0, 0)),
        pl.BlockSpec((d_model, d_model), lambda b, i: (0, 0)),       # W_o resident
        pl.BlockSpec((1, d_model), lambda b, i: (0, 0)),
    ]
    # TODO(synk): resident-weight specs would ideally be single-buffered via
    # pipeline_mode=pl.Buffered(1); left at the default for lowering compatibility.
    out_spec = pl.BlockSpec((pl.Squeezed(), tq, d_model), lambda b, i: (b, i, 0))
    out_shape = jax.ShapeDtypeStruct((B, Sq, d_model), Q.dtype)
    scratch = [pltpu.VMEM((tq, d_model), jnp.float32)]
    cparams = pltpu.CompilerParams(
        dimension_semantics=("parallel", "parallel"),
        vmem_limit_bytes=32 * 1024 * 1024)
    weights = (params["w_qkv"], params["b_qkv"], params["w_o"], params["b_o"])

    if Q is K and K is V:
        # Self-attention fast path: activation slab read from HBM once per batch,
        # sliced in-kernel for the query tile (single HBM read feeds Q, K and V).
        in_specs = [pl.BlockSpec((pl.Squeezed(), Sq, d_model),
                                 lambda b, i: (b, 0, 0))] + w_specs
        return pl.pallas_call(
            _make_self_attn_kernel(tq),
            out_shape=out_shape, grid=grid,
            in_specs=in_specs, out_specs=out_spec,
            scratch_shapes=scratch, compiler_params=cparams,
        )(Q, *weights)

    in_specs = [
        pl.BlockSpec((pl.Squeezed(), tq, d_model), lambda b, i: (b, i, 0)),   # Q tile
        pl.BlockSpec((pl.Squeezed(), Skv, d_model), lambda b, i: (b, 0, 0)),  # K slab
        pl.BlockSpec((pl.Squeezed(), Skv, d_model), lambda b, i: (b, 0, 0)),  # V slab
    ] + w_specs
    return pl.pallas_call(
        _cross_attn_kernel,
        out_shape=out_shape, grid=grid,
        in_specs=in_specs, out_specs=out_spec,
        scratch_shapes=scratch, compiler_params=cparams,
    )(Q, K, V, *weights)


# -------------------------- pure-JAX exact reference --------------------------
def reference(Q, K, V, raw):
    PREC = lax.Precision.HIGHEST  # keep the reference exact f32 (no MXU bf16 truncation)

    def lin(x, w_t, b):
        return jnp.einsum("bsi,io->bso", x, w_t, precision=PREC) + b

    B, Sq, _ = Q.shape
    Skv = K.shape[1]
    q = lin(Q, raw["wq_t"], raw["bq"]).reshape(B, Sq, num_heads, d_k).transpose(0, 2, 1, 3)
    k = lin(K, raw["wk_t"], raw["bk"]).reshape(B, Skv, num_heads, d_k).transpose(0, 2, 1, 3)
    v = lin(V, raw["wv_t"], raw["bv"]).reshape(B, Skv, num_heads, d_k).transpose(0, 2, 1, 3)
    scores = jnp.einsum("bhqd,bhkd->bhqk", q, k, precision=PREC) / math.sqrt(d_k)
    probs = jax.nn.softmax(scores, axis=-1)
    o = jnp.einsum("bhqk,bhkd->bhqd", probs, v, precision=PREC)
    o = o.transpose(0, 2, 1, 3).reshape(B, Sq, d_model)
    return jnp.einsum("bsi,io->bso", o, raw["wo_t"], precision=PREC) + raw["bo"]


if __name__ == "__main__":
    key = jax.random.PRNGKey(0)
    B, S = 2, 8

    keys = jax.random.split(key, 11)
    w_scale = 1.0 / math.sqrt(d_model)
    raw = {
        "wq_t": jax.random.normal(keys[0], (d_model, d_model), jnp.float32) * w_scale,
        "bq": jax.random.normal(keys[1], (d_model,), jnp.float32) * 0.01,
        "wk_t": jax.random.normal(keys[2], (d_model, d_model), jnp.float32) * w_scale,
        "bk": jax.random.normal(keys[3], (d_model,), jnp.float32) * 0.01,
        "wv_t": jax.random.normal(keys[4], (d_model, d_model), jnp.float32) * w_scale,
        "bv": jax.random.normal(keys[5], (d_model,), jnp.float32) * 0.01,
        "wo_t": jax.random.normal(keys[6], (d_model, d_model), jnp.float32) * w_scale,
        "bo": jax.random.normal(keys[7], (d_model,), jnp.float32) * 0.01,
    }
    params = prepare_params(raw)   # one-time: fold scale, concat QKV, cast to bf16

    Q = jax.random.normal(keys[8], (B, S, d_model), jnp.float32)
    K = jax.random.normal(keys[9], (B, S, d_model), jnp.float32)
    V = jax.random.normal(keys[10], (B, S, d_model), jnp.float32)

    # Kernel uses bf16 MXU operands (f32 accumulation); reference is exact f32.
    # Tolerance is sized for bf16 rounding through three 512-deep contractions.
    def check(name, out, ref, tol=4e-2):
        assert out.shape == ref.shape, f"shape mismatch ({name})"
        err = float(jnp.max(jnp.abs(out - ref)))
        assert jnp.allclose(out, ref, atol=tol, rtol=tol), (
            f"mismatch vs reference ({name}): max abs err {err:.3e}")

    # Cross-attention path (distinct Q / K / V tensors).
    out = jax.block_until_ready(multi_head_attention(Q, K, V, params))
    check("cross-attn", out, reference(Q, K, V, raw))

    # Self-attention fast path (single HBM read, fused QKV projection).
    out_sa = jax.block_until_ready(multi_head_attention(Q, Q, Q, params))
    check("self-attn", out_sa, reference(Q, Q, Q, raw))

    print("KERNEL_OK")
</pallas_src>

<mosaic_0001>
module attributes {stable_mosaic.version = 11 : i64} {
  func.func @_cross_attn_kernel(%arg0: i32, %arg1: i32, %arg2: memref<1x8x512xf32, #tpu.memory_space<vmem>>, %arg3: memref<1x8x512xf32, #tpu.memory_space<vmem>>, %arg4: memref<1x8x512xf32, #tpu.memory_space<vmem>>, %arg5: memref<512x1536xbf16, #tpu.memory_space<vmem>>, %arg6: memref<1x1536xf32, #tpu.memory_space<vmem>>, %arg7: memref<512x512xbf16, #tpu.memory_space<vmem>>, %arg8: memref<1x512xf32, #tpu.memory_space<vmem>>, %arg9: memref<1x8x512xf32, #tpu.memory_space<vmem>>, %arg10: memref<8x512xf32, #tpu.memory_space<vmem>>) attributes {dimension_semantics = [#tpu.dimension_semantics<parallel>, #tpu.dimension_semantics<parallel>], iteration_bounds = array<i64: 2, 1>, scalar_prefetch = 0 : i64, scratch_operands = 1 : i64, tpu.core_type = #tpu.core_type<tc>, window_params = [{transform_indices = @transform_0, window_bounds = array<i64: 1, 8, 512>}, {transform_indices = @transform_1, window_bounds = array<i64: 1, 8, 512>}, {transform_indices = @transform_2, window_bounds = array<i64: 1, 8, 512>}, {pipeline_mode = #tpu.pipeline_mode<synchronous>, transform_indices = @transform_3, window_bounds = array<i64: 512, 1536>}, {pipeline_mode = #tpu.pipeline_mode<synchronous>, transform_indices = @transform_4, window_bounds = array<i64: 1, 1536>}, {pipeline_mode = #tpu.pipeline_mode<synchronous>, transform_indices = @transform_5, window_bounds = array<i64: 512, 512>}, {pipeline_mode = #tpu.pipeline_mode<synchronous>, transform_indices = @transform_6, window_bounds = array<i64: 1, 512>}, {transform_indices = @transform_7, window_bounds = array<i64: 1, 8, 512>}]} {
    %c0 = arith.constant 0 : index
    %c0_0 = arith.constant 0 : index
    %c0_1 = arith.constant 0 : index
    %0 = vector.load %arg2[%c0, %c0_0, %c0_1] : memref<1x8x512xf32, #tpu.memory_space<vmem>>, vector<1x8x512xf32>
    %1 = vector.shape_cast %0 : vector<1x8x512xf32> to vector<8x512xf32>
    %2 = arith.truncf %1 : vector<8x512xf32> to vector<8x512xbf16>
    %c0_2 = arith.constant 0 : index
    %c0_3 = arith.constant 0 : index
    %c0_4 = arith.constant 0 : index
    %3 = vector.load %arg3[%c0_2, %c0_3, %c0_4] : memref<1x8x512xf32, #tpu.memory_space<vmem>>, vector<1x8x512xf32>
    %4 = vector.shape_cast %3 : vector<1x8x512xf32> to vector<8x512xf32>
    %5 = arith.truncf %4 : vector<8x512xf32> to vector<8x512xbf16>
    %c0_5 = arith.constant 0 : index
    %c0_6 = arith.constant 0 : index
    %c0_7 = arith.constant 0 : index
    %6 = vector.load %arg4[%c0_5, %c0_6, %c0_7] : memref<1x8x512xf32, #tpu.memory_space<vmem>>, vector<1x8x512xf32>
    %7 = vector.shape_cast %6 : vector<1x8x512xf32> to vector<8x512xf32>
    %8 = arith.truncf %7 : vector<8x512xf32> to vector<8x512xbf16>
    %c0_8 = arith.constant 0 : index
    %c0_9 = arith.constant 0 : index
    %9 = vector.load %arg5[%c0_8, %c0_9] : memref<512x1536xbf16, #tpu.memory_space<vmem>>, vector<512x512xbf16>
    %cst = arith.constant dense<0.000000e+00> : vector<8x512xf32>
    %10 = tpu.matmul %2, %9, %cst {dimension_numbers = #tpu.dot_dimension_numbers<[1], [0], [0], [1], [0, 0, 1, 1], [], []>} : vector<8x512xbf16>, vector<512x512xbf16>, vector<8x512xf32> -> vector<8x512xf32>
    %c0_10 = arith.constant 0 : index
    %c0_11 = arith.constant 0 : index
    %11 = vector.load %arg6[%c0_10, %c0_11] : memref<1x1536xf32, #tpu.memory_space<vmem>>, vector<1x512xf32>
    %12 = vector.broadcast %11 : vector<1x512xf32> to vector<8x512xf32>
    %13 = arith.addf %10, %12 : vector<8x512xf32>
    %c0_12 = arith.constant 0 : index
    %c512 = arith.constant 512 : index
    %14 = vector.load %arg5[%c0_12, %c512] : memref<512x1536xbf16, #tpu.memory_space<vmem>>, vector<512x512xbf16>
    %cst_13 = arith.constant dense<0.000000e+00> : vector<8x512xf32>
    %15 = tpu.matmul %5, %14, %cst_13 {dimension_numbers = #tpu.dot_dimension_numbers<[1], [0], [0], [1], [0, 0, 1, 1], [], []>} : vector<8x512xbf16>, vector<512x512xbf16>, vector<8x512xf32> -> vector<8x512xf32>
    %c0_14 = arith.constant 0 : index
    %c512_15 = arith.constant 512 : index
    %16 = vector.load %arg6[%c0_14, %c512_15] : memref<1x1536xf32, #tpu.memory_space<vmem>>, vector<1x512xf32>
    %17 = vector.broadcast %16 : vector<1x512xf32> to vector<8x512xf32>
    %18 = arith.addf %15, %17 : vector<8x512xf32>
    %c0_16 = arith.constant 0 : index
    %c1024 = arith.constant 1024 : index
    %19 = vector.load %arg5[%c0_16, %c1024] : memref<512x1536xbf16, #tpu.memory_space<vmem>>, vector<512x512xbf16>
    %cst_17 = arith.constant dense<0.000000e+00> : vector<8x512xf32>
    %20 = tpu.matmul %8, %19, %cst_17 {dimension_numbers = #tpu.dot_dimension_numbers<[1], [0], [0], [1], [0, 0, 1, 1], [], []>} : vector<8x512xbf16>, vector<512x512xbf16>, vector<8x512xf32> -> vector<8x512xf32>
    %c0_18 = arith.constant 0 : index
    %c1024_19 = arith.constant 1024 : index
    %21 = vector.load %arg6[%c0_18, %c1024_19] : memref<1x1536xf32, #tpu.memory_space<vmem>>, vector<1x512xf32>
    %22 = vector.broadcast %21 : vector<1x512xf32> to vector<8x512xf32>
    %23 = arith.addf %20, %22 : vector<8x512xf32>
    %24 = arith.truncf %13 : vector<8x512xf32> to vector<8x512xbf16>
    %25 = arith.truncf %18 : vector<8x512xf32> to vector<8x512xbf16>
    %26 = arith.truncf %23 : vector<8x512xf32> to vector<8x512xbf16>
    %27 = vector.extract_strided_slice %24 {offsets = [0, 0], sizes = [8, 64], strides = [1, 1]} : vector<8x512xbf16> to vector<8x64xbf16>
    %28 = vector.extract_strided_slice %25 {offsets = [0, 0], sizes = [8, 64], strides = [1, 1]} : vector<8x512xbf16> to vector<8x64xbf16>
    %cst_20 = arith.constant dense<0.000000e+00> : vector<8x8xf32>
    %29 = tpu.matmul %27, %28, %cst_20 {dimension_numbers = #tpu.dot_dimension_numbers<[1], [1], [0], [0], [0, 0, 1, 0], [], []>} : vector<8x64xbf16>, vector<8x64xbf16>, vector<8x8xf32> -> vector<8x8xf32>
    %cst_21 = arith.constant dense<0xFF800000> : vector<8xf32>
    %30 = vector.multi_reduction <maximumf>, %29, %cst_21 [1] : vector<8x8xf32> to vector<8xf32>
    %31 = vector.shape_cast %30 : vector<8xf32> to vector<8x1xf32>
    %32 = vector.broadcast %31 : vector<8x1xf32> to vector<8x8xf32>
    %33 = arith.subf %29, %32 : vector<8x8xf32>
    %34 = math.exp %33 : vector<8x8xf32>
    %cst_22 = arith.constant dense<0.000000e+00> : vector<8xf32>
    %35 = vector.multi_reduction <add>, %34, %cst_22 [1] : vector<8x8xf32> to vector<8xf32>
    %36 = vector.shape_cast %35 : vector<8xf32> to vector<8x1xf32>
    %37 = tpu.reciprocal %36 : vector<8x1xf32> -> vector<8x1xf32>
    %38 = arith.truncf %34 : vector<8x8xf32> to vector<8x8xbf16>
    %39 = vector.extract_strided_slice %26 {offsets = [0, 0], sizes = [8, 64], strides = [1, 1]} : vector<8x512xbf16> to vector<8x64xbf16>
    %cst_23 = arith.constant dense<0.000000e+00> : vector<8x64xf32>
    %40 = tpu.matmul %38, %39, %cst_23 {dimension_numbers = #tpu.dot_dimension_numbers<[1], [0], [0], [1], [0, 0, 1, 1], [], []>} : vector<8x8xbf16>, vector<8x64xbf16>, vector<8x64xf32> -> vector<8x64xf32>
    %41 = vector.broadcast %37 : vector<8x1xf32> to vector<8x64xf32>
    %42 = arith.mulf %40, %41 : vector<8x64xf32>
    %43 = vector.extract_strided_slice %24 {offsets = [0, 64], sizes = [8, 64], strides = [1, 1]} : vector<8x512xbf16> to vector<8x64xbf16>
    %44 = vector.extract_strided_slice %25 {offsets = [0, 64], sizes = [8, 64], strides = [1, 1]} : vector<8x512xbf16> to vector<8x64xbf16>
    %cst_24 = arith.constant dense<0.000000e+00> : vector<8x8xf32>
    %45 = tpu.matmul %43, %44, %cst_24 {dimension_numbers = #tpu.dot_dimension_numbers<[1], [1], [0], [0], [0, 0, 1, 0], [], []>} : vector<8x64xbf16>, vector<8x64xbf16>, vector<8x8xf32> -> vector<8x8xf32>
    %cst_25 = arith.constant dense<0xFF800000> : vector<8xf32>
    %46 = vector.multi_reduction <maximumf>, %45, %cst_25 [1] : vector<8x8xf32> to vector<8xf32>
    %47 = vector.shape_cast %46 : vector<8xf32> to vector<8x1xf32>
    %48 = vector.broadcast %47 : vector<8x1xf32> to vector<8x8xf32>
    %49 = arith.subf %45, %48 : vector<8x8xf32>
    %50 = math.exp %49 : vector<8x8xf32>
    %cst_26 = arith.constant dense<0.000000e+00> : vector<8xf32>
    %51 = vector.multi_reduction <add>, %50, %cst_26 [1] : vector<8x8xf32> to vector<8xf32>
    %52 = vector.shape_cast %51 : vector<8xf32> to vector<8x1xf32>
    %53 = tpu.reciprocal %52 : vector<8x1xf32> -> vector<8x1xf32>
    %54 = arith.truncf %50 : vector<8x8xf32> to vector<8x8xbf16>
    %55 = vector.extract_strided_slice %26 {offsets = [0, 64], sizes = [8, 64], strides = [1, 1]} : vector<8x512xbf16> to vector<8x64xbf16>
    %cst_27 = arith.constant dense<0.000000e+00> : vector<8x64xf32>
    %56 = tpu.matmul %54, %55, %cst_27 {dimension_numbers = #tpu.dot_dimension_numbers<[1], [0], [0], [1], [0, 0, 1, 1], [], []>} : vector<8x8xbf16>, vector<8x64xbf16>, vector<8x64xf32> -> vector<8x64xf32>
    %57 = vector.broadcast %53 : vector<8x1xf32> to vector<8x64xf32>
    %58 = arith.mulf %56, %57 : vector<8x64xf32>
    %59 = tpu.concatenate %42, %58 in 1 : vector<8x64xf32>, vector<8x64xf32> -> vector<8x128xf32>
    %c0_28 = arith.constant 0 : index
    %c0_29 = arith.constant 0 : index
    %60 = vector.load %arg10[%c0_28, %c0_29] : memref<8x512xf32, #tpu.memory_space<vmem>>, vector<8x128xf32>
    tpu.vector_store %arg10[%c0_28, %c0_29], %59 {strides = array<i32>} : memref<8x512xf32, #tpu.memory_space<vmem>>, vector<8x128xf32>,
    %61 = vector.extract_strided_slice %24 {offsets = [0, 128], sizes = [8, 64], strides = [1, 1]} : vector<8x512xbf16> to vector<8x64xbf16>
    %62 = vector.extract_strided_slice %25 {offsets = [0, 128], sizes = [8, 64], strides = [1, 1]} : vector<8x512xbf16> to vector<8x64xbf16>
    %cst_30 = arith.constant dense<0.000000e+00> : vector<8x8xf32>
    %63 = tpu.matmul %61, %62, %cst_30 {dimension_numbers = #tpu.dot_dimension_numbers<[1], [1], [0], [0], [0, 0, 1, 0], [], []>} : vector<8x64xbf16>, vector<8x64xbf16>, vector<8x8xf32> -> vector<8x8xf32>
    %cst_31 = arith.constant dense<0xFF800000> : vector<8xf32>
    %64 = vector.multi_reduction <maximumf>, %63, %cst_31 [1] : vector<8x8xf32> to vector<8xf32>
    %65 = vector.shape_cast %64 : vector<8xf32> to vector<8x1xf32>
    %66 = vector.broadcast %65 : vector<8x1xf32> to vector<8x8xf32>
    %67 = arith.subf %63, %66 : vector<8x8xf32>
    %68 = math.exp %67 : vector<8x8xf32>
    %cst_32 = arith.constant dense<0.000000e+00> : vector<8xf32>
    %69 = vector.multi_reduction <add>, %68, %cst_32 [1] : vector<8x8xf32> to vector<8xf32>
    %70 = vector.shape_cast %69 : vector<8xf32> to vector<8x1xf32>
    %71 = tpu.reciprocal %70 : vector<8x1xf32> -> vector<8x1xf32>
    %72 = arith.truncf %68 : vector<8x8xf32> to vector<8x8xbf16>
    %73 = vector.extract_strided_slice %26 {offsets = [0, 128], sizes = [8, 64], strides = [1, 1]} : vector<8x512xbf16> to vector<8x64xbf16>
    %cst_33 = arith.constant dense<0.000000e+00> : vector<8x64xf32>
    %74 = tpu.matmul %72, %73, %cst_33 {dimension_numbers = #tpu.dot_dimension_numbers<[1], [0], [0], [1], [0, 0, 1, 1], [], []>} : vector<8x8xbf16>, vector<8x64xbf16>, vector<8x64xf32> -> vector<8x64xf32>
    %75 = vector.broadcast %71 : vector<8x1xf32> to vector<8x64xf32>
    %76 = arith.mulf %74, %75 : vector<8x64xf32>
    %77 = vector.extract_strided_slice %24 {offsets = [0, 192], sizes = [8, 64], strides = [1, 1]} : vector<8x512xbf16> to vector<8x64xbf16>
    %78 = vector.extract_strided_slice %25 {offsets = [0, 192], sizes = [8, 64], strides = [1, 1]} : vector<8x512xbf16> to vector<8x64xbf16>
    %cst_34 = arith.constant dense<0.000000e+00> : vector<8x8xf32>
    %79 = tpu.matmul %77, %78, %cst_34 {dimension_numbers = #tpu.dot_dimension_numbers<[1], [1], [0], [0], [0, 0, 1, 0], [], []>} : vector<8x64xbf16>, vector<8x64xbf16>, vector<8x8xf32> -> vector<8x8xf32>
    %cst_35 = arith.constant dense<0xFF800000> : vector<8xf32>
    %80 = vector.multi_reduction <maximumf>, %79, %cst_35 [1] : vector<8x8xf32> to vector<8xf32>
    %81 = vector.shape_cast %80 : vector<8xf32> to vector<8x1xf32>
    %82 = vector.broadcast %81 : vector<8x1xf32> to vector<8x8xf32>
    %83 = arith.subf %79, %82 : vector<8x8xf32>
    %84 = math.exp %83 : vector<8x8xf32>
    %cst_36 = arith.constant dense<0.000000e+00> : vector<8xf32>
    %85 = vector.multi_reduction <add>, %84, %cst_36 [1] : vector<8x8xf32> to vector<8xf32>
    %86 = vector.shape_cast %85 : vector<8xf32> to vector<8x1xf32>
    %87 = tpu.reciprocal %86 : vector<8x1xf32> -> vector<8x1xf32>
    %88 = arith.truncf %84 : vector<8x8xf32> to vector<8x8xbf16>
    %89 = vector.extract_strided_slice %26 {offsets = [0, 192], sizes = [8, 64], strides = [1, 1]} : vector<8x512xbf16> to vector<8x64xbf16>
    %cst_37 = arith.constant dense<0.000000e+00> : vector<8x64xf32>
    %90 = tpu.matmul %88, %89, %cst_37 {dimension_numbers = #tpu.dot_dimension_numbers<[1], [0], [0], [1], [0, 0, 1, 1], [], []>} : vector<8x8xbf16>, vector<8x64xbf16>, vector<8x64xf32> -> vector<8x64xf32>
    %91 = vector.broadcast %87 : vector<8x1xf32> to vector<8x64xf32>
    %92 = arith.mulf %90, %91 : vector<8x64xf32>
    %93 = tpu.concatenate %76, %92 in 1 : vector<8x64xf32>, vector<8x64xf32> -> vector<8x128xf32>
    %c0_38 = arith.constant 0 : index
    %c128 = arith.constant 128 : index
    %94 = vector.load %arg10[%c0_38, %c128] : memref<8x512xf32, #tpu.memory_space<vmem>>, vector<8x128xf32>
    tpu.vector_store %arg10[%c0_38, %c128], %93 {strides = array<i32>} : memref<8x512xf32, #tpu.memory_space<vmem>>, vector<8x128xf32>,
    %95 = vector.extract_strided_slice %24 {offsets = [0, 256], sizes = [8, 64], strides = [1, 1]} : vector<8x512xbf16> to vector<8x64xbf16>
    %96 = vector.extract_strided_slice %25 {offsets = [0, 256], sizes = [8, 64], strides = [1, 1]} : vector<8x512xbf16> to vector<8x64xbf16>
    %cst_39 = arith.constant dense<0.000000e+00> : vector<8x8xf32>
    %97 = tpu.matmul %95, %96, %cst_39 {dimension_numbers = #tpu.dot_dimension_numbers<[1], [1], [0], [0], [0, 0, 1, 0], [], []>} : vector<8x64xbf16>, vector<8x64xbf16>, vector<8x8xf32> -> vector<8x8xf32>
    %cst_40 = arith.constant dense<0xFF800000> : vector<8xf32>
    %98 = vector.multi_reduction <maximumf>, %97, %cst_40 [1] : vector<8x8xf32> to vector<8xf32>
    %99 = vector.shape_cast %98 : vector<8xf32> to vector<8x1xf32>
    %100 = vector.broadcast %99 : vector<8x1xf32> to vector<8x8xf32>
    %101 = arith.subf %97, %100 : vector<8x8xf32>
    %102 = math.exp %101 : vector<8x8xf32>
    %cst_41 = arith.constant dense<0.000000e+00> : vector<8xf32>
    %103 = vector.multi_reduction <add>, %102, %cst_41 [1] : vector<8x8xf32> to vector<8xf32>
    %104 = vector.shape_cast %103 : vector<8xf32> to vector<8x1xf32>
    %105 = tpu.reciprocal %104 : vector<8x1xf32> -> vector<8x1xf32>
    %106 = arith.truncf %102 : vector<8x8xf32> to vector<8x8xbf16>
    %107 = vector.extract_strided_slice %26 {offsets = [0, 256], sizes = [8, 64], strides = [1, 1]} : vector<8x512xbf16> to vector<8x64xbf16>
    %cst_42 = arith.constant dense<0.000000e+00> : vector<8x64xf32>
    %108 = tpu.matmul %106, %107, %cst_42 {dimension_numbers = #tpu.dot_dimension_numbers<[1], [0], [0], [1], [0, 0, 1, 1], [], []>} : vector<8x8xbf16>, vector<8x64xbf16>, vector<8x64xf32> -> vector<8x64xf32>
    %109 = vector.broadcast %105 : vector<8x1xf32> to vector<8x64xf32>
    %110 = arith.mulf %108, %109 : vector<8x64xf32>
    %111 = vector.extract_strided_slice %24 {offsets = [0, 320], sizes = [8, 64], strides = [1, 1]} : vector<8x512xbf16> to vector<8x64xbf16>
    %112 = vector.extract_strided_slice %25 {offsets = [0, 320], sizes = [8, 64], strides = [1, 1]} : vector<8x512xbf16> to vector<8x64xbf16>
    %cst_43 = arith.constant dense<0.000000e+00> : vector<8x8xf32>
    %113 = tpu.matmul %111, %112, %cst_43 {dimension_numbers = #tpu.dot_dimension_numbers<[1], [1], [0], [0], [0, 0, 1, 0], [], []>} : vector<8x64xbf16>, vector<8x64xbf16>, vector<8x8xf32> -> vector<8x8xf32>
    %cst_44 = arith.constant dense<0xFF800000> : vector<8xf32>
    %114 = vector.multi_reduction <maximumf>, %113, %cst_44 [1] : vector<8x8xf32> to vector<8xf32>
    %115 = vector.shape_cast %114 : vector<8xf32> to vector<8x1xf32>
    %116 = vector.broadcast %115 : vector<8x1xf32> to vector<8x8xf32>
    %117 = arith.subf %113, %116 : vector<8x8xf32>
    %118 = math.exp %117 : vector<8x8xf32>
    %cst_45 = arith.constant dense<0.000000e+00> : vector<8xf32>
    %119 = vector.multi_reduction <add>, %118, %cst_45 [1] : vector<8x8xf32> to vector<8xf32>
    %120 = vector.shape_cast %119 : vector<8xf32> to vector<8x1xf32>
    %121 = tpu.reciprocal %120 : vector<8x1xf32> -> vector<8x1xf32>
    %122 = arith.truncf %118 : vector<8x8xf32> to vector<8x8xbf16>
    %123 = vector.extract_strided_slice %26 {offsets = [0, 320], sizes = [8, 64], strides = [1, 1]} : vector<8x512xbf16> to vector<8x64xbf16>
    %cst_46 = arith.constant dense<0.000000e+00> : vector<8x64xf32>
    %124 = tpu.matmul %122, %123, %cst_46 {dimension_numbers = #tpu.dot_dimension_numbers<[1], [0], [0], [1], [0, 0, 1, 1], [], []>} : vector<8x8xbf16>, vector<8x64xbf16>, vector<8x64xf32> -> vector<8x64xf32>
    %125 = vector.broadcast %121 : vector<8x1xf32> to vector<8x64xf32>
    %126 = arith.mulf %124, %125 : vector<8x64xf32>
    %127 = tpu.concatenate %110, %126 in 1 : vector<8x64xf32>, vector<8x64xf32> -> vector<8x128xf32>
    %c0_47 = arith.constant 0 : index
    %c256 = arith.constant 256 : index
    %128 = vector.load %arg10[%c0_47, %c256] : memref<8x512xf32, #tpu.memory_space<vmem>>, vector<8x128xf32>
    tpu.vector_store %arg10[%c0_47, %c256], %127 {strides = array<i32>} : memref<8x512xf32, #tpu.memory_space<vmem>>, vector<8x128xf32>,
    %129 = vector.extract_strided_slice %24 {offsets = [0, 384], sizes = [8, 64], strides = [1, 1]} : vector<8x512xbf16> to vector<8x64xbf16>
    %130 = vector.extract_strided_slice %25 {offsets = [0, 384], sizes = [8, 64], strides = [1, 1]} : vector<8x512xbf16> to vector<8x64xbf16>
    %cst_48 = arith.constant dense<0.000000e+00> : vector<8x8xf32>
    %131 = tpu.matmul %129, %130, %cst_48 {dimension_numbers = #tpu.dot_dimension_numbers<[1], [1], [0], [0], [0, 0, 1, 0], [], []>} : vector<8x64xbf16>, vector<8x64xbf16>, vector<8x8xf32> -> vector<8x8xf32>
    %cst_49 = arith.constant dense<0xFF800000> : vector<8xf32>
    %132 = vector.multi_reduction <maximumf>, %131, %cst_49 [1] : vector<8x8xf32> to vector<8xf32>
    %133 = vector.shape_cast %132 : vector<8xf32> to vector<8x1xf32>
    %134 = vector.broadcast %133 : vector<8x1xf32> to vector<8x8xf32>
    %135 = arith.subf %131, %134 : vector<8x8xf32>
    %136 = math.exp %135 : vector<8x8xf32>
    %cst_50 = arith.constant dense<0.000000e+00> : vector<8xf32>
    %137 = vector.multi_reduction <add>, %136, %cst_50 [1] : vector<8x8xf32> to vector<8xf32>
    %138 = vector.shape_cast %137 : vector<8xf32> to vector<8x1xf32>
    %139 = tpu.reciprocal %138 : vector<8x1xf32> -> vector<8x1xf32>
    %140 = arith.truncf %136 : vector<8x8xf32> to vector<8x8xbf16>
    %141 = vector.extract_strided_slice %26 {offsets = [0, 384], sizes = [8, 64], strides = [1, 1]} : vector<8x512xbf16> to vector<8x64xbf16>
    %cst_51 = arith.constant dense<0.000000e+00> : vector<8x64xf32>
    %142 = tpu.matmul %140, %141, %cst_51 {dimension_numbers = #tpu.dot_dimension_numbers<[1], [0], [0], [1], [0, 0, 1, 1], [], []>} : vector<8x8xbf16>, vector<8x64xbf16>, vector<8x64xf32> -> vector<8x64xf32>
    %143 = vector.broadcast %139 : vector<8x1xf32> to vector<8x64xf32>
    %144 = arith.mulf %142, %143 : vector<8x64xf32>
    %145 = vector.extract_strided_slice %24 {offsets = [0, 448], sizes = [8, 64], strides = [1, 1]} : vector<8x512xbf16> to vector<8x64xbf16>
    %146 = vector.extract_strided_slice %25 {offsets = [0, 448], sizes = [8, 64], strides = [1, 1]} : vector<8x512xbf16> to vector<8x64xbf16>
    %cst_52 = arith.constant dense<0.000000e+00> : vector<8x8xf32>
    %147 = tpu.matmul %145, %146, %cst_52 {dimension_numbers = #tpu.dot_dimension_numbers<[1], [1], [0], [0], [0, 0, 1, 0], [], []>} : vector<8x64xbf16>, vector<8x64xbf16>, vector<8x8xf32> -> vector<8x8xf32>
    %cst_53 = arith.constant dense<0xFF800000> : vector<8xf32>
    %148 = vector.multi_reduction <maximumf>, %147, %cst_53 [1] : vector<8x8xf32> to vector<8xf32>
    %149 = vector.shape_cast %148 : vector<8xf32> to vector<8x1xf32>
    %150 = vector.broadcast %149 : vector<8x1xf32> to vector<8x8xf32>
    %151 = arith.subf %147, %150 : vector<8x8xf32>
    %152 = math.exp %151 : vector<8x8xf32>
    %cst_54 = arith.constant dense<0.000000e+00> : vector<8xf32>
    %153 = vector.multi_reduction <add>, %152, %cst_54 [1] : vector<8x8xf32> to vector<8xf32>
    %154 = vector.shape_cast %153 : vector<8xf32> to vector<8x1xf32>
    %155 = tpu.reciprocal %154 : vector<8x1xf32> -> vector<8x1xf32>
    %156 = arith.truncf %152 : vector<8x8xf32> to vector<8x8xbf16>
    %157 = vector.extract_strided_slice %26 {offsets = [0, 448], sizes = [8, 64], strides = [1, 1]} : vector<8x512xbf16> to vector<8x64xbf16>
    %cst_55 = arith.constant dense<0.000000e+00> : vector<8x64xf32>
    %158 = tpu.matmul %156, %157, %cst_55 {dimension_numbers = #tpu.dot_dimension_numbers<[1], [0], [0], [1], [0, 0, 1, 1], [], []>} : vector<8x8xbf16>, vector<8x64xbf16>, vector<8x64xf32> -> vector<8x64xf32>
    %159 = vector.broadcast %155 : vector<8x1xf32> to vector<8x64xf32>
    %160 = arith.mulf %158, %159 : vector<8x64xf32>
    %161 = tpu.concatenate %144, %160 in 1 : vector<8x64xf32>, vector<8x64xf32> -> vector<8x128xf32>
    %c0_56 = arith.constant 0 : index
    %c384 = arith.constant 384 : index
    %162 = vector.load %arg10[%c0_56, %c384] : memref<8x512xf32, #tpu.memory_space<vmem>>, vector<8x128xf32>
    tpu.vector_store %arg10[%c0_56, %c384], %161 {strides = array<i32>} : memref<8x512xf32, #tpu.memory_space<vmem>>, vector<8x128xf32>,
    %c0_57 = arith.constant 0 : index
    %c0_58 = arith.constant 0 : index
    %163 = vector.load %arg10[%c0_57, %c0_58] : memref<8x512xf32, #tpu.memory_space<vmem>>, vector<8x512xf32>
    %164 = arith.truncf %163 : vector<8x512xf32> to vector<8x512xbf16>
    %c0_59 = arith.constant 0 : index
    %c0_60 = arith.constant 0 : index
    %165 = vector.load %arg7[%c0_59, %c0_60] : memref<512x512xbf16, #tpu.memory_space<vmem>>, vector<512x512xbf16>
    %cst_61 = arith.constant dense<0.000000e+00> : vector<8x512xf32>
    %166 = tpu.matmul %164, %165, %cst_61 {dimension_numbers = #tpu.dot_dimension_numbers<[1], [0], [0], [1], [0, 0, 1, 1], [], []>} : vector<8x512xbf16>, vector<512x512xbf16>, vector<8x512xf32> -> vector<8x512xf32>
    %c0_62 = arith.constant 0 : index
    %c0_63 = arith.constant 0 : index
    %167 = vector.load %arg8[%c0_62, %c0_63] : memref<1x512xf32, #tpu.memory_space<vmem>>, vector<1x512xf32>
    %168 = vector.broadcast %167 : vector<1x512xf32> to vector<8x512xf32>
    %169 = arith.addf %166, %168 : vector<8x512xf32>
    %c0_64 = arith.constant 0 : index
    %c0_65 = arith.constant 0 : index
    %c0_66 = arith.constant 0 : index
    %170 = vector.load %arg9[%c0_64, %c0_65, %c0_66] : memref<1x8x512xf32, #tpu.memory_space<vmem>>, vector<1x8x512xf32>
    %171 = vector.shape_cast %170 : vector<1x8x512xf32> to vector<8x512xf32>
    %172 = vector.shape_cast %169 : vector<8x512xf32> to vector<1x8x512xf32>
    tpu.vector_store %arg9[%c0_64, %c0_65, %c0_66], %172 {strides = array<i32>} : memref<1x8x512xf32, #tpu.memory_space<vmem>>, vector<1x8x512xf32>,
    return
  }
  func.func @transform_0(%arg0: i32, %arg1: i32) -> (i32, i32, i32) {
    %c0_i32 = arith.constant 0 : i32
    %c0_i32_0 = arith.constant 0 : i32
    return %arg0, %arg1, %c0_i32 : i32, i32, i32
  }
  func.func @transform_1(%arg0: i32, %arg1: i32) -> (i32, i32, i32) {
    %c0_i32 = arith.constant 0 : i32
    %c0_i32_0 = arith.constant 0 : i32
    %c0_i32_1 = arith.constant 0 : i32
    return %arg0, %c0_i32, %c0_i32_0 : i32, i32, i32
  }
  func.func @transform_2(%arg0: i32, %arg1: i32) -> (i32, i32, i32) {
    %c0_i32 = arith.constant 0 : i32
    %c0_i32_0 = arith.constant 0 : i32
    %c0_i32_1 = arith.constant 0 : i32
    return %arg0, %c0_i32, %c0_i32_0 : i32, i32, i32
  }
  func.func @transform_3(%arg0: i32, %arg1: i32) -> (i32, i32) {
    %c0_i32 = arith.constant 0 : i32
    %c0_i32_0 = arith.constant 0 : i32
    %c0_i32_1 = arith.constant 0 : i32
    return %c0_i32, %c0_i32_0 : i32, i32
  }
  func.func @transform_4(%arg0: i32, %arg1: i32) -> (i32, i32) {
    %c0_i32 = arith.constant 0 : i32
    %c0_i32_0 = arith.constant 0 : i32
    %c0_i32_1 = arith.constant 0 : i32
    return %c0_i32, %c0_i32_0 : i32, i32
  }
  func.func @transform_5(%arg0: i32, %arg1: i32) -> (i32, i32) {
    %c0_i32 = arith.constant 0 : i32
    %c0_i32_0 = arith.constant 0 : i32
    %c0_i32_1 = arith.constant 0 : i32
    return %c0_i32, %c0_i32_0 : i32, i32
  }
  func.func @transform_6(%arg0: i32, %arg1: i32) -> (i32, i32) {
    %c0_i32 = arith.constant 0 : i32
    %c0_i32_0 = arith.constant 0 : i32
    %c0_i32_1 = arith.constant 0 : i32
    return %c0_i32, %c0_i32_0 : i32, i32
  }
  func.func @transform_7(%arg0: i32, %arg1: i32) -> (i32, i32, i32) {
    %c0_i32 = arith.constant 0 : i32
    %c0_i32_0 = arith.constant 0 : i32
    return %arg0, %arg1, %c0_i32 : i32, i32, i32
  }
}

</mosaic_0001>

<llo_original>
// kernel: tpu_custom_call.1
$region0: #{tpu_custom_call.1}
  #allocation0 [shape = 'u32[]', space=smem, size = 0x4, offset = 0x4, fixed_abs, tag = 'smem constant byte address 0x4 - core index']
  #allocation1 [shape = 'u32[144,128]{1,0:T(1,128)}', space=vmem, size = 0x12000, scoped, tag = 'internal scratch']
  #allocation2 [shape = 'f32[8,512]{1,0:T(8,128)}', space=vmem, size = 0x4000, scoped, tag = 'scratch operand']
  %s0 = inlined_call_operand.hbm [shape: f32[2,8,512], index: 0, kind: input, shape index: {}]
  %s1 = inlined_call_operand.hbm [shape: f32[2,8,512], index: 1, kind: input, shape index: {}]
  %s2 = inlined_call_operand.hbm [shape: f32[2,8,512], index: 2, kind: input, shape index: {}]
  %s3 = inlined_call_operand.hbm [shape: bf16[512,1536], index: 3, kind: input, shape index: {}]
  %s4 = inlined_call_operand.hbm [shape: f32[1,1536], index: 4, kind: input, shape index: {}]
  %s5 = inlined_call_operand.hbm [shape: bf16[512,512], index: 5, kind: input, shape index: {}]
  %s6 = inlined_call_operand.hbm [shape: f32[1,512], index: 6, kind: input, shape index: {}]
  %s7 = inlined_call_operand.hbm [shape: f32[2,8,512], index: 7, kind: output, shape index: {}]
  %s8 = sld [smem:[#allocation0]]
  $region89: #{tpu_custom_call.1} parent=0
    _
  %s10 = ssub.s32 1, %s8
  %s11 = scalar_select 0, %s10, %s8
  $region1: #{tpu_custom_call.1} parent=0
    #allocation3 [shape = 'u8[32768]{0}', space=vmem, size = 0x8000, scoped, tag = 'input window, operand 0']
    #allocation4 [shape = 's32[2]{0}', space=sflag, size = 0x8, scoped, tag = 'scoped memory for tpu_custom_call.1']
    #allocation5 [shape = 's32[2]{0}', space=sflag, size = 0x8, scoped, tag = 'scoped memory for tpu_custom_call.1']
    #allocation6 [shape = 'u8[32768]{0}', space=vmem, size = 0x8000, scoped, tag = 'input window, operand 1']
    #allocation7 [shape = 's32[2]{0}', space=sflag, size = 0x8, scoped, tag = 'scoped memory for tpu_custom_call.1']
    #allocation8 [shape = 'u8[32768]{0}', space=vmem, size = 0x8000, scoped, tag = 'input window, operand 2']
    #allocation9 [shape = 'u8[1572864]{0}', space=vmem, size = 0x180000, scoped, tag = 'input window, operand 3, single buffered']
    #allocation10 [shape = 's32[1]{0}', space=sflag, size = 0x4, scoped, tag = 'scoped memory for tpu_custom_call.1']
    #allocation11 [shape = 'u8[6144]{0}', space=vmem, size = 0x1800, scoped, tag = 'input window, operand 4, single buffered']
    #allocation12 [shape = 'u8[524288]{0}', space=vmem, size = 0x80000, scoped, tag = 'input window, operand 5, single buffered']
    #allocation13 [shape = 's32[1]{0}', space=sflag, size = 0x4, scoped, tag = 'scoped memory for tpu_custom_call.1']
    #allocation14 [shape = 'u8[2048]{0}', space=vmem, size = 0x800, scoped, tag = 'input window, operand 6, single buffered']
    #allocation15 [shape = 'u8[32768]{0}', space=vmem, size = 0x8000, scoped, tag = 'output window, operand 0']
    %12 = vsyncpa [#allocation4], 0
    %s13 = scalar_lea.sflag [#allocation4], 1
    %14 = vsyncpa %s13, 0
    %15 = vsyncpa [#allocation7], 0
    %s16 = scalar_lea.sflag [#allocation7], 1
    %17 = vsyncpa %s16, 0
    %18 = vsyncpa [#allocation10], 0
    %19 = vsyncpa [#allocation13], 0
    %20 = vsyncpa [#allocation5], 0
    %s21 = scalar_lea.sflag [#allocation5], 1
    %22 = vsyncpa %s21, 0
    loop: start=0, step=1, limit=4
    $region2: #{tpu_custom_call.1} parent=1 // loop_pre_header
      _
    $region3: #{tpu_custom_call.1} parent=1 // loop_header
      %s24 = sphi 0, %s28
      %p25 = scmp.ge.s32.totalorder %s24, 4
      %s31 = sphi 0, %s43
      %s32 = sphi 0, %s39
      %s33 = sphi 0, %s31
      %s34 = sphi 0, %s32
      %s35 = sphi 0, %s33
      %s36 = sphi 0, %s34
      %s48 = sphi 0, %s50
      %s51 = sphi 0, %s48
      %s52 = sphi 0, %s51
      %s68 = sphi 0, %s52
      %s74 = sphi 0, %s76
      %s77 = sphi 0, %s74
      %s78 = sphi 0, %s77
      %s94 = sphi 0, %s78
      %s100 = sphi 0, %s102
      %s103 = sphi 0, %s100
      %s104 = sphi 0, %s103
      %s120 = sphi 0, %s104
      %s124 = sphi 0, %s124
      %s126 = sphi 0, %s124
      %s127 = sphi 0, %s126
      %s141 = sphi 0, %s127
      %s145 = sphi 0, %s145
      %s147 = sphi 0, %s145
      %s148 = sphi 0, %s147
      %s162 = sphi 0, %s148
      %s166 = sphi 0, %s166
      %s168 = sphi 0, %s166
      %s169 = sphi 0, %s168
      %s183 = sphi 0, %s169
      %s187 = sphi 0, %s187
      %s189 = sphi 0, %s187
      %s190 = sphi 0, %s189
      %s204 = sphi 0, %s190
      %s212 = sphi 0, %s214
      %s215 = sphi 0, %s212
      %s216 = sphi 0, %s215
      %s232 = sphi 0, %s216
    $region4: #{tpu_custom_call.1} parent=1 // loop_header_branch
      %27 = sbr.rel (%p25) target = $region8
    $region5: #{tpu_custom_call.1} parent=1 // loop_body
      %s29 = ssub.s32 %s24, 1
      %s30 = ssub.s32 %s24, 2
      %s37 = sadd.s32 1, %s32
      %p38 = scmp.ge.s32.totalorder %s37, 1
      %s39 = scalar_select %p38, 0, %s37
      %s40 = sadd.s32 1, %s31
      %s41 = scalar_select %p38, %s40, %s31
      %p42 = scmp.ge.s32.totalorder %s41, 2
      %s43 = scalar_select %p42, 0, %s41
      %s44 = ssub.s32 %s31, %s43
      %s45 = ssub.s32 %s32, %s39
      %s46 = sor.u32 %s44, %s45
      %p47 = scmp.eq.s32.totalorder %s46, 0
      %s49 = sadd.s32 %s48, 1
      %s50 = scalar_select %p47, %s48, %s49
      %p53 = pneg %p47
      %p54 = scmp.eq.s32.totalorder %s24, 1
      %p55 = por %p53, %p54
      %p56 = scmp.ne.s32.totalorder %s48, %s51
      %p57 = scmp.eq.s32.totalorder %s24, 0
      %p58 = por %p56, %p57
      %p59 = scmp.ne.s32.totalorder %s48, %s51
      %p60 = scmp.eq.s32.totalorder %s29, 1
      %p61 = por %p59, %p60
      %p62 = scmp.ne.s32.totalorder %s51, %s52
      %p63 = scmp.eq.s32.totalorder %s29, 0
      %p64 = por %p62, %p63
      %p65 = scmp.ne.s32.totalorder %s51, %s52
      %p66 = scmp.eq.s32.totalorder %s30, 1
      %p67 = por %p65, %p66
      %p69 = scmp.ne.s32.totalorder %s52, %s68
      %p70 = scmp.eq.s32.totalorder %s30, 0
      %p71 = por %p69, %p70
      %s72 = ssub.s32 %s31, %s43
      %p73 = scmp.eq.s32.totalorder %s72, 0
      %s75 = sadd.s32 %s74, 1
      %s76 = scalar_select %p73, %s74, %s75
      %p79 = pneg %p73
      %p80 = scmp.eq.s32.totalorder %s24, 1
      %p81 = por %p79, %p80
      %p82 = scmp.ne.s32.totalorder %s74, %s77
      %p83 = scmp.eq.s32.totalorder %s24, 0
      %p84 = por %p82, %p83
      %p85 = scmp.ne.s32.totalorder %s74, %s77
      %p86 = scmp.eq.s32.totalorder %s29, 1
      %p87 = por %p85, %p86
      %p88 = scmp.ne.s32.totalorder %s77, %s78
      %p89 = scmp.eq.s32.totalorder %s29, 0
      %p90 = por %p88, %p89
      %p91 = scmp.ne.s32.totalorder %s77, %s78
      %p92 = scmp.eq.s32.totalorder %s30, 1
      %p93 = por %p91, %p92
      %p95 = scmp.ne.s32.totalorder %s78, %s94
      %p96 = scmp.eq.s32.totalorder %s30, 0
      %p97 = por %p95, %p96
      %s98 = ssub.s32 %s31, %s43
      %p99 = scmp.eq.s32.totalorder %s98, 0
      %s101 = sadd.s32 %s100, 1
      %s102 = scalar_select %p99, %s100, %s101
      %p105 = pneg %p99
      %p106 = scmp.eq.s32.totalorder %s24, 1
      %p107 = por %p105, %p106
      %p108 = scmp.ne.s32.totalorder %s100, %s103
      %p109 = scmp.eq.s32.totalorder %s24, 0
      %p110 = por %p108, %p109
      %p111 = scmp.ne.s32.totalorder %s100, %s103
      %p112 = scmp.eq.s32.totalorder %s29, 1
      %p113 = por %p111, %p112
      %p114 = scmp.ne.s32.totalorder %s103, %s104
      %p115 = scmp.eq.s32.totalorder %s29, 0
      %p116 = por %p114, %p115
      %p117 = scmp.ne.s32.totalorder %s103, %s104
      %p118 = scmp.eq.s32.totalorder %s30, 1
      %p119 = por %p117, %p118
      %p121 = scmp.ne.s32.totalorder %s104, %s120
      %p122 = scmp.eq.s32.totalorder %s30, 0
      %p123 = por %p121, %p122
      %s125 = sadd.s32 %s124, 1
      %p128 = scmp.eq.s32.totalorder %s24, 1
      %p129 = scmp.ne.s32.totalorder %s124, %s126
      %p130 = scmp.eq.s32.totalorder %s24, 0
      %p131 = por %p129, %p130
      %p132 = scmp.ne.s32.totalorder %s124, %s126
      %p133 = scmp.eq.s32.totalorder %s29, 1
      %p134 = por %p132, %p133
      %p135 = scmp.ne.s32.totalorder %s126, %s127
      %p136 = scmp.eq.s32.totalorder %s29, 0
      %p137 = por %p135, %p136
      %p138 = scmp.ne.s32.totalorder %s126, %s127
      %p139 = scmp.eq.s32.totalorder %s30, 1
      %p140 = por %p138, %p139
      %p142 = scmp.ne.s32.totalorder %s127, %s141
      %p143 = scmp.eq.s32.totalorder %s30, 0
      %p144 = por %p142, %p143
      %s146 = sadd.s32 %s145, 1
      %p149 = scmp.eq.s32.totalorder %s24, 1
      %p150 = scmp.ne.s32.totalorder %s145, %s147
      %p151 = scmp.eq.s32.totalorder %s24, 0
      %p152 = por %p150, %p151
      %p153 = scmp.ne.s32.totalorder %s145, %s147
      %p154 = scmp.eq.s32.totalorder %s29, 1
      %p155 = por %p153, %p154
      %p156 = scmp.ne.s32.totalorder %s147, %s148
      %p157 = scmp.eq.s32.totalorder %s29, 0
      %p158 = por %p156, %p157
      %p159 = scmp.ne.s32.totalorder %s147, %s148
      %p160 = scmp.eq.s32.totalorder %s30, 1
      %p161 = por %p159, %p160
      %p163 = scmp.ne.s32.totalorder %s148, %s162
      %p164 = scmp.eq.s32.totalorder %s30, 0
      %p165 = por %p163, %p164
      %s167 = sadd.s32 %s166, 1
      %p170 = scmp.eq.s32.totalorder %s24, 1
      %p171 = scmp.ne.s32.totalorder %s166, %s168
      %p172 = scmp.eq.s32.totalorder %s24, 0
      %p173 = por %p171, %p172
      %p174 = scmp.ne.s32.totalorder %s166, %s168
      %p175 = scmp.eq.s32.totalorder %s29, 1
      %p176 = por %p174, %p175
      %p177 = scmp.ne.s32.totalorder %s168, %s169
      %p178 = scmp.eq.s32.totalorder %s29, 0
      %p179 = por %p177, %p178
      %p180 = scmp.ne.s32.totalorder %s168, %s169
      %p181 = scmp.eq.s32.totalorder %s30, 1
      %p182 = por %p180, %p181
      %p184 = scmp.ne.s32.totalorder %s169, %s183
      %p185 = scmp.eq.s32.totalorder %s30, 0
      %p186 = por %p184, %p185
      %s188 = sadd.s32 %s187, 1
      %p191 = scmp.eq.s32.totalorder %s24, 1
      %p192 = scmp.ne.s32.totalorder %s187, %s189
      %p193 = scmp.eq.s32.totalorder %s24, 0
      %p194 = por %p192, %p193
      %p195 = scmp.ne.s32.totalorder %s187, %s189
      %p196 = scmp.eq.s32.totalorder %s29, 1
      %p197 = por %p195, %p196
      %p198 = scmp.ne.s32.totalorder %s189, %s190
      %p199 = scmp.eq.s32.totalorder %s29, 0
      %p200 = por %p198, %p199
      %p201 = scmp.ne.s32.totalorder %s189, %s190
      %p202 = scmp.eq.s32.totalorder %s30, 1
      %p203 = por %p201, %p202
      %p205 = scmp.ne.s32.totalorder %s190, %s204
      %p206 = scmp.eq.s32.totalorder %s30, 0
      %p207 = por %p205, %p206
      %s208 = ssub.s32 %s31, %s43
      %s209 = ssub.s32 %s32, %s39
      %s210 = sor.u32 %s208, %s209
      %p211 = scmp.eq.s32.totalorder %s210, 0
      %s213 = sadd.s32 %s212, 1
      %s214 = scalar_select %p211, %s212, %s213
      %p217 = pneg %p211
      %p218 = scmp.eq.s32.totalorder %s24, 1
      %p219 = por %p217, %p218
      %p220 = scmp.ne.s32.totalorder %s212, %s215
      %p221 = scmp.eq.s32.totalorder %s24, 0
      %p222 = por %p220, %p221
      %p223 = scmp.ne.s32.totalorder %s212, %s215
      %p224 = scmp.eq.s32.totalorder %s29, 1
      %p225 = por %p223, %p224
      %p226 = scmp.ne.s32.totalorder %s215, %s216
      %p227 = scmp.eq.s32.totalorder %s29, 0
      %p228 = por %p226, %p227
      %p229 = scmp.ne.s32.totalorder %s215, %s216
      %p230 = scmp.eq.s32.totalorder %s30, 1
      %p231 = por %p229, %p230
      %p233 = scmp.ne.s32.totalorder %s216, %s232
      %p234 = scmp.eq.s32.totalorder %s30, 0
      %p235 = por %p233, %p234
      %p236 = scmp.le.s32.totalorder 1, %s24
      %p237 = scmp.lt.s32.totalorder %s24, 3
      %p238 = pnand %p236, %p237
      %p239 = pneg %p238
      // Predicated region
      $region9: #{tpu_custom_call.1} parent=5 // pred_check
        _
      $region10: #{tpu_custom_call.1} parent=5 // pred_check_branch
        %241 = sbr.rel (%p238) target = $region12
      $region11: #{tpu_custom_call.1} parent=5 // pred_region
        %s242 = ssub.s32 %s24, 1
        // Predicated region
        $region13: #{tpu_custom_call.1} parent=11 // pred_check
          %p243 = pneg %p137
        $region14: #{tpu_custom_call.1} parent=11 // pred_check_branch
          %245 = sbr.rel (%p243) target = $region16
        $region15: #{tpu_custom_call.1} parent=11 // pred_region
          %s247 = ssub.s32 49152, 49152
          %248 = vsyncadd [#allocation10], %s247
          %s249 = sshll.u32 [#allocation9], 4
          %s250 = int_to_ptr.vmem [resolvable:$true] %s249
          %255 = dma.hbm_to_vmem [thread:$0]  %s3, 49152, %s250, [#allocation10], 768, 768, 48
        $region16: #{tpu_custom_call.1} parent=11 // pred_fallthru
          _
        // Predicated region
        $region17: #{tpu_custom_call.1} parent=11 // pred_check
          %p256 = pneg %p158
        $region18: #{tpu_custom_call.1} parent=11 // pred_check_branch
          %258 = sbr.rel (%p256) target = $region20
        $region19: #{tpu_custom_call.1} parent=11 // pred_region
          %s260 = ssub.s32 192, 192
          %261 = vsyncadd [#allocation10], %s260
          %s263 = sshll.u32 [#allocation11], 4
          %s264 = int_to_ptr.vmem [resolvable:$true] %s263
          %266 = dma.hbm_to_vmem [thread:$0]  %s4, 192, %s264, [#allocation10]
        $region20: #{tpu_custom_call.1} parent=11 // pred_fallthru
          _
        // Predicated region
        $region21: #{tpu_custom_call.1} parent=11 // pred_check
          %p267 = pneg %p179
        $region22: #{tpu_custom_call.1} parent=11 // pred_check_branch
          %269 = sbr.rel (%p267) target = $region24
        $region23: #{tpu_custom_call.1} parent=11 // pred_region
          %s271 = ssub.s32 16384, 16384
          %272 = vsyncadd [#allocation13], %s271
          %s273 = sshll.u32 [#allocation12], 4
          %s274 = int_to_ptr.vmem [resolvable:$true] %s273
          %279 = dma.hbm_to_vmem [thread:$0]  %s5, 16384, %s274, [#allocation13], 256, 256, 16
        $region24: #{tpu_custom_call.1} parent=11 // pred_fallthru
          _
        // Predicated region
        $region25: #{tpu_custom_call.1} parent=11 // pred_check
          %p280 = pneg %p200
        $region26: #{tpu_custom_call.1} parent=11 // pred_check_branch
          %282 = sbr.rel (%p280) target = $region28
        $region27: #{tpu_custom_call.1} parent=11 // pred_region
          %s284 = ssub.s32 64, 64
          %285 = vsyncadd [#allocation13], %s284
          %s287 = sshll.u32 [#allocation14], 4
          %s288 = int_to_ptr.vmem [resolvable:$true] %s287
          %290 = dma.hbm_to_vmem [thread:$0]  %s6, 64, %s288, [#allocation13]
        $region28: #{tpu_custom_call.1} parent=11 // pred_fallthru
          _
      $region12: #{tpu_custom_call.1} parent=5 // pred_fallthru
        _
      %p291 = scmp.lt.s32.totalorder %s24, 2
      // Predicated region
      $region29: #{tpu_custom_call.1} parent=5 // pred_check
        %p292 = pneg %p291
      $region30: #{tpu_custom_call.1} parent=5 // pred_check_branch
        %294 = sbr.rel (%p292) target = $region32
      $region31: #{tpu_custom_call.1} parent=5 // pred_region
        // Predicated region
        $region33: #{tpu_custom_call.1} parent=31 // pred_check
          %p295 = pneg %p58
        $region34: #{tpu_custom_call.1} parent=31 // pred_check_branch
          %297 = sbr.rel (%p295) target = $region36
        $region35: #{tpu_custom_call.1} parent=31 // pred_region
          %s298 = sand.u32 %s48, 1
          %s299 = scalar_lea.sflag [#allocation4], %s298
          %s300 = sand.u32 %s48, 1
          %s301 = smul.addr %s300, 32
          %s302 = scalar_lea.vmem [#allocation3], %s301
          %s304 = ssub.s32 512, 512
          %305 = vsyncadd %s299, %s304
          %s306 = smul.addr %s32, 4
          %s307 = smul.addr %s31, 4
          %s308 = sadd.s32 %s306, %s307
          %s309 = smul.addr %s308, 128
          %s310 = scalar_lea.hbm %s0, %s309
          %s312 = sshll.u32 %s302, 4
          %s313 = int_to_ptr.vmem [resolvable:$true] %s312
          %315 = dma.hbm_to_vmem [thread:$0]  %s310, 512, %s313, %s299
        $region36: #{tpu_custom_call.1} parent=31 // pred_fallthru
          _
        // Predicated region
        $region37: #{tpu_custom_call.1} parent=31 // pred_check
          %p316 = pneg %p84
        $region38: #{tpu_custom_call.1} parent=31 // pred_check_branch
          %318 = sbr.rel (%p316) target = $region40
        $region39: #{tpu_custom_call.1} parent=31 // pred_region
          %s319 = sand.u32 %s24, 1
          %s320 = scalar_lea.sflag [#allocation7], %s319
          %s321 = sand.u32 %s74, 1
          %s322 = smul.addr %s321, 32
          %s323 = scalar_lea.vmem [#allocation6], %s322
          %s325 = ssub.s32 512, 512
          %326 = vsyncadd %s320, %s325
          %s327 = smul.addr %s31, 4
          %s328 = smul.addr %s327, 128
          %s329 = scalar_lea.hbm %s1, %s328
          %s331 = sshll.u32 %s323, 4
          %s332 = int_to_ptr.vmem [resolvable:$true] %s331
          %334 = dma.hbm_to_vmem [thread:$0]  %s329, 512, %s332, %s320
        $region40: #{tpu_custom_call.1} parent=31 // pred_fallthru
          _
        // Predicated region
        $region41: #{tpu_custom_call.1} parent=31 // pred_check
          %p335 = pneg %p110
        $region42: #{tpu_custom_call.1} parent=31 // pred_check_branch
          %337 = sbr.rel (%p335) target = $region44
        $region43: #{tpu_custom_call.1} parent=31 // pred_region
          %s338 = sand.u32 %s24, 1
          %s339 = scalar_lea.sflag [#allocation7], %s338
          %s340 = sand.u32 %s100, 1
          %s341 = smul.addr %s340, 32
          %s342 = scalar_lea.vmem [#allocation8], %s341
          %s344 = ssub.s32 512, 512
          %345 = vsyncadd %s339, %s344
          %s346 = smul.addr %s31, 4
          %s347 = smul.addr %s346, 128
          %s348 = scalar_lea.hbm %s2, %s347
          %s350 = sshll.u32 %s342, 4
          %s351 = int_to_ptr.vmem [resolvable:$true] %s350
          %353 = dma.hbm_to_vmem [thread:$0]  %s348, 512, %s351, %s339
        $region44: #{tpu_custom_call.1} parent=31 // pred_fallthru
          _
      $region32: #{tpu_custom_call.1} parent=5 // pred_fallthru
        _
      %p354 = scmp.le.s32.totalorder 1, %s24
      %p355 = scmp.lt.s32.totalorder %s24, 3
      %p356 = pnand %p354, %p355
      %p357 = pneg %p356
      // Predicated region
      $region45: #{tpu_custom_call.1} parent=5 // pred_check
        _
      $region46: #{tpu_custom_call.1} parent=5 // pred_check_branch
        %359 = sbr.rel (%p356) target = $region48
      $region47: #{tpu_custom_call.1} parent=5 // pred_region
        %s360 = ssub.s32 %s24, 1
        %s361 = sand.u32 %s51, 1
        %s362 = scalar_lea.sflag [#allocation4], %s361
        %s363 = sand.u32 %s51, 1
        %s364 = smul.addr %s363, 32
        %s365 = scalar_lea.vmem [#allocation3], %s364
        // Predicated region
        $region49: #{tpu_custom_call.1} parent=47 // pred_check
          %p366 = pneg %p64
        $region50: #{tpu_custom_call.1} parent=47 // pred_check_branch
          %368 = sbr.rel (%p366) target = $region52
        $region51: #{tpu_custom_call.1} parent=47 // pred_region
          %369 = dma.done %s362, 512
        $region52: #{tpu_custom_call.1} parent=47 // pred_fallthru
          _
        %s370 = sand.u32 %s29, 1
        %s371 = scalar_lea.sflag [#allocation7], %s370
        %s372 = sand.u32 %s77, 1
        %s373 = smul.addr %s372, 32
        %s374 = scalar_lea.vmem [#allocation6], %s373
        // Predicated region
        $region53: #{tpu_custom_call.1} parent=47 // pred_check
          %p375 = pneg %p90
        $region54: #{tpu_custom_call.1} parent=47 // pred_check_branch
          %377 = sbr.rel (%p375) target = $region56
        $region55: #{tpu_custom_call.1} parent=47 // pred_region
          %378 = dma.done %s371, 512
        $region56: #{tpu_custom_call.1} parent=47 // pred_fallthru
          _
        %s379 = sand.u32 %s29, 1
        %s380 = scalar_lea.sflag [#allocation7], %s379
        %s381 = sand.u32 %s103, 1
        %s382 = smul.addr %s381, 32
        %s383 = scalar_lea.vmem [#allocation8], %s382
        // Predicated region
        $region57: #{tpu_custom_call.1} parent=47 // pred_check
          %p384 = pneg %p116
        $region58: #{tpu_custom_call.1} parent=47 // pred_check_branch
          %386 = sbr.rel (%p384) target = $region60
        $region59: #{tpu_custom_call.1} parent=47 // pred_region
          %387 = dma.done %s380, 512
        $region60: #{tpu_custom_call.1} parent=47 // pred_fallthru
          _
        // Predicated region
        $region61: #{tpu_custom_call.1} parent=47 // pred_check
          %p388 = pneg %p137
        $region62: #{tpu_custom_call.1} parent=47 // pred_check_branch
          %390 = sbr.rel (%p388) target = $region64
        $region63: #{tpu_custom_call.1} parent=47 // pred_region
          %391 = dma.done [#allocation10], 49152
        $region64: #{tpu_custom_call.1} parent=47 // pred_fallthru
          _
        // Predicated region
        $region65: #{tpu_custom_call.1} parent=47 // pred_check
          %p392 = pneg %p158
        $region66: #{tpu_custom_call.1} parent=47 // pred_check_branch
          %394 = sbr.rel (%p392) target = $region68
        $region67: #{tpu_custom_call.1} parent=47 // pred_region
          %395 = dma.done [#allocation10], 192
        $region68: #{tpu_custom_call.1} parent=47 // pred_fallthru
          _
        // Predicated region
        $region69: #{tpu_custom_call.1} parent=47 // pred_check
          %p396 = pneg %p179
        $region70: #{tpu_custom_call.1} parent=47 // pred_check_branch
          %398 = sbr.rel (%p396) target = $region72
        $region71: #{tpu_custom_call.1} parent=47 // pred_region
          %399 = dma.done [#allocation13], 16384
        $region72: #{tpu_custom_call.1} parent=47 // pred_fallthru
          _
        // Predicated region
        $region73: #{tpu_custom_call.1} parent=47 // pred_check
          %p400 = pneg %p200
        $region74: #{tpu_custom_call.1} parent=47 // pred_check_branch
          %402 = sbr.rel (%p400) target = $region76
        $region75: #{tpu_custom_call.1} parent=47 // pred_region
          %403 = dma.done [#allocation13], 64
        $region76: #{tpu_custom_call.1} parent=47 // pred_fallthru
          _
        %s404 = sand.u32 %s51, 1
        %s405 = scalar_lea.sflag [#allocation4], %s404
        %s406 = sand.u32 %s51, 1
        %s407 = smul.addr %s406, 32
        %s408 = scalar_lea.vmem [#allocation3], %s407
        %p409 = pneg %p64
        %p410 = pneg %p61
        %s411 = sand.u32 %s29, 1
        %s412 = scalar_lea.sflag [#allocation7], %s411
        %s413 = sand.u32 %s77, 1
        %s414 = smul.addr %s413, 32
        %s415 = scalar_lea.vmem [#allocation6], %s414
        %p416 = pneg %p90
        %p417 = pneg %p87
        %s418 = sand.u32 %s29, 1
        %s419 = scalar_lea.sflag [#allocation7], %s418
        %s420 = sand.u32 %s103, 1
        %s421 = smul.addr %s420, 32
        %s422 = scalar_lea.vmem [#allocation8], %s421
        %p423 = pneg %p116
        %p424 = pneg %p113
        %p425 = pneg %p137
        %p426 = pneg %p134
        %p427 = pneg %p158
        %p428 = pneg %p155
        %p429 = pneg %p179
        %p430 = pneg %p176
        %p431 = pneg %p200
        %p432 = pneg %p197
        %p433 = pneg %p228
        %p434 = pneg %p225
        %s435 = sand.u32 %s215, 1
        %s436 = scalar_lea.sflag [#allocation5], %s435
        %s437 = sand.u32 %s215, 1
        %s438 = smul.addr %s437, 32
        %s439 = scalar_lea.vmem [#allocation15], %s438
        %v441 = vld [vmem:[%s365] sm:$0xff]
        %v442 = vld [vmem:[%s365 + $0x8] sm:$0xff]
        %v443 = vld [vmem:[%s365 + $0x10] sm:$0xff]
        %v444 = vld [vmem:[%s365 + $0x18] sm:$0xff]
        %v445 = vpack.c.bf16 %v441, %v441
        %v446 = vpack.c.bf16 %v442, %v442
        %v447 = vpack.c.bf16 %v443, %v443
        %v448 = vpack.c.bf16 %v444, %v444
        %v449 = vld [vmem:[%s374] sm:$0xff]
        %v450 = vld [vmem:[%s374 + $0x8] sm:$0xff]
        %v451 = vld [vmem:[%s374 + $0x10] sm:$0xff]
        %v452 = vld [vmem:[%s374 + $0x18] sm:$0xff]
        %v453 = vpack.c.bf16 %v449, %v449
        %v454 = vpack.c.bf16 %v450, %v450
        %v455 = vpack.c.bf16 %v451, %v451
        %v456 = vpack.c.bf16 %v452, %v452
        %v457 = vld [vmem:[%s383] sm:$0xff]
        %v458 = vld [vmem:[%s383 + $0x8] sm:$0xff]
        %v459 = vld [vmem:[%s383 + $0x10] sm:$0xff]
        %v460 = vld [vmem:[%s383 + $0x18] sm:$0xff]
        %v461 = vpack.c.bf16 %v457, %v457
        %v462 = vpack.c.bf16 %v458, %v458
        %v463 = vpack.c.bf16 %v459, %v459
        %v464 = vpack.c.bf16 %v460, %v460
        %v465 = vld [vmem:[#allocation9] sm:$0xff]
        %v466 = vld [vmem:[#allocation9 + $0x8] sm:$0xff]
        %v467 = vld [vmem:[#allocation9 + $0x30] sm:$0xff]
        %v468 = vld [vmem:[#allocation9 + $0x38] sm:$0xff]
        %v469 = vld [vmem:[#allocation9 + $0x60] sm:$0xff]
        %v470 = vld [vmem:[#allocation9 + $0x68] sm:$0xff]
        %v471 = vld [vmem:[#allocation9 + $0x90] sm:$0xff]
        %v472 = vld [vmem:[#allocation9 + $0x98] sm:$0xff]
        %v473 = vld [vmem:[#allocation9 + $0xc0] sm:$0xff]
        %v474 = vld [vmem:[#allocation9 + $0xc8] sm:$0xff]
        %v475 = vld [vmem:[#allocation9 + $0xf0] sm:$0xff]
        %v476 = vld [vmem:[#allocation9 + $0xf8] sm:$0xff]
        %v477 = vld [vmem:[#allocation9 + $0x120] sm:$0xff]
        %v478 = vld [vmem:[#allocation9 + $0x128] sm:$0xff]
        %v479 = vld [vmem:[#allocation9 + $0x150] sm:$0xff]
        %v480 = vld [vmem:[#allocation9 + $0x158] sm:$0xff]
        %v481 = vld [vmem:[#allocation9 + $0x180] sm:$0xff]
        %v482 = vld [vmem:[#allocation9 + $0x188] sm:$0xff]
        %v483 = vld [vmem:[#allocation9 + $0x1b0] sm:$0xff]
        %v484 = vld [vmem:[#allocation9 + $0x1b8] sm:$0xff]
        %v485 = vld [vmem:[#allocation9 + $0x1e0] sm:$0xff]
        %v486 = vld [vmem:[#allocation9 + $0x1e8] sm:$0xff]
        %v487 = vld [vmem:[#allocation9 + $0x210] sm:$0xff]
        %v488 = vld [vmem:[#allocation9 + $0x218] sm:$0xff]
        %v489 = vld [vmem:[#allocation9 + $0x240] sm:$0xff]
        %v490 = vld [vmem:[#allocation9 + $0x248] sm:$0xff]
        %v491 = vld [vmem:[#allocation9 + $0x270] sm:$0xff]
        %v492 = vld [vmem:[#allocation9 + $0x278] sm:$0xff]
        %v493 = vld [vmem:[#allocation9 + $0x2a0] sm:$0xff]
        %v494 = vld [vmem:[#allocation9 + $0x2a8] sm:$0xff]
        %v495 = vld [vmem:[#allocation9 + $0x2d0] sm:$0xff]
        %v496 = vld [vmem:[#allocation9 + $0x2d8] sm:$0xff]
        %v497 = vld [vmem:[#allocation9 + $0x300] sm:$0xff]
        %v498 = vld [vmem:[#allocation9 + $0x308] sm:$0xff]
        %v499 = vld [vmem:[#allocation9 + $0x330] sm:$0xff]
        %v500 = vld [vmem:[#allocation9 + $0x338] sm:$0xff]
        %v501 = vld [vmem:[#allocation9 + $0x360] sm:$0xff]
        %v502 = vld [vmem:[#allocation9 + $0x368] sm:$0xff]
        %v503 = vld [vmem:[#allocation9 + $0x390] sm:$0xff]
        %v504 = vld [vmem:[#allocation9 + $0x398] sm:$0xff]
        %v505 = vld [vmem:[#allocation9 + $0x3c0] sm:$0xff]
        %v506 = vld [vmem:[#allocation9 + $0x3c8] sm:$0xff]
        %v507 = vld [vmem:[#allocation9 + $0x3f0] sm:$0xff]
        %v508 = vld [vmem:[#allocation9 + $0x3f8] sm:$0xff]
        %v509 = vld [vmem:[#allocation9 + $0x420] sm:$0xff]
        %v510 = vld [vmem:[#allocation9 + $0x428] sm:$0xff]
        %v511 = vld [vmem:[#allocation9 + $0x450] sm:$0xff]
        %v512 = vld [vmem:[#allocation9 + $0x458] sm:$0xff]
        %v513 = vld [vmem:[#allocation9 + $0x480] sm:$0xff]
        %v514 = vld [vmem:[#allocation9 + $0x488] sm:$0xff]
        %v515 = vld [vmem:[#allocation9 + $0x4b0] sm:$0xff]
        %v516 = vld [vmem:[#allocation9 + $0x4b8] sm:$0xff]
        %v517 = vld [vmem:[#allocation9 + $0x4e0] sm:$0xff]
        %v518 = vld [vmem:[#allocation9 + $0x4e8] sm:$0xff]
        %v519 = vld [vmem:[#allocation9 + $0x510] sm:$0xff]
        %v520 = vld [vmem:[#allocation9 + $0x518] sm:$0xff]
        %v521 = vld [vmem:[#allocation9 + $0x540] sm:$0xff]
        %v522 = vld [vmem:[#allocation9 + $0x548] sm:$0xff]
        %v523 = vld [vmem:[#allocation9 + $0x570] sm:$0xff]
        %v524 = vld [vmem:[#allocation9 + $0x578] sm:$0xff]
        %v525 = vld [vmem:[#allocation9 + $0x5a0] sm:$0xff]
        %v526 = vld [vmem:[#allocation9 + $0x5a8] sm:$0xff]
        %v527 = vld [vmem:[#allocation9 + $0x5d0] sm:$0xff]
        %v528 = vld [vmem:[#allocation9 + $0x5d8] sm:$0xff]
        %v529 = vld [vmem:[#allocation9 + $0x600] sm:$0xff]
        %v530 = vld [vmem:[#allocation9 + $0x608] sm:$0xff]
        %v531 = vld [vmem:[#allocation9 + $0x630] sm:$0xff]
        %v532 = vld [vmem:[#allocation9 + $0x638] sm:$0xff]
        %v533 = vld [vmem:[#allocation9 + $0x660] sm:$0xff]
        %v534 = vld [vmem:[#allocation9 + $0x668] sm:$0xff]
        %v535 = vld [vmem:[#allocation9 + $0x690] sm:$0xff]
        %v536 = vld [vmem:[#allocation9 + $0x698] sm:$0xff]
        %v537 = vld [vmem:[#allocation9 + $0x6c0] sm:$0xff]
        %v538 = vld [vmem:[#allocation9 + $0x6c8] sm:$0xff]
        %v539 = vld [vmem:[#allocation9 + $0x6f0] sm:$0xff]
        %v540 = vld [vmem:[#allocation9 + $0x6f8] sm:$0xff]
        %v541 = vld [vmem:[#allocation9 + $0x720] sm:$0xff]
        %v542 = vld [vmem:[#allocation9 + $0x728] sm:$0xff]
        %v543 = vld [vmem:[#allocation9 + $0x750] sm:$0xff]
        %v544 = vld [vmem:[#allocation9 + $0x758] sm:$0xff]
        %v545 = vld [vmem:[#allocation9 + $0x780] sm:$0xff]
        %v546 = vld [vmem:[#allocation9 + $0x788] sm:$0xff]
        %v547 = vld [vmem:[#allocation9 + $0x7b0] sm:$0xff]
        %v548 = vld [vmem:[#allocation9 + $0x7b8] sm:$0xff]
        %v549 = vld [vmem:[#allocation9 + $0x7e0] sm:$0xff]
        %v550 = vld [vmem:[#allocation9 + $0x7e8] sm:$0xff]
        %v551 = vld [vmem:[#allocation9 + $0x810] sm:$0xff]
        %v552 = vld [vmem:[#allocation9 + $0x818] sm:$0xff]
        %v553 = vld [vmem:[#allocation9 + $0x840] sm:$0xff]
        %v554 = vld [vmem:[#allocation9 + $0x848] sm:$0xff]
        %v555 = vld [vmem:[#allocation9 + $0x870] sm:$0xff]
        %v556 = vld [vmem:[#allocation9 + $0x878] sm:$0xff]
        %v557 = vld [vmem:[#allocation9 + $0x8a0] sm:$0xff]
        %v558 = vld [vmem:[#allocation9 + $0x8a8] sm:$0xff]
        %v559 = vld [vmem:[#allocation9 + $0x8d0] sm:$0xff]
        %v560 = vld [vmem:[#allocation9 + $0x8d8] sm:$0xff]
        %v561 = vld [vmem:[#allocation9 + $0x900] sm:$0xff]
        %v562 = vld [vmem:[#allocation9 + $0x908] sm:$0xff]
        %v563 = vld [vmem:[#allocation9 + $0x930] sm:$0xff]
        %v564 = vld [vmem:[#allocation9 + $0x938] sm:$0xff]
        %v565 = vld [vmem:[#allocation9 + $0x960] sm:$0xff]
        %v566 = vld [vmem:[#allocation9 + $0x968] sm:$0xff]
        %v567 = vld [vmem:[#allocation9 + $0x990] sm:$0xff]
        %v568 = vld [vmem:[#allocation9 + $0x998] sm:$0xff]
        %v569 = vld [vmem:[#allocation9 + $0x9c0] sm:$0xff]
        %v570 = vld [vmem:[#allocation9 + $0x9c8] sm:$0xff]
        %v571 = vld [vmem:[#allocation9 + $0x9f0] sm:$0xff]
        %v572 = vld [vmem:[#allocation9 + $0x9f8] sm:$0xff]
        %v573 = vld [vmem:[#allocation9 + $0xa20] sm:$0xff]
        %v574 = vld [vmem:[#allocation9 + $0xa28] sm:$0xff]
        %v575 = vld [vmem:[#allocation9 + $0xa50] sm:$0xff]
        %v576 = vld [vmem:[#allocation9 + $0xa58] sm:$0xff]
        %v577 = vld [vmem:[#allocation9 + $0xa80] sm:$0xff]
        %v578 = vld [vmem:[#allocation9 + $0xa88] sm:$0xff]
        %v579 = vld [vmem:[#allocation9 + $0xab0] sm:$0xff]
        %v580 = vld [vmem:[#allocation9 + $0xab8] sm:$0xff]
        %v581 = vld [vmem:[#allocation9 + $0xae0] sm:$0xff]
        %v582 = vld [vmem:[#allocation9 + $0xae8] sm:$0xff]
        %v583 = vld [vmem:[#allocation9 + $0xb10] sm:$0xff]
        %v584 = vld [vmem:[#allocation9 + $0xb18] sm:$0xff]
        %v585 = vld [vmem:[#allocation9 + $0xb40] sm:$0xff]
        %v586 = vld [vmem:[#allocation9 + $0xb48] sm:$0xff]
        %v587 = vld [vmem:[#allocation9 + $0xb70] sm:$0xff]
        %v588 = vld [vmem:[#allocation9 + $0xb78] sm:$0xff]
        %v589 = vld [vmem:[#allocation9 + $0xba0] sm:$0xff]
        %v590 = vld [vmem:[#allocation9 + $0xba8] sm:$0xff]
        %v591 = vld [vmem:[#allocation9 + $0xbd0] sm:$0xff]
        %v592 = vld [vmem:[#allocation9 + $0xbd8] sm:$0xff]
        %v593 = vld [vmem:[#allocation11] sm:$0xf]
        %v595 = vlaneseq
        %v596 = vshrl.u32 %v595, 7
        %v597 = vsub.s32 0, %v596
        %v598 = vrot.slane %v593, %v597
        %v599 = vlaneseq
        %v600 = vshrl.u32 %v599, 7
        %v601 = vsub.s32 1, %v600
        %v602 = vrot.slane %v593, %v601
        %v603 = vlaneseq
        %v604 = vshrl.u32 %v603, 7
        %v605 = vsub.s32 2, %v604
        %v606 = vrot.slane %v593, %v605
        %v607 = vlaneseq
        %v608 = vshrl.u32 %v607, 7
        %v609 = vsub.s32 3, %v608
        %v610 = vrot.slane %v593, %v609
        %v743 = vunpack.c.l.b16 %v465
        %v744 = vunpack.c.h.b16 %v465
        %v745 = vunpack.c.l.b16 %v466
        %v746 = vunpack.c.h.b16 %v466
        %v747 = vunpack.c.l.b16 %v467
        %v748 = vunpack.c.h.b16 %v467
        %v749 = vunpack.c.l.b16 %v468
        %v750 = vunpack.c.h.b16 %v468
        %v751 = vunpack.c.l.b16 %v469
        %v752 = vunpack.c.h.b16 %v469
        %v753 = vunpack.c.l.b16 %v470
        %v754 = vunpack.c.h.b16 %v470
        %v755 = vunpack.c.l.b16 %v471
        %v756 = vunpack.c.h.b16 %v471
        %v757 = vunpack.c.l.b16 %v472
        %v758 = vunpack.c.h.b16 %v472
        %v759 = vunpack.c.l.b16 %v473
        %v760 = vunpack.c.h.b16 %v473
        %v761 = vunpack.c.l.b16 %v474
        %v762 = vunpack.c.h.b16 %v474
        %v763 = vunpack.c.l.b16 %v475
        %v764 = vunpack.c.h.b16 %v475
        %v765 = vunpack.c.l.b16 %v476
        %v766 = vunpack.c.h.b16 %v476
        %v767 = vunpack.c.l.b16 %v477
        %v768 = vunpack.c.h.b16 %v477
        %v769 = vunpack.c.l.b16 %v478
        %v770 = vunpack.c.h.b16 %v478
        %v771 = vunpack.c.l.b16 %v479
        %v772 = vunpack.c.h.b16 %v479
        %v773 = vunpack.c.l.b16 %v480
        %v774 = vunpack.c.h.b16 %v480
        %v775 = vunpack.c.l.b16 %v481
        %v776 = vunpack.c.h.b16 %v481
        %v777 = vunpack.c.l.b16 %v482
        %v778 = vunpack.c.h.b16 %v482
        %v779 = vunpack.c.l.b16 %v483
        %v780 = vunpack.c.h.b16 %v483
        %v781 = vunpack.c.l.b16 %v484
        %v782 = vunpack.c.h.b16 %v484
        %v783 = vunpack.c.l.b16 %v485
        %v784 = vunpack.c.h.b16 %v485
        %v785 = vunpack.c.l.b16 %v486
        %v786 = vunpack.c.h.b16 %v486
        %v787 = vunpack.c.l.b16 %v487
        %v788 = vunpack.c.h.b16 %v487
        %v789 = vunpack.c.l.b16 %v488
        %v790 = vunpack.c.h.b16 %v488
        %v791 = vunpack.c.l.b16 %v489
        %v792 = vunpack.c.h.b16 %v489
        %v793 = vunpack.c.l.b16 %v490
        %v794 = vunpack.c.h.b16 %v490
        %v795 = vunpack.c.l.b16 %v491
        %v796 = vunpack.c.h.b16 %v491
        %v797 = vunpack.c.l.b16 %v492
        %v798 = vunpack.c.h.b16 %v492
        %v799 = vunpack.c.l.b16 %v493
        %v800 = vunpack.c.h.b16 %v493
        %v801 = vunpack.c.l.b16 %v494
        %v802 = vunpack.c.h.b16 %v494
        %v803 = vunpack.c.l.b16 %v495
        %v804 = vunpack.c.h.b16 %v495
        %v805 = vunpack.c.l.b16 %v496
        %v806 = vunpack.c.h.b16 %v496
        %v807 = vunpack.c.l.b16 %v497
        %v808 = vunpack.c.h.b16 %v497
        %v809 = vunpack.c.l.b16 %v498
        %v810 = vunpack.c.h.b16 %v498
        %v811 = vunpack.c.l.b16 %v499
        %v812 = vunpack.c.h.b16 %v499
        %v813 = vunpack.c.l.b16 %v500
        %v814 = vunpack.c.h.b16 %v500
        %v815 = vunpack.c.l.b16 %v501
        %v816 = vunpack.c.h.b16 %v501
        %v817 = vunpack.c.l.b16 %v502
        %v818 = vunpack.c.h.b16 %v502
        %v819 = vunpack.c.l.b16 %v503
        %v820 = vunpack.c.h.b16 %v503
        %v821 = vunpack.c.l.b16 %v504
        %v822 = vunpack.c.h.b16 %v504
        %v823 = vunpack.c.l.b16 %v505
        %v824 = vunpack.c.h.b16 %v505
        %v825 = vunpack.c.l.b16 %v506
        %v826 = vunpack.c.h.b16 %v506
        %v827 = vunpack.c.l.b16 %v507
        %v828 = vunpack.c.h.b16 %v507
        %v829 = vunpack.c.l.b16 %v508
        %v830 = vunpack.c.h.b16 %v508
        %v831 = vunpack.c.l.b16 %v509
        %v832 = vunpack.c.h.b16 %v509
        %v833 = vunpack.c.l.b16 %v510
        %v834 = vunpack.c.h.b16 %v510
        %v835 = vunpack.c.l.b16 %v511
        %v836 = vunpack.c.h.b16 %v511
        %v837 = vunpack.c.l.b16 %v512
        %v838 = vunpack.c.h.b16 %v512
        %v839 = vunpack.c.l.b16 %v513
        %v840 = vunpack.c.h.b16 %v513
        %v841 = vunpack.c.l.b16 %v514
        %v842 = vunpack.c.h.b16 %v514
        %v843 = vunpack.c.l.b16 %v515
        %v844 = vunpack.c.h.b16 %v515
        %v845 = vunpack.c.l.b16 %v516
        %v846 = vunpack.c.h.b16 %v516
        %v847 = vunpack.c.l.b16 %v517
        %v848 = vunpack.c.h.b16 %v517
        %v849 = vunpack.c.l.b16 %v518
        %v850 = vunpack.c.h.b16 %v518
        %v851 = vunpack.c.l.b16 %v519
        %v852 = vunpack.c.h.b16 %v519
        %v853 = vunpack.c.l.b16 %v520
        %v854 = vunpack.c.h.b16 %v520
        %v855 = vunpack.c.l.b16 %v521
        %v856 = vunpack.c.h.b16 %v521
        %v857 = vunpack.c.l.b16 %v522
        %v858 = vunpack.c.h.b16 %v522
        %v859 = vunpack.c.l.b16 %v523
        %v860 = vunpack.c.h.b16 %v523
        %v861 = vunpack.c.l.b16 %v524
        %v862 = vunpack.c.h.b16 %v524
        %v863 = vunpack.c.l.b16 %v525
        %v864 = vunpack.c.h.b16 %v525
        %v865 = vunpack.c.l.b16 %v526
        %v866 = vunpack.c.h.b16 %v526
        %v867 = vunpack.c.l.b16 %v527
        %v868 = vunpack.c.h.b16 %v527
        %v869 = vunpack.c.l.b16 %v528
        %v870 = vunpack.c.h.b16 %v528
        %v871 = vunpack.c.l.b16 %v529
        %v872 = vunpack.c.h.b16 %v529
        %v873 = vunpack.c.l.b16 %v530
        %v874 = vunpack.c.h.b16 %v530
        %v875 = vunpack.c.l.b16 %v531
        %v876 = vunpack.c.h.b16 %v531
        %v877 = vunpack.c.l.b16 %v532
        %v878 = vunpack.c.h.b16 %v532
        %v879 = vunpack.c.l.b16 %v533
        %v880 = vunpack.c.h.b16 %v533
        %v881 = vunpack.c.l.b16 %v534
        %v882 = vunpack.c.h.b16 %v534
        %v883 = vunpack.c.l.b16 %v535
        %v884 = vunpack.c.h.b16 %v535
        %v885 = vunpack.c.l.b16 %v536
        %v886 = vunpack.c.h.b16 %v536
        %v887 = vunpack.c.l.b16 %v537
        %v888 = vunpack.c.h.b16 %v537
        %v889 = vunpack.c.l.b16 %v538
        %v890 = vunpack.c.h.b16 %v538
        %v891 = vunpack.c.l.b16 %v539
        %v892 = vunpack.c.h.b16 %v539
        %v893 = vunpack.c.l.b16 %v540
        %v894 = vunpack.c.h.b16 %v540
        %v895 = vunpack.c.l.b16 %v541
        %v896 = vunpack.c.h.b16 %v541
        %v897 = vunpack.c.l.b16 %v542
        %v898 = vunpack.c.h.b16 %v542
        %v899 = vunpack.c.l.b16 %v543
        %v900 = vunpack.c.h.b16 %v543
        %v901 = vunpack.c.l.b16 %v544
        %v902 = vunpack.c.h.b16 %v544
        %v903 = vunpack.c.l.b16 %v545
        %v904 = vunpack.c.h.b16 %v545
        %v905 = vunpack.c.l.b16 %v546
        %v906 = vunpack.c.h.b16 %v546
        %v907 = vunpack.c.l.b16 %v547
        %v908 = vunpack.c.h.b16 %v547
        %v909 = vunpack.c.l.b16 %v548
        %v910 = vunpack.c.h.b16 %v548
        %v911 = vunpack.c.l.b16 %v549
        %v912 = vunpack.c.h.b16 %v549
        %v913 = vunpack.c.l.b16 %v550
        %v914 = vunpack.c.h.b16 %v550
        %v915 = vunpack.c.l.b16 %v551
        %v916 = vunpack.c.h.b16 %v551
        %v917 = vunpack.c.l.b16 %v552
        %v918 = vunpack.c.h.b16 %v552
        %v919 = vunpack.c.l.b16 %v553
        %v920 = vunpack.c.h.b16 %v553
        %v921 = vunpack.c.l.b16 %v554
        %v922 = vunpack.c.h.b16 %v554
        %v923 = vunpack.c.l.b16 %v555
        %v924 = vunpack.c.h.b16 %v555
        %v925 = vunpack.c.l.b16 %v556
        %v926 = vunpack.c.h.b16 %v556
        %v927 = vunpack.c.l.b16 %v557
        %v928 = vunpack.c.h.b16 %v557
        %v929 = vunpack.c.l.b16 %v558
        %v930 = vunpack.c.h.b16 %v558
        %v931 = vunpack.c.l.b16 %v559
        %v932 = vunpack.c.h.b16 %v559
        %v933 = vunpack.c.l.b16 %v560
        %v934 = vunpack.c.h.b16 %v560
        %v935 = vunpack.c.l.b16 %v561
        %v936 = vunpack.c.h.b16 %v561
        %v937 = vunpack.c.l.b16 %v562
        %v938 = vunpack.c.h.b16 %v562
        %v939 = vunpack.c.l.b16 %v563
        %v940 = vunpack.c.h.b16 %v563
        %v941 = vunpack.c.l.b16 %v564
        %v942 = vunpack.c.h.b16 %v564
        %v943 = vunpack.c.l.b16 %v565
        %v944 = vunpack.c.h.b16 %v565
        %v945 = vunpack.c.l.b16 %v566
        %v946 = vunpack.c.h.b16 %v566
        %v947 = vunpack.c.l.b16 %v567
        %v948 = vunpack.c.h.b16 %v567
        %v949 = vunpack.c.l.b16 %v568
        %v950 = vunpack.c.h.b16 %v568
        %v951 = vunpack.c.l.b16 %v569
        %v952 = vunpack.c.h.b16 %v569
        %v953 = vunpack.c.l.b16 %v570
        %v954 = vunpack.c.h.b16 %v570
        %v955 = vunpack.c.l.b16 %v571
        %v956 = vunpack.c.h.b16 %v571
        %v957 = vunpack.c.l.b16 %v572
        %v958 = vunpack.c.h.b16 %v572
        %v959 = vunpack.c.l.b16 %v573
        %v960 = vunpack.c.h.b16 %v573
        %v961 = vunpack.c.l.b16 %v574
        %v962 = vunpack.c.h.b16 %v574
        %v963 = vunpack.c.l.b16 %v575
        %v964 = vunpack.c.h.b16 %v575
        %v965 = vunpack.c.l.b16 %v576
        %v966 = vunpack.c.h.b16 %v576
        %v967 = vunpack.c.l.b16 %v577
        %v968 = vunpack.c.h.b16 %v577
        %v969 = vunpack.c.l.b16 %v578
        %v970 = vunpack.c.h.b16 %v578
        %v971 = vunpack.c.l.b16 %v579
        %v972 = vunpack.c.h.b16 %v579
        %v973 = vunpack.c.l.b16 %v580
        %v974 = vunpack.c.h.b16 %v580
        %v975 = vunpack.c.l.b16 %v581
        %v976 = vunpack.c.h.b16 %v581
        %v977 = vunpack.c.l.b16 %v582
        %v978 = vunpack.c.h.b16 %v582
        %v979 = vunpack.c.l.b16 %v583
        %v980 = vunpack.c.h.b16 %v583
        %v981 = vunpack.c.l.b16 %v584
        %v982 = vunpack.c.h.b16 %v584
        %v983 = vunpack.c.l.b16 %v585
        %v984 = vunpack.c.h.b16 %v585
        %v985 = vunpack.c.l.b16 %v586
        %v986 = vunpack.c.h.b16 %v586
        %v987 = vunpack.c.l.b16 %v587
        %v988 = vunpack.c.h.b16 %v587
        %v989 = vunpack.c.l.b16 %v588
        %v990 = vunpack.c.h.b16 %v588
        %v991 = vunpack.c.l.b16 %v589
        %v992 = vunpack.c.h.b16 %v589
        %v993 = vunpack.c.l.b16 %v590
        %v994 = vunpack.c.h.b16 %v590
        %v995 = vunpack.c.l.b16 %v591
        %v996 = vunpack.c.h.b16 %v591
        %v997 = vunpack.c.l.b16 %v592
        %v998 = vunpack.c.h.b16 %v592
        %v999 = vpack.c.b16 %v747, %v743
        %v1000 = vpack.c.b16 %v748, %v744
        %v1001 = vpack.c.b16 %v749, %v745
        %v1002 = vpack.c.b16 %v750, %v746
        %v1003 = vpack.c.b16 %v755, %v751
        %v1004 = vpack.c.b16 %v756, %v752
        %v1005 = vpack.c.b16 %v757, %v753
        %v1006 = vpack.c.b16 %v758, %v754
        %v1007 = vpack.c.b16 %v763, %v759
        %v1008 = vpack.c.b16 %v764, %v760
        %v1009 = vpack.c.b16 %v765, %v761
        %v1010 = vpack.c.b16 %v766, %v762
        %v1011 = vpack.c.b16 %v771, %v767
        %v1012 = vpack.c.b16 %v772, %v768
        %v1013 = vpack.c.b16 %v773, %v769
        %v1014 = vpack.c.b16 %v774, %v770
        %v1015 = vpack.c.b16 %v779, %v775
        %v1016 = vpack.c.b16 %v780, %v776
        %v1017 = vpack.c.b16 %v781, %v777
        %v1018 = vpack.c.b16 %v782, %v778
        %v1019 = vpack.c.b16 %v787, %v783
        %v1020 = vpack.c.b16 %v788, %v784
        %v1021 = vpack.c.b16 %v789, %v785
        %v1022 = vpack.c.b16 %v790, %v786
        %v1023 = vpack.c.b16 %v795, %v791
        %v1024 = vpack.c.b16 %v796, %v792
        %v1025 = vpack.c.b16 %v797, %v793
        %v1026 = vpack.c.b16 %v798, %v794
        %v1027 = vpack.c.b16 %v803, %v799
        %v1028 = vpack.c.b16 %v804, %v800
        %v1029 = vpack.c.b16 %v805, %v801
        %v1030 = vpack.c.b16 %v806, %v802
        %v1031 = vpack.c.b16 %v811, %v807
        %v1032 = vpack.c.b16 %v812, %v808
        %v1033 = vpack.c.b16 %v813, %v809
        %v1034 = vpack.c.b16 %v814, %v810
        %v1035 = vpack.c.b16 %v819, %v815
        %v1036 = vpack.c.b16 %v820, %v816
        %v1037 = vpack.c.b16 %v821, %v817
        %v1038 = vpack.c.b16 %v822, %v818
        %v1039 = vpack.c.b16 %v827, %v823
        %v1040 = vpack.c.b16 %v828, %v824
        %v1041 = vpack.c.b16 %v829, %v825
        %v1042 = vpack.c.b16 %v830, %v826
        %v1043 = vpack.c.b16 %v835, %v831
        %v1044 = vpack.c.b16 %v836, %v832
        %v1045 = vpack.c.b16 %v837, %v833
        %v1046 = vpack.c.b16 %v838, %v834
        %v1047 = vpack.c.b16 %v843, %v839
        %v1048 = vpack.c.b16 %v844, %v840
        %v1049 = vpack.c.b16 %v845, %v841
        %v1050 = vpack.c.b16 %v846, %v842
        %v1051 = vpack.c.b16 %v851, %v847
        %v1052 = vpack.c.b16 %v852, %v848
        %v1053 = vpack.c.b16 %v853, %v849
        %v1054 = vpack.c.b16 %v854, %v850
        %v1055 = vpack.c.b16 %v859, %v855
        %v1056 = vpack.c.b16 %v860, %v856
        %v1057 = vpack.c.b16 %v861, %v857
        %v1058 = vpack.c.b16 %v862, %v858
        %v1059 = vpack.c.b16 %v867, %v863
        %v1060 = vpack.c.b16 %v868, %v864
        %v1061 = vpack.c.b16 %v869, %v865
        %v1062 = vpack.c.b16 %v870, %v866
        %v1063 = vpack.c.b16 %v875, %v871
        %v1064 = vpack.c.b16 %v876, %v872
        %v1065 = vpack.c.b16 %v877, %v873
        %v1066 = vpack.c.b16 %v878, %v874
        %v1067 = vpack.c.b16 %v883, %v879
        %v1068 = vpack.c.b16 %v884, %v880
        %v1069 = vpack.c.b16 %v885, %v881
        %v1070 = vpack.c.b16 %v886, %v882
        %v1071 = vpack.c.b16 %v891, %v887
        %v1072 = vpack.c.b16 %v892, %v888
        %v1073 = vpack.c.b16 %v893, %v889
        %v1074 = vpack.c.b16 %v894, %v890
        %v1075 = vpack.c.b16 %v899, %v895
        %v1076 = vpack.c.b16 %v900, %v896
        %v1077 = vpack.c.b16 %v901, %v897
        %v1078 = vpack.c.b16 %v902, %v898
        %v1079 = vpack.c.b16 %v907, %v903
        %v1080 = vpack.c.b16 %v908, %v904
        %v1081 = vpack.c.b16 %v909, %v905
        %v1082 = vpack.c.b16 %v910, %v906
        %v1083 = vpack.c.b16 %v915, %v911
        %v1084 = vpack.c.b16 %v916, %v912
        %v1085 = vpack.c.b16 %v917, %v913
        %v1086 = vpack.c.b16 %v918, %v914
        %v1087 = vpack.c.b16 %v923, %v919
        %v1088 = vpack.c.b16 %v924, %v920
        %v1089 = vpack.c.b16 %v925, %v921
        %v1090 = vpack.c.b16 %v926, %v922
        %v1091 = vpack.c.b16 %v931, %v927
        %v1092 = vpack.c.b16 %v932, %v928
        %v1093 = vpack.c.b16 %v933, %v929
        %v1094 = vpack.c.b16 %v934, %v930
        %v1095 = vpack.c.b16 %v939, %v935
        %v1096 = vpack.c.b16 %v940, %v936
        %v1097 = vpack.c.b16 %v941, %v937
        %v1098 = vpack.c.b16 %v942, %v938
        %v1099 = vpack.c.b16 %v947, %v943
        %v1100 = vpack.c.b16 %v948, %v944
        %v1101 = vpack.c.b16 %v949, %v945
        %v1102 = vpack.c.b16 %v950, %v946
        %v1103 = vpack.c.b16 %v955, %v951
        %v1104 = vpack.c.b16 %v956, %v952
        %v1105 = vpack.c.b16 %v957, %v953
        %v1106 = vpack.c.b16 %v958, %v954
        %v1107 = vpack.c.b16 %v963, %v959
        %v1108 = vpack.c.b16 %v964, %v960
        %v1109 = vpack.c.b16 %v965, %v961
        %v1110 = vpack.c.b16 %v966, %v962
        %v1111 = vpack.c.b16 %v971, %v967
        %v1112 = vpack.c.b16 %v972, %v968
        %v1113 = vpack.c.b16 %v973, %v969
        %v1114 = vpack.c.b16 %v974, %v970
        %v1115 = vpack.c.b16 %v979, %v975
        %v1116 = vpack.c.b16 %v980, %v976
        %v1117 = vpack.c.b16 %v981, %v977
        %v1118 = vpack.c.b16 %v982, %v978
        %v1119 = vpack.c.b16 %v987, %v983
        %v1120 = vpack.c.b16 %v988, %v984
        %v1121 = vpack.c.b16 %v989, %v985
        %v1122 = vpack.c.b16 %v990, %v986
        %v1123 = vpack.c.b16 %v995, %v991
        %v1124 = vpack.c.b16 %v996, %v992
        %v1125 = vpack.c.b16 %v997, %v993
        %v1126 = vpack.c.b16 %v998, %v994
        %1255 = vmatprep.subr.bf16.mxu0 %v1000
        %1256 = vmatpush1.bf16.msra.mxu0 %v999
        %1257 = vmatprep.subr.bf16.mxu0 %v1004
        %1258 = vmatpush1.bf16.msra.mxu0 %v1003
        %1259 = vmatprep.subr.bf16.mxu0 %v1008
        %1260 = vmatpush1.bf16.msra.mxu0 %v1007
        %1261 = vmatprep.subr.bf16.mxu0 %v1012
        %1262 = vmatpush1.bf16.msra.mxu0 %v1011
        %1263 = vmatprep.subr.bf16.mxu0 %v1016
        %1264 = vmatpush1.bf16.msra.mxu0 %v1015
        %1265 = vmatprep.subr.bf16.mxu0 %v1020
        %1266 = vmatpush1.bf16.msra.mxu0 %v1019
        %1267 = vmatprep.subr.bf16.mxu0 %v1024
        %1268 = vmatpush1.bf16.msra.mxu0 %v1023
        %1269 = vmatprep.subr.bf16.mxu0 %v1028
        %1270 = vmatpush1.bf16.msra.mxu0 %v1027
        %1271 = vmatprep.subr.bf16.mxu0 %v1032
        %1272 = vmatpush1.bf16.msra.mxu0 %v1031
        %1273 = vmatprep.subr.bf16.mxu0 %v1036
        %1274 = vmatpush1.bf16.msra.mxu0 %v1035
        %1275 = vmatprep.subr.bf16.mxu0 %v1040
        %1276 = vmatpush1.bf16.msra.mxu0 %v1039
        %1277 = vmatprep.subr.bf16.mxu0 %v1044
        %1278 = vmatpush1.bf16.msra.mxu0 %v1043
        %1279 = vmatprep.subr.bf16.mxu0 %v1048
        %1280 = vmatpush1.bf16.msra.mxu0 %v1047
        %1281 = vmatprep.subr.bf16.mxu0 %v1052
        %1282 = vmatpush1.bf16.msra.mxu0 %v1051
        %1283 = vmatprep.subr.bf16.mxu0 %v1056
        %1284 = vmatpush1.bf16.msra.mxu0 %v1055
        %1285 = vmatprep.subr.bf16.mxu0 %v1060
        %1286 = vmatpush1.bf16.msra.mxu0 %v1059
        %1287 = vmatprep.mubr.bf16.mxu0 %v446
        %1288 = vmatmul.mubr.bf16.gmra.mrb[0].mxu0 %v445
        %v1289 = vpop.f32.mrb[0].mxu0
        %v1290 = vadd.f32 %v598, %v1289
        %v1291 = vpop.f32.mrb[0].mxu0
        %v1292 = vadd.f32 %v602, %v1291
        %v1293 = vpop.f32.mrb[0].mxu0
        %v1294 = vpop.f32.mrb[0].mxu0
        %1295 = vdwg.mxu0
        %1296 = vmatprep.subr.bf16.mxu0 %v1064
        %1297 = vmatpush1.bf16.msra.mxu0 %v1063
        %1298 = vmatprep.subr.bf16.mxu0 %v1068
        %1299 = vmatpush1.bf16.msra.mxu0 %v1067
        %1300 = vmatprep.subr.bf16.mxu0 %v1072
        %1301 = vmatpush1.bf16.msra.mxu0 %v1071
        %1302 = vmatprep.subr.bf16.mxu0 %v1076
        %1303 = vmatpush1.bf16.msra.mxu0 %v1075
        %1304 = vmatprep.subr.bf16.mxu0 %v1080
        %1305 = vmatpush1.bf16.msra.mxu0 %v1079
        %1306 = vmatprep.subr.bf16.mxu0 %v1084
        %1307 = vmatpush1.bf16.msra.mxu0 %v1083
        %1308 = vmatprep.subr.bf16.mxu0 %v1088
        %1309 = vmatpush1.bf16.msra.mxu0 %v1087
        %1310 = vmatprep.subr.bf16.mxu0 %v1092
        %1311 = vmatpush1.bf16.msra.mxu0 %v1091
        %1312 = vmatprep.subr.bf16.mxu0 %v1096
        %1313 = vmatpush1.bf16.msra.mxu0 %v1095
        %1314 = vmatprep.subr.bf16.mxu0 %v1100
        %1315 = vmatpush1.bf16.msra.mxu0 %v1099
        %1316 = vmatprep.subr.bf16.mxu0 %v1104
        %1317 = vmatpush1.bf16.msra.mxu0 %v1103
        %1318 = vmatprep.subr.bf16.mxu0 %v1108
        %1319 = vmatpush1.bf16.msra.mxu0 %v1107
        %1320 = vmatprep.subr.bf16.mxu0 %v1112
        %1321 = vmatpush1.bf16.msra.mxu0 %v1111
        %1322 = vmatprep.subr.bf16.mxu0 %v1116
        %1323 = vmatpush1.bf16.msra.mxu0 %v1115
        %1324 = vmatprep.subr.bf16.mxu0 %v1120
        %1325 = vmatpush1.bf16.msra.mxu0 %v1119
        %1326 = vmatprep.subr.bf16.mxu0 %v1124
        %1327 = vmatpush1.bf16.msra.mxu0 %v1123
        %1328 = vmatprep.mubr.bf16.mxu0 %v448
        %1329 = vmatmul.mubr.bf16.gmra.mrb[0].mxu0 %v447
        %v1330 = vpop.f32.mrb[0].mxu0
        %v1331 = vadd.f32 %v1290, %v1330
        %v1332 = vpop.f32.mrb[0].mxu0
        %v1333 = vadd.f32 %v1292, %v1332
        %v1334 = vpop.f32.mrb[0].mxu0
        %v1335 = vpop.f32.mrb[0].mxu0
        %1336 = vdwg.mxu0
        %1337 = vmatprep.subr.bf16.mxu0 %v1002
        %1338 = vmatpush1.bf16.msra.mxu0 %v1001
        %1339 = vmatprep.subr.bf16.mxu0 %v1006
        %1340 = vmatpush1.bf16.msra.mxu0 %v1005
        %1341 = vmatprep.subr.bf16.mxu0 %v1010
        %1342 = vmatpush1.bf16.msra.mxu0 %v1009
        %1343 = vmatprep.subr.bf16.mxu0 %v1014
        %1344 = vmatpush1.bf16.msra.mxu0 %v1013
        %1345 = vmatprep.subr.bf16.mxu0 %v1018
        %1346 = vmatpush1.bf16.msra.mxu0 %v1017
        %1347 = vmatprep.subr.bf16.mxu0 %v1022
        %1348 = vmatpush1.bf16.msra.mxu0 %v1021
        %1349 = vmatprep.subr.bf16.mxu0 %v1026
        %1350 = vmatpush1.bf16.msra.mxu0 %v1025
        %1351 = vmatprep.subr.bf16.mxu0 %v1030
        %1352 = vmatpush1.bf16.msra.mxu0 %v1029
        %1353 = vmatprep.subr.bf16.mxu0 %v1034
        %1354 = vmatpush1.bf16.msra.mxu0 %v1033
        %1355 = vmatprep.subr.bf16.mxu0 %v1038
        %1356 = vmatpush1.bf16.msra.mxu0 %v1037
        %1357 = vmatprep.subr.bf16.mxu0 %v1042
        %1358 = vmatpush1.bf16.msra.mxu0 %v1041
        %1359 = vmatprep.subr.bf16.mxu0 %v1046
        %1360 = vmatpush1.bf16.msra.mxu0 %v1045
        %1361 = vmatprep.subr.bf16.mxu0 %v1050
        %1362 = vmatpush1.bf16.msra.mxu0 %v1049
        %1363 = vmatprep.subr.bf16.mxu0 %v1054
        %1364 = vmatpush1.bf16.msra.mxu0 %v1053
        %1365 = vmatprep.subr.bf16.mxu0 %v1058
        %1366 = vmatpush1.bf16.msra.mxu0 %v1057
        %1367 = vmatprep.subr.bf16.mxu0 %v1062
        %1368 = vmatpush1.bf16.msra.mxu0 %v1061
        %1369 = vmatprep.mubr.bf16.mxu0 %v446
        %1370 = vmatmul.mubr.bf16.gmra.mrb[0].mxu0 %v445
        %v1371 = vpop.f32.mrb[0].mxu0
        %v1372 = vadd.f32 %v606, %v1371
        %v1373 = vpop.f32.mrb[0].mxu0
        %v1374 = vadd.f32 %v610, %v1373
        %v1375 = vpop.f32.mrb[0].mxu0
        %v1376 = vpop.f32.mrb[0].mxu0
        %1377 = vdwg.mxu0
        %1378 = vmatprep.subr.bf16.mxu0 %v1066
        %1379 = vmatpush1.bf16.msra.mxu0 %v1065
        %1380 = vmatprep.subr.bf16.mxu0 %v1070
        %1381 = vmatpush1.bf16.msra.mxu0 %v1069
        %1382 = vmatprep.subr.bf16.mxu0 %v1074
        %1383 = vmatpush1.bf16.msra.mxu0 %v1073
        %1384 = vmatprep.subr.bf16.mxu0 %v1078
        %1385 = vmatpush1.bf16.msra.mxu0 %v1077
        %1386 = vmatprep.subr.bf16.mxu0 %v1082
        %1387 = vmatpush1.bf16.msra.mxu0 %v1081
        %1388 = vmatprep.subr.bf16.mxu0 %v1086
        %1389 = vmatpush1.bf16.msra.mxu0 %v1085
        %1390 = vmatprep.subr.bf16.mxu0 %v1090
        %1391 = vmatpush1.bf16.msra.mxu0 %v1089
        %1392 = vmatprep.subr.bf16.mxu0 %v1094
        %1393 = vmatpush1.bf16.msra.mxu0 %v1093
        %1394 = vmatprep.subr.bf16.mxu0 %v1098
        %1395 = vmatpush1.bf16.msra.mxu0 %v1097
        %1396 = vmatprep.subr.bf16.mxu0 %v1102
        %1397 = vmatpush1.bf16.msra.mxu0 %v1101
        %1398 = vmatprep.subr.bf16.mxu0 %v1106
        %1399 = vmatpush1.bf16.msra.mxu0 %v1105
        %1400 = vmatprep.subr.bf16.mxu0 %v1110
        %1401 = vmatpush1.bf16.msra.mxu0 %v1109
        %1402 = vmatprep.subr.bf16.mxu0 %v1114
        %1403 = vmatpush1.bf16.msra.mxu0 %v1113
        %1404 = vmatprep.subr.bf16.mxu0 %v1118
        %1405 = vmatpush1.bf16.msra.mxu0 %v1117
        %1406 = vmatprep.subr.bf16.mxu0 %v1122
        %1407 = vmatpush1.bf16.msra.mxu0 %v1121
        %1408 = vmatprep.subr.bf16.mxu0 %v1126
        %1409 = vmatpush1.bf16.msra.mxu0 %v1125
        %1410 = vmatprep.mubr.bf16.mxu0 %v448
        %1411 = vmatmul.mubr.bf16.gmra.mrb[0].mxu0 %v447
        %v1412 = vpop.f32.mrb[0].mxu0
        %v1413 = vadd.f32 %v1372, %v1412
        %v1414 = vpop.f32.mrb[0].mxu0
        %v1415 = vadd.f32 %v1374, %v1414
        %v1416 = vpop.f32.mrb[0].mxu0
        %v1417 = vpop.f32.mrb[0].mxu0
        %1418 = vdwg.mxu0
        %v1419 = vld [vmem:[#allocation9 + $0x10] sm:$0xff]
        %v1420 = vld [vmem:[#allocation9 + $0x18] sm:$0xff]
        %v1421 = vld [vmem:[#allocation9 + $0x40] sm:$0xff]
        %v1422 = vld [vmem:[#allocation9 + $0x48] sm:$0xff]
        %v1423 = vld [vmem:[#allocation9 + $0x70] sm:$0xff]
        %v1424 = vld [vmem:[#allocation9 + $0x78] sm:$0xff]
        %v1425 = vld [vmem:[#allocation9 + $0xa0] sm:$0xff]
        %v1426 = vld [vmem:[#allocation9 + $0xa8] sm:$0xff]
        %v1427 = vld [vmem:[#allocation9 + $0xd0] sm:$0xff]
        %v1428 = vld [vmem:[#allocation9 + $0xd8] sm:$0xff]
        %v1429 = vld [vmem:[#allocation9 + $0x100] sm:$0xff]
        %v1430 = vld [vmem:[#allocation9 + $0x108] sm:$0xff]
        %v1431 = vld [vmem:[#allocation9 + $0x130] sm:$0xff]
        %v1432 = vld [vmem:[#allocation9 + $0x138] sm:$0xff]
        %v1433 = vld [vmem:[#allocation9 + $0x160] sm:$0xff]
        %v1434 = vld [vmem:[#allocation9 + $0x168] sm:$0xff]
        %v1435 = vld [vmem:[#allocation9 + $0x190] sm:$0xff]
        %v1436 = vld [vmem:[#allocation9 + $0x198] sm:$0xff]
        %v1437 = vld [vmem:[#allocation9 + $0x1c0] sm:$0xff]
        %v1438 = vld [vmem:[#allocation9 + $0x1c8] sm:$0xff]
        %v1439 = vld [vmem:[#allocation9 + $0x1f0] sm:$0xff]
        %v1440 = vld [vmem:[#allocation9 + $0x1f8] sm:$0xff]
        %v1441 = vld [vmem:[#allocation9 + $0x220] sm:$0xff]
        %v1442 = vld [vmem:[#allocation9 + $0x228] sm:$0xff]
        %v1443 = vld [vmem:[#allocation9 + $0x250] sm:$0xff]
        %v1444 = vld [vmem:[#allocation9 + $0x258] sm:$0xff]
        %v1445 = vld [vmem:[#allocation9 + $0x280] sm:$0xff]
        %v1446 = vld [vmem:[#allocation9 + $0x288] sm:$0xff]
        %v1447 = vld [vmem:[#allocation9 + $0x2b0] sm:$0xff]
        %v1448 = vld [vmem:[#allocation9 + $0x2b8] sm:$0xff]
        %v1449 = vld [vmem:[#allocation9 + $0x2e0] sm:$0xff]
        %v1450 = vld [vmem:[#allocation9 + $0x2e8] sm:$0xff]
        %v1451 = vld [vmem:[#allocation9 + $0x310] sm:$0xff]
        %v1452 = vld [vmem:[#allocation9 + $0x318] sm:$0xff]
        %v1453 = vld [vmem:[#allocation9 + $0x340] sm:$0xff]
        %v1454 = vld [vmem:[#allocation9 + $0x348] sm:$0xff]
        %v1455 = vld [vmem:[#allocation9 + $0x370] sm:$0xff]
        %v1456 = vld [vmem:[#allocation9 + $0x378] sm:$0xff]
        %v1457 = vld [vmem:[#allocation9 + $0x3a0] sm:$0xff]
        %v1458 = vld [vmem:[#allocation9 + $0x3a8] sm:$0xff]
        %v1459 = vld [vmem:[#allocation9 + $0x3d0] sm:$0xff]
        %v1460 = vld [vmem:[#allocation9 + $0x3d8] sm:$0xff]
        %v1461 = vld [vmem:[#allocation9 + $0x400] sm:$0xff]
        %v1462 = vld [vmem:[#allocation9 + $0x408] sm:$0xff]
        %v1463 = vld [vmem:[#allocation9 + $0x430] sm:$0xff]
        %v1464 = vld [vmem:[#allocation9 + $0x438] sm:$0xff]
        %v1465 = vld [vmem:[#allocation9 + $0x460] sm:$0xff]
        %v1466 = vld [vmem:[#allocation9 + $0x468] sm:$0xff]
        %v1467 = vld [vmem:[#allocation9 + $0x490] sm:$0xff]
        %v1468 = vld [vmem:[#allocation9 + $0x498] sm:$0xff]
        %v1469 = vld [vmem:[#allocation9 + $0x4c0] sm:$0xff]
        %v1470 = vld [vmem:[#allocation9 + $0x4c8] sm:$0xff]
        %v1471 = vld [vmem:[#allocation9 + $0x4f0] sm:$0xff]
        %v1472 = vld [vmem:[#allocation9 + $0x4f8] sm:$0xff]
        %v1473 = vld [vmem:[#allocation9 + $0x520] sm:$0xff]
        %v1474 = vld [vmem:[#allocation9 + $0x528] sm:$0xff]
        %v1475 = vld [vmem:[#allocation9 + $0x550] sm:$0xff]
        %v1476 = vld [vmem:[#allocation9 + $0x558] sm:$0xff]
        %v1477 = vld [vmem:[#allocation9 + $0x580] sm:$0xff]
        %v1478 = vld [vmem:[#allocation9 + $0x588] sm:$0xff]
        %v1479 = vld [vmem:[#allocation9 + $0x5b0] sm:$0xff]
        %v1480 = vld [vmem:[#allocation9 + $0x5b8] sm:$0xff]
        %v1481 = vld [vmem:[#allocation9 + $0x5e0] sm:$0xff]
        %v1482 = vld [vmem:[#allocation9 + $0x5e8] sm:$0xff]
        %v1483 = vld [vmem:[#allocation9 + $0x610] sm:$0xff]
        %v1484 = vld [vmem:[#allocation9 + $0x618] sm:$0xff]
        %v1485 = vld [vmem:[#allocation9 + $0x640] sm:$0xff]
        %v1486 = vld [vmem:[#allocation9 + $0x648] sm:$0xff]
        %v1487 = vld [vmem:[#allocation9 + $0x670] sm:$0xff]
        %v1488 = vld [vmem:[#allocation9 + $0x678] sm:$0xff]
        %v1489 = vld [vmem:[#allocation9 + $0x6a0] sm:$0xff]
        %v1490 = vld [vmem:[#allocation9 + $0x6a8] sm:$0xff]
        %v1491 = vld [vmem:[#allocation9 + $0x6d0] sm:$0xff]
        %v1492 = vld [vmem:[#allocation9 + $0x6d8] sm:$0xff]
        %v1493 = vld [vmem:[#allocation9 + $0x700] sm:$0xff]
        %v1494 = vld [vmem:[#allocation9 + $0x708] sm:$0xff]
        %v1495 = vld [vmem:[#allocation9 + $0x730] sm:$0xff]
        %v1496 = vld [vmem:[#allocation9 + $0x738] sm:$0xff]
        %v1497 = vld [vmem:[#allocation9 + $0x760] sm:$0xff]
        %v1498 = vld [vmem:[#allocation9 + $0x768] sm:$0xff]
        %v1499 = vld [vmem:[#allocation9 + $0x790] sm:$0xff]
        %v1500 = vld [vmem:[#allocation9 + $0x798] sm:$0xff]
        %v1501 = vld [vmem:[#allocation9 + $0x7c0] sm:$0xff]
        %v1502 = vld [vmem:[#allocation9 + $0x7c8] sm:$0xff]
        %v1503 = vld [vmem:[#allocation9 + $0x7f0] sm:$0xff]
        %v1504 = vld [vmem:[#allocation9 + $0x7f8] sm:$0xff]
        %v1505 = vld [vmem:[#allocation9 + $0x820] sm:$0xff]
        %v1506 = vld [vmem:[#allocation9 + $0x828] sm:$0xff]
        %v1507 = vld [vmem:[#allocation9 + $0x850] sm:$0xff]
        %v1508 = vld [vmem:[#allocation9 + $0x858] sm:$0xff]
        %v1509 = vld [vmem:[#allocation9 + $0x880] sm:$0xff]
        %v1510 = vld [vmem:[#allocation9 + $0x888] sm:$0xff]
        %v1511 = vld [vmem:[#allocation9 + $0x8b0] sm:$0xff]
        %v1512 = vld [vmem:[#allocation9 + $0x8b8] sm:$0xff]
        %v1513 = vld [vmem:[#allocation9 + $0x8e0] sm:$0xff]
        %v1514 = vld [vmem:[#allocation9 + $0x8e8] sm:$0xff]
        %v1515 = vld [vmem:[#allocation9 + $0x910] sm:$0xff]
        %v1516 = vld [vmem:[#allocation9 + $0x918] sm:$0xff]
        %v1517 = vld [vmem:[#allocation9 + $0x940] sm:$0xff]
        %v1518 = vld [vmem:[#allocation9 + $0x948] sm:$0xff]
        %v1519 = vld [vmem:[#allocation9 + $0x970] sm:$0xff]
        %v1520 = vld [vmem:[#allocation9 + $0x978] sm:$0xff]
        %v1521 = vld [vmem:[#allocation9 + $0x9a0] sm:$0xff]
        %v1522 = vld [vmem:[#allocation9 + $0x9a8] sm:$0xff]
        %v1523 = vld [vmem:[#allocation9 + $0x9d0] sm:$0xff]
        %v1524 = vld [vmem:[#allocation9 + $0x9d8] sm:$0xff]
        %v1525 = vld [vmem:[#allocation9 + $0xa00] sm:$0xff]
        %v1526 = vld [vmem:[#allocation9 + $0xa08] sm:$0xff]
        %v1527 = vld [vmem:[#allocation9 + $0xa30] sm:$0xff]
        %v1528 = vld [vmem:[#allocation9 + $0xa38] sm:$0xff]
        %v1529 = vld [vmem:[#allocation9 + $0xa60] sm:$0xff]
        %v1530 = vld [vmem:[#allocation9 + $0xa68] sm:$0xff]
        %v1531 = vld [vmem:[#allocation9 + $0xa90] sm:$0xff]
        %v1532 = vld [vmem:[#allocation9 + $0xa98] sm:$0xff]
        %v1533 = vld [vmem:[#allocation9 + $0xac0] sm:$0xff]
        %v1534 = vld [vmem:[#allocation9 + $0xac8] sm:$0xff]
        %v1535 = vld [vmem:[#allocation9 + $0xaf0] sm:$0xff]
        %v1536 = vld [vmem:[#allocation9 + $0xaf8] sm:$0xff]
        %v1537 = vld [vmem:[#allocation9 + $0xb20] sm:$0xff]
        %v1538 = vld [vmem:[#allocation9 + $0xb28] sm:$0xff]
        %v1539 = vld [vmem:[#allocation9 + $0xb50] sm:$0xff]
        %v1540 = vld [vmem:[#allocation9 + $0xb58] sm:$0xff]
        %v1541 = vld [vmem:[#allocation9 + $0xb80] sm:$0xff]
        %v1542 = vld [vmem:[#allocation9 + $0xb88] sm:$0xff]
        %v1543 = vld [vmem:[#allocation9 + $0xbb0] sm:$0xff]
        %v1544 = vld [vmem:[#allocation9 + $0xbb8] sm:$0xff]
        %v1545 = vld [vmem:[#allocation9 + $0xbe0] sm:$0xff]
        %v1546 = vld [vmem:[#allocation9 + $0xbe8] sm:$0xff]
        %v1547 = vld [vmem:[#allocation11 + $0x4] sm:$0xf]
        %v1549 = vlaneseq
        %v1550 = vshrl.u32 %v1549, 7
        %v1551 = vsub.s32 0, %v1550
        %v1552 = vrot.slane %v1547, %v1551
        %v1553 = vlaneseq
        %v1554 = vshrl.u32 %v1553, 7
        %v1555 = vsub.s32 1, %v1554
        %v1556 = vrot.slane %v1547, %v1555
        %v1557 = vlaneseq
        %v1558 = vshrl.u32 %v1557, 7
        %v1559 = vsub.s32 2, %v1558
        %v1560 = vrot.slane %v1547, %v1559
        %v1561 = vlaneseq
        %v1562 = vshrl.u32 %v1561, 7
        %v1563 = vsub.s32 3, %v1562
        %v1564 = vrot.slane %v1547, %v1563
        %v1697 = vunpack.c.l.b16 %v1419
        %v1698 = vunpack.c.h.b16 %v1419
        %v1699 = vunpack.c.l.b16 %v1420
        %v1700 = vunpack.c.h.b16 %v1420
        %v1701 = vunpack.c.l.b16 %v1421
        %v1702 = vunpack.c.h.b16 %v1421
        %v1703 = vunpack.c.l.b16 %v1422
        %v1704 = vunpack.c.h.b16 %v1422
        %v1705 = vunpack.c.l.b16 %v1423
        %v1706 = vunpack.c.h.b16 %v1423
        %v1707 = vunpack.c.l.b16 %v1424
        %v1708 = vunpack.c.h.b16 %v1424
        %v1709 = vunpack.c.l.b16 %v1425
        %v1710 = vunpack.c.h.b16 %v1425
        %v1711 = vunpack.c.l.b16 %v1426
        %v1712 = vunpack.c.h.b16 %v1426
        %v1713 = vunpack.c.l.b16 %v1427
        %v1714 = vunpack.c.h.b16 %v1427
        %v1715 = vunpack.c.l.b16 %v1428
        %v1716 = vunpack.c.h.b16 %v1428
        %v1717 = vunpack.c.l.b16 %v1429
        %v1718 = vunpack.c.h.b16 %v1429
        %v1719 = vunpack.c.l.b16 %v1430
        %v1720 = vunpack.c.h.b16 %v1430
        %v1721 = vunpack.c.l.b16 %v1431
        %v1722 = vunpack.c.h.b16 %v1431
        %v1723 = vunpack.c.l.b16 %v1432
        %v1724 = vunpack.c.h.b16 %v1432
        %v1725 = vunpack.c.l.b16 %v1433
        %v1726 = vunpack.c.h.b16 %v1433
        %v1727 = vunpack.c.l.b16 %v1434
        %v1728 = vunpack.c.h.b16 %v1434
        %v1729 = vunpack.c.l.b16 %v1435
        %v1730 = vunpack.c.h.b16 %v1435
        %v1731 = vunpack.c.l.b16 %v1436
        %v1732 = vunpack.c.h.b16 %v1436
        %v1733 = vunpack.c.l.b16 %v1437
        %v1734 = vunpack.c.h.b16 %v1437
        %v1735 = vunpack.c.l.b16 %v1438
        %v1736 = vunpack.c.h.b16 %v1438
        %v1737 = vunpack.c.l.b16 %v1439
        %v1738 = vunpack.c.h.b16 %v1439
        %v1739 = vunpack.c.l.b16 %v1440
        %v1740 = vunpack.c.h.b16 %v1440
        %v1741 = vunpack.c.l.b16 %v1441
        %v1742 = vunpack.c.h.b16 %v1441
        %v1743 = vunpack.c.l.b16 %v1442
        %v1744 = vunpack.c.h.b16 %v1442
        %v1745 = vunpack.c.l.b16 %v1443
        %v1746 = vunpack.c.h.b16 %v1443
        %v1747 = vunpack.c.l.b16 %v1444
        %v1748 = vunpack.c.h.b16 %v1444
        %v1749 = vunpack.c.l.b16 %v1445
        %v1750 = vunpack.c.h.b16 %v1445
        %v1751 = vunpack.c.l.b16 %v1446
        %v1752 = vunpack.c.h.b16 %v1446
        %v1753 = vunpack.c.l.b16 %v1447
        %v1754 = vunpack.c.h.b16 %v1447
        %v1755 = vunpack.c.l.b16 %v1448
        %v1756 = vunpack.c.h.b16 %v1448
        %v1757 = vunpack.c.l.b16 %v1449
        %v1758 = vunpack.c.h.b16 %v1449
        %v1759 = vunpack.c.l.b16 %v1450
        %v1760 = vunpack.c.h.b16 %v1450
        %v1761 = vunpack.c.l.b16 %v1451
        %v1762 = vunpack.c.h.b16 %v1451
        %v1763 = vunpack.c.l.b16 %v1452
        %v1764 = vunpack.c.h.b16 %v1452
        %v1765 = vunpack.c.l.b16 %v1453
        %v1766 = vunpack.c.h.b16 %v1453
        %v1767 = vunpack.c.l.b16 %v1454
        %v1768 = vunpack.c.h.b16 %v1454
        %v1769 = vunpack.c.l.b16 %v1455
        %v1770 = vunpack.c.h.b16 %v1455
        %v1771 = vunpack.c.l.b16 %v1456
        %v1772 = vunpack.c.h.b16 %v1456
        %v1773 = vunpack.c.l.b16 %v1457
        %v1774 = vunpack.c.h.b16 %v1457
        %v1775 = vunpack.c.l.b16 %v1458
        %v1776 = vunpack.c.h.b16 %v1458
        %v1777 = vunpack.c.l.b16 %v1459
        %v1778 = vunpack.c.h.b16 %v1459
        %v1779 = vunpack.c.l.b16 %v1460
        %v1780 = vunpack.c.h.b16 %v1460
        %v1781 = vunpack.c.l.b16 %v1461
        %v1782 = vunpack.c.h.b16 %v1461
        %v1783 = vunpack.c.l.b16 %v1462
        %v1784 = vunpack.c.h.b16 %v1462
        %v1785 = vunpack.c.l.b16 %v1463
        %v1786 = vunpack.c.h.b16 %v1463
        %v1787 = vunpack.c.l.b16 %v1464
        %v1788 = vunpack.c.h.b16 %v1464
        %v1789 = vunpack.c.l.b16 %v1465
        %v1790 = vunpack.c.h.b16 %v1465
        %v1791 = vunpack.c.l.b16 %v1466
        %v1792 = vunpack.c.h.b16 %v1466
        %v1793 = vunpack.c.l.b16 %v1467
        %v1794 = vunpack.c.h.b16 %v1467
        %v1795 = vunpack.c.l.b16 %v1468
        %v1796 = vunpack.c.h.b16 %v1468
        %v1797 = vunpack.c.l.b16 %v1469
        %v1798 = vunpack.c.h.b16 %v1469
        %v1799 = vunpack.c.l.b16 %v1470
        %v1800 = vunpack.c.h.b16 %v1470
        %v1801 = vunpack.c.l.b16 %v1471
        %v1802 = vunpack.c.h.b16 %v1471
        %v1803 = vunpack.c.l.b16 %v1472
        %v1804 = vunpack.c.h.b16 %v1472
        %v1805 = vunpack.c.l.b16 %v1473
        %v1806 = vunpack.c.h.b16 %v1473
        %v1807 = vunpack.c.l.b16 %v1474
        %v1808 = vunpack.c.h.b16 %v1474
        %v1809 = vunpack.c.l.b16 %v1475
        %v1810 = vunpack.c.h.b16 %v1475
        %v1811 = vunpack.c.l.b16 %v1476
        %v1812 = vunpack.c.h.b16 %v1476
        %v1813 = vunpack.c.l.b16 %v1477
        %v1814 = vunpack.c.h.b16 %v1477
        %v1815 = vunpack.c.l.b16 %v1478
        %v1816 = vunpack.c.h.b16 %v1478
        %v1817 = vunpack.c.l.b16 %v1479
        %v1818 = vunpack.c.h.b16 %v1479
        %v1819 = vunpack.c.l.b16 %v1480
        %v1820 = vunpack.c.h.b16 %v1480
        %v1821 = vunpack.c.l.b16 %v1481
        %v1822 = vunpack.c.h.b16 %v1481
        %v1823 = vunpack.c.l.b16 %v1482
        %v1824 = vunpack.c.h.b16 %v1482
        %v1825 = vunpack.c.l.b16 %v1483
        %v1826 = vunpack.c.h.b16 %v1483
        %v1827 = vunpack.c.l.b16 %v1484
        %v1828 = vunpack.c.h.b16 %v1484
        %v1829 = vunpack.c.l.b16 %v1485
        %v1830 = vunpack.c.h.b16 %v1485
        %v1831 = vunpack.c.l.b16 %v1486
        %v1832 = vunpack.c.h.b16 %v1486
        %v1833 = vunpack.c.l.b16 %v1487
        %v1834 = vunpack.c.h.b16 %v1487
        %v1835 = vunpack.c.l.b16 %v1488
        %v1836 = vunpack.c.h.b16 %v1488
        %v1837 = vunpack.c.l.b16 %v1489
        %v1838 = vunpack.c.h.b16 %v1489
        %v1839 = vunpack.c.l.b16 %v1490
        %v1840 = vunpack.c.h.b16 %v1490
        %v1841 = vunpack.c.l.b16 %v1491
        %v1842 = vunpack.c.h.b16 %v1491
        %v1843 = vunpack.c.l.b16 %v1492
        %v1844 = vunpack.c.h.b16 %v1492
        %v1845 = vunpack.c.l.b16 %v1493
        %v1846 = vunpack.c.h.b16 %v1493
        %v1847 = vunpack.c.l.b16 %v1494
        %v1848 = vunpack.c.h.b16 %v1494
        %v1849 = vunpack.c.l.b16 %v1495
        %v1850 = vunpack.c.h.b16 %v1495
        %v1851 = vunpack.c.l.b16 %v1496
        %v1852 = vunpack.c.h.b16 %v1496
        %v1853 = vunpack.c.l.b16 %v1497
        %v1854 = vunpack.c.h.b16 %v1497
        %v1855 = vunpack.c.l.b16 %v1498
        %v1856 = vunpack.c.h.b16 %v1498
        %v1857 = vunpack.c.l.b16 %v1499
        %v1858 = vunpack.c.h.b16 %v1499
        %v1859 = vunpack.c.l.b16 %v1500
        %v1860 = vunpack.c.h.b16 %v1500
        %v1861 = vunpack.c.l.b16 %v1501
        %v1862 = vunpack.c.h.b16 %v1501
        %v1863 = vunpack.c.l.b16 %v1502
        %v1864 = vunpack.c.h.b16 %v1502
        %v1865 = vunpack.c.l.b16 %v1503
        %v1866 = vunpack.c.h.b16 %v1503
        %v1867 = vunpack.c.l.b16 %v1504
        %v1868 = vunpack.c.h.b16 %v1504
        %v1869 = vunpack.c.l.b16 %v1505
        %v1870 = vunpack.c.h.b16 %v1505
        %v1871 = vunpack.c.l.b16 %v1506
        %v1872 = vunpack.c.h.b16 %v1506
        %v1873 = vunpack.c.l.b16 %v1507
        %v1874 = vunpack.c.h.b16 %v1507
        %v1875 = vunpack.c.l.b16 %v1508
        %v1876 = vunpack.c.h.b16 %v1508
        %v1877 = vunpack.c.l.b16 %v1509
        %v1878 = vunpack.c.h.b16 %v1509
        %v1879 = vunpack.c.l.b16 %v1510
        %v1880 = vunpack.c.h.b16 %v1510
        %v1881 = vunpack.c.l.b16 %v1511
        %v1882 = vunpack.c.h.b16 %v1511
        %v1883 = vunpack.c.l.b16 %v1512
        %v1884 = vunpack.c.h.b16 %v1512
        %v1885 = vunpack.c.l.b16 %v1513
        %v1886 = vunpack.c.h.b16 %v1513
        %v1887 = vunpack.c.l.b16 %v1514
        %v1888 = vunpack.c.h.b16 %v1514
        %v1889 = vunpack.c.l.b16 %v1515
        %v1890 = vunpack.c.h.b16 %v1515
        %v1891 = vunpack.c.l.b16 %v1516
        %v1892 = vunpack.c.h.b16 %v1516
        %v1893 = vunpack.c.l.b16 %v1517
        %v1894 = vunpack.c.h.b16 %v1517
        %v1895 = vunpack.c.l.b16 %v1518
        %v1896 = vunpack.c.h.b16 %v1518
        %v1897 = vunpack.c.l.b16 %v1519
        %v1898 = vunpack.c.h.b16 %v1519
        %v1899 = vunpack.c.l.b16 %v1520
        %v1900 = vunpack.c.h.b16 %v1520
        %v1901 = vunpack.c.l.b16 %v1521
        %v1902 = vunpack.c.h.b16 %v1521
        %v1903 = vunpack.c.l.b16 %v1522
        %v1904 = vunpack.c.h.b16 %v1522
        %v1905 = vunpack.c.l.b16 %v1523
        %v1906 = vunpack.c.h.b16 %v1523
        %v1907 = vunpack.c.l.b16 %v1524
        %v1908 = vunpack.c.h.b16 %v1524
        %v1909 = vunpack.c.l.b16 %v1525
        %v1910 = vunpack.c.h.b16 %v1525
        %v1911 = vunpack.c.l.b16 %v1526
        %v1912 = vunpack.c.h.b16 %v1526
        %v1913 = vunpack.c.l.b16 %v1527
        %v1914 = vunpack.c.h.b16 %v1527
        %v1915 = vunpack.c.l.b16 %v1528
        %v1916 = vunpack.c.h.b16 %v1528
        %v1917 = vunpack.c.l.b16 %v1529
        %v1918 = vunpack.c.h.b16 %v1529
        %v1919 = vunpack.c.l.b16 %v1530
        %v1920 = vunpack.c.h.b16 %v1530
        %v1921 = vunpack.c.l.b16 %v1531
        %v1922 = vunpack.c.h.b16 %v1531
        %v1923 = vunpack.c.l.b16 %v1532
        %v1924 = vunpack.c.h.b16 %v1532
        %v1925 = vunpack.c.l.b16 %v1533
        %v1926 = vunpack.c.h.b16 %v1533
        %v1927 = vunpack.c.l.b16 %v1534
        %v1928 = vunpack.c.h.b16 %v1534
        %v1929 = vunpack.c.l.b16 %v1535
        %v1930 = vunpack.c.h.b16 %v1535
        %v1931 = vunpack.c.l.b16 %v1536
        %v1932 = vunpack.c.h.b16 %v1536
        %v1933 = vunpack.c.l.b16 %v1537
        %v1934 = vunpack.c.h.b16 %v1537
        %v1935 = vunpack.c.l.b16 %v1538
        %v1936 = vunpack.c.h.b16 %v1538
        %v1937 = vunpack.c.l.b16 %v1539
        %v1938 = vunpack.c.h.b16 %v1539
        %v1939 = vunpack.c.l.b16 %v1540
        %v1940 = vunpack.c.h.b16 %v1540
        %v1941 = vunpack.c.l.b16 %v1541
        %v1942 = vunpack.c.h.b16 %v1541
        %v1943 = vunpack.c.l.b16 %v1542
        %v1944 = vunpack.c.h.b16 %v1542
        %v1945 = vunpack.c.l.b16 %v1543
        %v1946 = vunpack.c.h.b16 %v1543
        %v1947 = vunpack.c.l.b16 %v1544
        %v1948 = vunpack.c.h.b16 %v1544
        %v1949 = vunpack.c.l.b16 %v1545
        %v1950 = vunpack.c.h.b16 %v1545
        %v1951 = vunpack.c.l.b16 %v1546
        %v1952 = vunpack.c.h.b16 %v1546
        %v1953 = vpack.c.b16 %v1701, %v1697
        %v1954 = vpack.c.b16 %v1702, %v1698
        %v1955 = vpack.c.b16 %v1703, %v1699
        %v1956 = vpack.c.b16 %v1704, %v1700
        %v1957 = vpack.c.b16 %v1709, %v1705
        %v1958 = vpack.c.b16 %v1710, %v1706
        %v1959 = vpack.c.b16 %v1711, %v1707
        %v1960 = vpack.c.b16 %v1712, %v1708
        %v1961 = vpack.c.b16 %v1717, %v1713
        %v1962 = vpack.c.b16 %v1718, %v1714
        %v1963 = vpack.c.b16 %v1719, %v1715
        %v1964 = vpack.c.b16 %v1720, %v1716
        %v1965 = vpack.c.b16 %v1725, %v1721
        %v1966 = vpack.c.b16 %v1726, %v1722
        %v1967 = vpack.c.b16 %v1727, %v1723
        %v1968 = vpack.c.b16 %v1728, %v1724
        %v1969 = vpack.c.b16 %v1733, %v1729
        %v1970 = vpack.c.b16 %v1734, %v1730
        %v1971 = vpack.c.b16 %v1735, %v1731
        %v1972 = vpack.c.b16 %v1736, %v1732
        %v1973 = vpack.c.b16 %v1741, %v1737
        %v1974 = vpack.c.b16 %v1742, %v1738
        %v1975 = vpack.c.b16 %v1743, %v1739
        %v1976 = vpack.c.b16 %v1744, %v1740
        %v1977 = vpack.c.b16 %v1749, %v1745
        %v1978 = vpack.c.b16 %v1750, %v1746
        %v1979 = vpack.c.b16 %v1751, %v1747
        %v1980 = vpack.c.b16 %v1752, %v1748
        %v1981 = vpack.c.b16 %v1757, %v1753
        %v1982 = vpack.c.b16 %v1758, %v1754
        %v1983 = vpack.c.b16 %v1759, %v1755
        %v1984 = vpack.c.b16 %v1760, %v1756
        %v1985 = vpack.c.b16 %v1765, %v1761
        %v1986 = vpack.c.b16 %v1766, %v1762
        %v1987 = vpack.c.b16 %v1767, %v1763
        %v1988 = vpack.c.b16 %v1768, %v1764
        %v1989 = vpack.c.b16 %v1773, %v1769
        %v1990 = vpack.c.b16 %v1774, %v1770
        %v1991 = vpack.c.b16 %v1775, %v1771
        %v1992 = vpack.c.b16 %v1776, %v1772
        %v1993 = vpack.c.b16 %v1781, %v1777
        %v1994 = vpack.c.b16 %v1782, %v1778
        %v1995 = vpack.c.b16 %v1783, %v1779
        %v1996 = vpack.c.b16 %v1784, %v1780
        %v1997 = vpack.c.b16 %v1789, %v1785
        %v1998 = vpack.c.b16 %v1790, %v1786
        %v1999 = vpack.c.b16 %v1791, %v1787
        %v2000 = vpack.c.b16 %v1792, %v1788
        %v2001 = vpack.c.b16 %v1797, %v1793
        %v2002 = vpack.c.b16 %v1798, %v1794
        %v2003 = vpack.c.b16 %v1799, %v1795
        %v2004 = vpack.c.b16 %v1800, %v1796
        %v2005 = vpack.c.b16 %v1805, %v1801
        %v2006 = vpack.c.b16 %v1806, %v1802
        %v2007 = vpack.c.b16 %v1807, %v1803
        %v2008 = vpack.c.b16 %v1808, %v1804
        %v2009 = vpack.c.b16 %v1813, %v1809
        %v2010 = vpack.c.b16 %v1814, %v1810
        %v2011 = vpack.c.b16 %v1815, %v1811
        %v2012 = vpack.c.b16 %v1816, %v1812
        %v2013 = vpack.c.b16 %v1821, %v1817
        %v2014 = vpack.c.b16 %v1822, %v1818
        %v2015 = vpack.c.b16 %v1823, %v1819
        %v2016 = vpack.c.b16 %v1824, %v1820
        %v2017 = vpack.c.b16 %v1829, %v1825
        %v2018 = vpack.c.b16 %v1830, %v1826
        %v2019 = vpack.c.b16 %v1831, %v1827
        %v2020 = vpack.c.b16 %v1832, %v1828
        %v2021 = vpack.c.b16 %v1837, %v1833
        %v2022 = vpack.c.b16 %v1838, %v1834
        %v2023 = vpack.c.b16 %v1839, %v1835
        %v2024 = vpack.c.b16 %v1840, %v1836
        %v2025 = vpack.c.b16 %v1845, %v1841
        %v2026 = vpack.c.b16 %v1846, %v1842
        %v2027 = vpack.c.b16 %v1847, %v1843
        %v2028 = vpack.c.b16 %v1848, %v1844
        %v2029 = vpack.c.b16 %v1853, %v1849
        %v2030 = vpack.c.b16 %v1854, %v1850
        %v2031 = vpack.c.b16 %v1855, %v1851
        %v2032 = vpack.c.b16 %v1856, %v1852
        %v2033 = vpack.c.b16 %v1861, %v1857
        %v2034 = vpack.c.b16 %v1862, %v1858
        %v2035 = vpack.c.b16 %v1863, %v1859
        %v2036 = vpack.c.b16 %v1864, %v1860
        %v2037 = vpack.c.b16 %v1869, %v1865
        %v2038 = vpack.c.b16 %v1870, %v1866
        %v2039 = vpack.c.b16 %v1871, %v1867
        %v2040 = vpack.c.b16 %v1872, %v1868
        %v2041 = vpack.c.b16 %v1877, %v1873
        %v2042 = vpack.c.b16 %v1878, %v1874
        %v2043 = vpack.c.b16 %v1879, %v1875
        %v2044 = vpack.c.b16 %v1880, %v1876
        %v2045 = vpack.c.b16 %v1885, %v1881
        %v2046 = vpack.c.b16 %v1886, %v1882
        %v2047 = vpack.c.b16 %v1887, %v1883
        %v2048 = vpack.c.b16 %v1888, %v1884
        %v2049 = vpack.c.b16 %v1893, %v1889
        %v2050 = vpack.c.b16 %v1894, %v1890
        %v2051 = vpack.c.b16 %v1895, %v1891
        %v2052 = vpack.c.b16 %v1896, %v1892
        %v2053 = vpack.c.b16 %v1901, %v1897
        %v2054 = vpack.c.b16 %v1902, %v1898
        %v2055 = vpack.c.b16 %v1903, %v1899
        %v2056 = vpack.c.b16 %v1904, %v1900
        %v2057 = vpack.c.b16 %v1909, %v1905
        %v2058 = vpack.c.b16 %v1910, %v1906
        %v2059 = vpack.c.b16 %v1911, %v1907
        %v2060 = vpack.c.b16 %v1912, %v1908
        %v2061 = vpack.c.b16 %v1917, %v1913
        %v2062 = vpack.c.b16 %v1918, %v1914
        %v2063 = vpack.c.b16 %v1919, %v1915
        %v2064 = vpack.c.b16 %v1920, %v1916
        %v2065 = vpack.c.b16 %v1925, %v1921
        %v2066 = vpack.c.b16 %v1926, %v1922
        %v2067 = vpack.c.b16 %v1927, %v1923
        %v2068 = vpack.c.b16 %v1928, %v1924
        %v2069 = vpack.c.b16 %v1933, %v1929
        %v2070 = vpack.c.b16 %v1934, %v1930
        %v2071 = vpack.c.b16 %v1935, %v1931
        %v2072 = vpack.c.b16 %v1936, %v1932
        %v2073 = vpack.c.b16 %v1941, %v1937
        %v2074 = vpack.c.b16 %v1942, %v1938
        %v2075 = vpack.c.b16 %v1943, %v1939
        %v2076 = vpack.c.b16 %v1944, %v1940
        %v2077 = vpack.c.b16 %v1949, %v1945
        %v2078 = vpack.c.b16 %v1950, %v1946
        %v2079 = vpack.c.b16 %v1951, %v1947
        %v2080 = vpack.c.b16 %v1952, %v1948
        %2209 = vmatprep.subr.bf16.mxu0 %v1954
        %2210 = vmatpush1.bf16.msra.mxu0 %v1953
        %2211 = vmatprep.subr.bf16.mxu0 %v1958
        %2212 = vmatpush1.bf16.msra.mxu0 %v1957
        %2213 = vmatprep.subr.bf16.mxu0 %v1962
        %2214 = vmatpush1.bf16.msra.mxu0 %v1961
        %2215 = vmatprep.subr.bf16.mxu0 %v1966
        %2216 = vmatpush1.bf16.msra.mxu0 %v1965
        %2217 = vmatprep.subr.bf16.mxu0 %v1970
        %2218 = vmatpush1.bf16.msra.mxu0 %v1969
        %2219 = vmatprep.subr.bf16.mxu0 %v1974
        %2220 = vmatpush1.bf16.msra.mxu0 %v1973
        %2221 = vmatprep.subr.bf16.mxu0 %v1978
        %2222 = vmatpush1.bf16.msra.mxu0 %v1977
        %2223 = vmatprep.subr.bf16.mxu0 %v1982
        %2224 = vmatpush1.bf16.msra.mxu0 %v1981
        %2225 = vmatprep.subr.bf16.mxu0 %v1986
        %2226 = vmatpush1.bf16.msra.mxu0 %v1985
        %2227 = vmatprep.subr.bf16.mxu0 %v1990
        %2228 = vmatpush1.bf16.msra.mxu0 %v1989
        %2229 = vmatprep.subr.bf16.mxu0 %v1994
        %2230 = vmatpush1.bf16.msra.mxu0 %v1993
        %2231 = vmatprep.subr.bf16.mxu0 %v1998
        %2232 = vmatpush1.bf16.msra.mxu0 %v1997
        %2233 = vmatprep.subr.bf16.mxu0 %v2002
        %2234 = vmatpush1.bf16.msra.mxu0 %v2001
        %2235 = vmatprep.subr.bf16.mxu0 %v2006
        %2236 = vmatpush1.bf16.msra.mxu0 %v2005
        %2237 = vmatprep.subr.bf16.mxu0 %v2010
        %2238 = vmatpush1.bf16.msra.mxu0 %v2009
        %2239 = vmatprep.subr.bf16.mxu0 %v2014
        %2240 = vmatpush1.bf16.msra.mxu0 %v2013
        %2241 = vmatprep.mubr.bf16.mxu0 %v454
        %2242 = vmatmul.mubr.bf16.gmra.mrb[0].mxu0 %v453
        %v2243 = vpop.f32.mrb[0].mxu0
        %v2244 = vadd.f32 %v1552, %v2243
        %v2245 = vpop.f32.mrb[0].mxu0
        %v2246 = vadd.f32 %v1556, %v2245
        %v2247 = vpop.f32.mrb[0].mxu0
        %v2248 = vpop.f32.mrb[0].mxu0
        %2249 = vdwg.mxu0
        %2250 = vmatprep.subr.bf16.mxu0 %v2018
        %2251 = vmatpush1.bf16.msra.mxu0 %v2017
        %2252 = vmatprep.subr.bf16.mxu0 %v2022
        %2253 = vmatpush1.bf16.msra.mxu0 %v2021
        %2254 = vmatprep.subr.bf16.mxu0 %v2026
        %2255 = vmatpush1.bf16.msra.mxu0 %v2025
        %2256 = vmatprep.subr.bf16.mxu0 %v2030
        %2257 = vmatpush1.bf16.msra.mxu0 %v2029
        %2258 = vmatprep.subr.bf16.mxu0 %v2034
        %2259 = vmatpush1.bf16.msra.mxu0 %v2033
        %2260 = vmatprep.subr.bf16.mxu0 %v2038
        %2261 = vmatpush1.bf16.msra.mxu0 %v2037
        %2262 = vmatprep.subr.bf16.mxu0 %v2042
        %2263 = vmatpush1.bf16.msra.mxu0 %v2041
        %2264 = vmatprep.subr.bf16.mxu0 %v2046
        %2265 = vmatpush1.bf16.msra.mxu0 %v2045
        %2266 = vmatprep.subr.bf16.mxu0 %v2050
        %2267 = vmatpush1.bf16.msra.mxu0 %v2049
        %2268 = vmatprep.subr.bf16.mxu0 %v2054
        %2269 = vmatpush1.bf16.msra.mxu0 %v2053
        %2270 = vmatprep.subr.bf16.mxu0 %v2058
        %2271 = vmatpush1.bf16.msra.mxu0 %v2057
        %2272 = vmatprep.subr.bf16.mxu0 %v2062
        %2273 = vmatpush1.bf16.msra.mxu0 %v2061
        %2274 = vmatprep.subr.bf16.mxu0 %v2066
        %2275 = vmatpush1.bf16.msra.mxu0 %v2065
        %2276 = vmatprep.subr.bf16.mxu0 %v2070
        %2277 = vmatpush1.bf16.msra.mxu0 %v2069
        %2278 = vmatprep.subr.bf16.mxu0 %v2074
        %2279 = vmatpush1.bf16.msra.mxu0 %v2073
        %2280 = vmatprep.subr.bf16.mxu0 %v2078
        %2281 = vmatpush1.bf16.msra.mxu0 %v2077
        %2282 = vmatprep.mubr.bf16.mxu0 %v456
        %2283 = vmatmul.mubr.bf16.gmra.mrb[0].mxu0 %v455
        %v2284 = vpop.f32.mrb[0].mxu0
        %v2285 = vadd.f32 %v2244, %v2284
        %v2286 = vpop.f32.mrb[0].mxu0
        %v2287 = vadd.f32 %v2246, %v2286
        %v2288 = vpop.f32.mrb[0].mxu0
        %v2289 = vpop.f32.mrb[0].mxu0
        %2290 = vdwg.mxu0
        %2291 = vmatprep.subr.bf16.mxu0 %v1956
        %2292 = vmatpush1.bf16.msra.mxu0 %v1955
        %2293 = vmatprep.subr.bf16.mxu0 %v1960
        %2294 = vmatpush1.bf16.msra.mxu0 %v1959
        %2295 = vmatprep.subr.bf16.mxu0 %v1964
        %2296 = vmatpush1.bf16.msra.mxu0 %v1963
        %2297 = vmatprep.subr.bf16.mxu0 %v1968
        %2298 = vmatpush1.bf16.msra.mxu0 %v1967
        %2299 = vmatprep.subr.bf16.mxu0 %v1972
        %2300 = vmatpush1.bf16.msra.mxu0 %v1971
        %2301 = vmatprep.subr.bf16.mxu0 %v1976
        %2302 = vmatpush1.bf16.msra.mxu0 %v1975
        %2303 = vmatprep.subr.bf16.mxu0 %v1980
        %2304 = vmatpush1.bf16.msra.mxu0 %v1979
        %2305 = vmatprep.subr.bf16.mxu0 %v1984
        %2306 = vmatpush1.bf16.msra.mxu0 %v1983
        %2307 = vmatprep.subr.bf16.mxu0 %v1988
        %2308 = vmatpush1.bf16.msra.mxu0 %v1987
        %2309 = vmatprep.subr.bf16.mxu0 %v1992
        %2310 = vmatpush1.bf16.msra.mxu0 %v1991
        %2311 = vmatprep.subr.bf16.mxu0 %v1996
        %2312 = vmatpush1.bf16.msra.mxu0 %v1995
        %2313 = vmatprep.subr.bf16.mxu0 %v2000
        %2314 = vmatpush1.bf16.msra.mxu0 %v1999
        %2315 = vmatprep.subr.bf16.mxu0 %v2004
        %2316 = vmatpush1.bf16.msra.mxu0 %v2003
        %2317 = vmatprep.subr.bf16.mxu0 %v2008
        %2318 = vmatpush1.bf16.msra.mxu0 %v2007
        %2319 = vmatprep.subr.bf16.mxu0 %v2012
        %2320 = vmatpush1.bf16.msra.mxu0 %v2011
        %2321 = vmatprep.subr.bf16.mxu0 %v2016
        %2322 = vmatpush1.bf16.msra.mxu0 %v2015
        %2323 = vmatprep.mubr.bf16.mxu0 %v454
        %2324 = vmatmul.mubr.bf16.gmra.mrb[0].mxu0 %v453
        %v2325 = vpop.f32.mrb[0].mxu0
        %v2326 = vadd.f32 %v1560, %v2325
        %v2327 = vpop.f32.mrb[0].mxu0
        %v2328 = vadd.f32 %v1564, %v2327
        %v2329 = vpop.f32.mrb[0].mxu0
        %v2330 = vpop.f32.mrb[0].mxu0
        %2331 = vdwg.mxu0
        %2332 = vmatprep.subr.bf16.mxu0 %v2020
        %2333 = vmatpush1.bf16.msra.mxu0 %v2019
        %2334 = vmatprep.subr.bf16.mxu0 %v2024
        %2335 = vmatpush1.bf16.msra.mxu0 %v2023
        %2336 = vmatprep.subr.bf16.mxu0 %v2028
        %2337 = vmatpush1.bf16.msra.mxu0 %v2027
        %2338 = vmatprep.subr.bf16.mxu0 %v2032
        %2339 = vmatpush1.bf16.msra.mxu0 %v2031
        %2340 = vmatprep.subr.bf16.mxu0 %v2036
        %2341 = vmatpush1.bf16.msra.mxu0 %v2035
        %2342 = vmatprep.subr.bf16.mxu0 %v2040
        %2343 = vmatpush1.bf16.msra.mxu0 %v2039
        %2344 = vmatprep.subr.bf16.mxu0 %v2044
        %2345 = vmatpush1.bf16.msra.mxu0 %v2043
        %2346 = vmatprep.subr.bf16.mxu0 %v2048
        %2347 = vmatpush1.bf16.msra.mxu0 %v2047
        %2348 = vmatprep.subr.bf16.mxu0 %v2052
        %2349 = vmatpush1.bf16.msra.mxu0 %v2051
        %2350 = vmatprep.subr.bf16.mxu0 %v2056
        %2351 = vmatpush1.bf16.msra.mxu0 %v2055
        %2352 = vmatprep.subr.bf16.mxu0 %v2060
        %2353 = vmatpush1.bf16.msra.mxu0 %v2059
        %2354 = vmatprep.subr.bf16.mxu0 %v2064
        %2355 = vmatpush1.bf16.msra.mxu0 %v2063
        %2356 = vmatprep.subr.bf16.mxu0 %v2068
        %2357 = vmatpush1.bf16.msra.mxu0 %v2067
        %2358 = vmatprep.subr.bf16.mxu0 %v2072
        %2359 = vmatpush1.bf16.msra.mxu0 %v2071
        %2360 = vmatprep.subr.bf16.mxu0 %v2076
        %2361 = vmatpush1.bf16.msra.mxu0 %v2075
        %2362 = vmatprep.subr.bf16.mxu0 %v2080
        %2363 = vmatpush1.bf16.msra.mxu0 %v2079
        %2364 = vmatprep.mubr.bf16.mxu0 %v456
        %2365 = vmatmul.mubr.bf16.gmra.mrb[0].mxu0 %v455
        %v2366 = vpop.f32.mrb[0].mxu0
        %v2367 = vadd.f32 %v2326, %v2366
        %v2368 = vpop.f32.mrb[0].mxu0
        %v2369 = vadd.f32 %v2328, %v2368
        %v2370 = vpop.f32.mrb[0].mxu0
        %v2371 = vpop.f32.mrb[0].mxu0
        %2372 = vdwg.mxu0
        %v2373 = vld [vmem:[#allocation9 + $0x20] sm:$0xff]
        %v2374 = vld [vmem:[#allocation9 + $0x28] sm:$0xff]
        %v2375 = vld [vmem:[#allocation9 + $0x50] sm:$0xff]
        %v2376 = vld [vmem:[#allocation9 + $0x58] sm:$0xff]
        %v2377 = vld [vmem:[#allocation9 + $0x80] sm:$0xff]
        %v2378 = vld [vmem:[#allocation9 + $0x88] sm:$0xff]
        %v2379 = vld [vmem:[#allocation9 + $0xb0] sm:$0xff]
        %v2380 = vld [vmem:[#allocation9 + $0xb8] sm:$0xff]
        %v2381 = vld [vmem:[#allocation9 + $0xe0] sm:$0xff]
        %v2382 = vld [vmem:[#allocation9 + $0xe8] sm:$0xff]
        %v2383 = vld [vmem:[#allocation9 + $0x110] sm:$0xff]
        %v2384 = vld [vmem:[#allocation9 + $0x118] sm:$0xff]
        %v2385 = vld [vmem:[#allocation9 + $0x140] sm:$0xff]
        %v2386 = vld [vmem:[#allocation9 + $0x148] sm:$0xff]
        %v2387 = vld [vmem:[#allocation9 + $0x170] sm:$0xff]
        %v2388 = vld [vmem:[#allocation9 + $0x178] sm:$0xff]
        %v2389 = vld [vmem:[#allocation9 + $0x1a0] sm:$0xff]
        %v2390 = vld [vmem:[#allocation9 + $0x1a8] sm:$0xff]
        %v2391 = vld [vmem:[#allocation9 + $0x1d0] sm:$0xff]
        %v2392 = vld [vmem:[#allocation9 + $0x1d8] sm:$0xff]
        %v2393 = vld [vmem:[#allocation9 + $0x200] sm:$0xff]
        %v2394 = vld [vmem:[#allocation9 + $0x208] sm:$0xff]
        %v2395 = vld [vmem:[#allocation9 + $0x230] sm:$0xff]
        %v2396 = vld [vmem:[#allocation9 + $0x238] sm:$0xff]
        %v2397 = vld [vmem:[#allocation9 + $0x260] sm:$0xff]
        %v2398 = vld [vmem:[#allocation9 + $0x268] sm:$0xff]
        %v2399 = vld [vmem:[#allocation9 + $0x290] sm:$0xff]
        %v2400 = vld [vmem:[#allocation9 + $0x298] sm:$0xff]
        %v2401 = vld [vmem:[#allocation9 + $0x2c0] sm:$0xff]
        %v2402 = vld [vmem:[#allocation9 + $0x2c8] sm:$0xff]
        %v2403 = vld [vmem:[#allocation9 + $0x2f0] sm:$0xff]
        %v2404 = vld [vmem:[#allocation9 + $0x2f8] sm:$0xff]
        %v2405 = vld [vmem:[#allocation9 + $0x320] sm:$0xff]
        %v2406 = vld [vmem:[#allocation9 + $0x328] sm:$0xff]
        %v2407 = vld [vmem:[#allocation9 + $0x350] sm:$0xff]
        %v2408 = vld [vmem:[#allocation9 + $0x358] sm:$0xff]
        %v2409 = vld [vmem:[#allocation9 + $0x380] sm:$0xff]
        %v2410 = vld [vmem:[#allocation9 + $0x388] sm:$0xff]
        %v2411 = vld [vmem:[#allocation9 + $0x3b0] sm:$0xff]
        %v2412 = vld [vmem:[#allocation9 + $0x3b8] sm:$0xff]
        %v2413 = vld [vmem:[#allocation9 + $0x3e0] sm:$0xff]
        %v2414 = vld [vmem:[#allocation9 + $0x3e8] sm:$0xff]
        %v2415 = vld [vmem:[#allocation9 + $0x410] sm:$0xff]
        %v2416 = vld [vmem:[#allocation9 + $0x418] sm:$0xff]
        %v2417 = vld [vmem:[#allocation9 + $0x440] sm:$0xff]
        %v2418 = vld [vmem:[#allocation9 + $0x448] sm:$0xff]
        %v2419 = vld [vmem:[#allocation9 + $0x470] sm:$0xff]
        %v2420 = vld [vmem:[#allocation9 + $0x478] sm:$0xff]
        %v2421 = vld [vmem:[#allocation9 + $0x4a0] sm:$0xff]
        %v2422 = vld [vmem:[#allocation9 + $0x4a8] sm:$0xff]
        %v2423 = vld [vmem:[#allocation9 + $0x4d0] sm:$0xff]
        %v2424 = vld [vmem:[#allocation9 + $0x4d8] sm:$0xff]
        %v2425 = vld [vmem:[#allocation9 + $0x500] sm:$0xff]
        %v2426 = vld [vmem:[#allocation9 + $0x508] sm:$0xff]
        %v2427 = vld [vmem:[#allocation9 + $0x530] sm:$0xff]
        %v2428 = vld [vmem:[#allocation9 + $0x538] sm:$0xff]
        %v2429 = vld [vmem:[#allocation9 + $0x560] sm:$0xff]
        %v2430 = vld [vmem:[#allocation9 + $0x568] sm:$0xff]
        %v2431 = vld [vmem:[#allocation9 + $0x590] sm:$0xff]
        %v2432 = vld [vmem:[#allocation9 + $0x598] sm:$0xff]
        %v2433 = vld [vmem:[#allocation9 + $0x5c0] sm:$0xff]
        %v2434 = vld [vmem:[#allocation9 + $0x5c8] sm:$0xff]
        %v2435 = vld [vmem:[#allocation9 + $0x5f0] sm:$0xff]
        %v2436 = vld [vmem:[#allocation9 + $0x5f8] sm:$0xff]
        %v2437 = vld [vmem:[#allocation9 + $0x620] sm:$0xff]
        %v2438 = vld [vmem:[#allocation9 + $0x628] sm:$0xff]
        %v2439 = vld [vmem:[#allocation9 + $0x650] sm:$0xff]
        %v2440 = vld [vmem:[#allocation9 + $0x658] sm:$0xff]
        %v2441 = vld [vmem:[#allocation9 + $0x680] sm:$0xff]
        %v2442 = vld [vmem:[#allocation9 + $0x688] sm:$0xff]
        %v2443 = vld [vmem:[#allocation9 + $0x6b0] sm:$0xff]
        %v2444 = vld [vmem:[#allocation9 + $0x6b8] sm:$0xff]
        %v2445 = vld [vmem:[#allocation9 + $0x6e0] sm:$0xff]
        %v2446 = vld [vmem:[#allocation9 + $0x6e8] sm:$0xff]
        %v2447 = vld [vmem:[#allocation9 + $0x710] sm:$0xff]
        %v2448 = vld [vmem:[#allocation9 + $0x718] sm:$0xff]
        %v2449 = vld [vmem:[#allocation9 + $0x740] sm:$0xff]
        %v2450 = vld [vmem:[#allocation9 + $0x748] sm:$0xff]
        %v2451 = vld [vmem:[#allocation9 + $0x770] sm:$0xff]
        %v2452 = vld [vmem:[#allocation9 + $0x778] sm:$0xff]
        %v2453 = vld [vmem:[#allocation9 + $0x7a0] sm:$0xff]
        %v2454 = vld [vmem:[#allocation9 + $0x7a8] sm:$0xff]
        %v2455 = vld [vmem:[#allocation9 + $0x7d0] sm:$0xff]
        %v2456 = vld [vmem:[#allocation9 + $0x7d8] sm:$0xff]
        %v2457 = vld [vmem:[#allocation9 + $0x800] sm:$0xff]
        %v2458 = vld [vmem:[#allocation9 + $0x808] sm:$0xff]
        %v2459 = vld [vmem:[#allocation9 + $0x830] sm:$0xff]
        %v2460 = vld [vmem:[#allocation9 + $0x838] sm:$0xff]
        %v2461 = vld [vmem:[#allocation9 + $0x860] sm:$0xff]
        %v2462 = vld [vmem:[#allocation9 + $0x868] sm:$0xff]
        %v2463 = vld [vmem:[#allocation9 + $0x890] sm:$0xff]
        %v2464 = vld [vmem:[#allocation9 + $0x898] sm:$0xff]
        %v2465 = vld [vmem:[#allocation9 + $0x8c0] sm:$0xff]
        %v2466 = vld [vmem:[#allocation9 + $0x8c8] sm:$0xff]
        %v2467 = vld [vmem:[#allocation9 + $0x8f0] sm:$0xff]
        %v2468 = vld [vmem:[#allocation9 + $0x8f8] sm:$0xff]
        %v2469 = vld [vmem:[#allocation9 + $0x920] sm:$0xff]
        %v2470 = vld [vmem:[#allocation9 + $0x928] sm:$0xff]
        %v2471 = vld [vmem:[#allocation9 + $0x950] sm:$0xff]
        %v2472 = vld [vmem:[#allocation9 + $0x958] sm:$0xff]
        %v2473 = vld [vmem:[#allocation9 + $0x980] sm:$0xff]
        %v2474 = vld [vmem:[#allocation9 + $0x988] sm:$0xff]
        %v2475 = vld [vmem:[#allocation9 + $0x9b0] sm:$0xff]
        %v2476 = vld [vmem:[#allocation9 + $0x9b8] sm:$0xff]
        %v2477 = vld [vmem:[#allocation9 + $0x9e0] sm:$0xff]
        %v2478 = vld [vmem:[#allocation9 + $0x9e8] sm:$0xff]
        %v2479 = vld [vmem:[#allocation9 + $0xa10] sm:$0xff]
        %v2480 = vld [vmem:[#allocation9 + $0xa18] sm:$0xff]
        %v2481 = vld [vmem:[#allocation9 + $0xa40] sm:$0xff]
        %v2482 = vld [vmem:[#allocation9 + $0xa48] sm:$0xff]
        %v2483 = vld [vmem:[#allocation9 + $0xa70] sm:$0xff]
        %v2484 = vld [vmem:[#allocation9 + $0xa78] sm:$0xff]
        %v2485 = vld [vmem:[#allocation9 + $0xaa0] sm:$0xff]
        %v2486 = vld [vmem:[#allocation9 + $0xaa8] sm:$0xff]
        %v2487 = vld [vmem:[#allocation9 + $0xad0] sm:$0xff]
        %v2488 = vld [vmem:[#allocation9 + $0xad8] sm:$0xff]
        %v2489 = vld [vmem:[#allocation9 + $0xb00] sm:$0xff]
        %v2490 = vld [vmem:[#allocation9 + $0xb08] sm:$0xff]
        %v2491 = vld [vmem:[#allocation9 + $0xb30] sm:$0xff]
        %v2492 = vld [vmem:[#allocation9 + $0xb38] sm:$0xff]
        %v2493 = vld [vmem:[#allocation9 + $0xb60] sm:$0xff]
        %v2494 = vld [vmem:[#allocation9 + $0xb68] sm:$0xff]
        %v2495 = vld [vmem:[#allocation9 + $0xb90] sm:$0xff]
        %v2496 = vld [vmem:[#allocation9 + $0xb98] sm:$0xff]
        %v2497 = vld [vmem:[#allocation9 + $0xbc0] sm:$0xff]
        %v2498 = vld [vmem:[#allocation9 + $0xbc8] sm:$0xff]
        %v2499 = vld [vmem:[#allocation9 + $0xbf0] sm:$0xff]
        %v2500 = vld [vmem:[#allocation9 + $0xbf8] sm:$0xff]
        %v2501 = vld [vmem:[#allocation11 + $0x8] sm:$0xf]
        %v2503 = vlaneseq
        %v2504 = vshrl.u32 %v2503, 7
        %v2505 = vsub.s32 0, %v2504
        %v2506 = vrot.slane %v2501, %v2505
        %v2507 = vlaneseq
        %v2508 = vshrl.u32 %v2507, 7
        %v2509 = vsub.s32 1, %v2508
        %v2510 = vrot.slane %v2501, %v2509
        %v2511 = vlaneseq
        %v2512 = vshrl.u32 %v2511, 7
        %v2513 = vsub.s32 2, %v2512
        %v2514 = vrot.slane %v2501, %v2513
        %v2515 = vlaneseq
        %v2516 = vshrl.u32 %v2515, 7
        %v2517 = vsub.s32 3, %v2516
        %v2518 = vrot.slane %v2501, %v2517
        %v2651 = vunpack.c.l.b16 %v2373
        %v2652 = vunpack.c.h.b16 %v2373
        %v2653 = vunpack.c.l.b16 %v2374
        %v2654 = vunpack.c.h.b16 %v2374
        %v2655 = vunpack.c.l.b16 %v2375
        %v2656 = vunpack.c.h.b16 %v2375
        %v2657 = vunpack.c.l.b16 %v2376
        %v2658 = vunpack.c.h.b16 %v2376
        %v2659 = vunpack.c.l.b16 %v2377
        %v2660 = vunpack.c.h.b16 %v2377
        %v2661 = vunpack.c.l.b16 %v2378
        %v2662 = vunpack.c.h.b16 %v2378
        %v2663 = vunpack.c.l.b16 %v2379
        %v2664 = vunpack.c.h.b16 %v2379
        %v2665 = vunpack.c.l.b16 %v2380
        %v2666 = vunpack.c.h.b16 %v2380
        %v2667 = vunpack.c.l.b16 %v2381
        %v2668 = vunpack.c.h.b16 %v2381
        %v2669 = vunpack.c.l.b16 %v2382
        %v2670 = vunpack.c.h.b16 %v2382
        %v2671 = vunpack.c.l.b16 %v2383
        %v2672 = vunpack.c.h.b16 %v2383
        %v2673 = vunpack.c.l.b16 %v2384
        %v2674 = vunpack.c.h.b16 %v2384
        %v2675 = vunpack.c.l.b16 %v2385
        %v2676 = vunpack.c.h.b16 %v2385
        %v2677 = vunpack.c.l.b16 %v2386
        %v2678 = vunpack.c.h.b16 %v2386
        %v2679 = vunpack.c.l.b16 %v2387
        %v2680 = vunpack.c.h.b16 %v2387
        %v2681 = vunpack.c.l.b16 %v2388
        %v2682 = vunpack.c.h.b16 %v2388
        %v2683 = vunpack.c.l.b16 %v2389
        %v2684 = vunpack.c.h.b16 %v2389
        %v2685 = vunpack.c.l.b16 %v2390
        %v2686 = vunpack.c.h.b16 %v2390
        %v2687 = vunpack.c.l.b16 %v2391
        %v2688 = vunpack.c.h.b16 %v2391
        %v2689 = vunpack.c.l.b16 %v2392
        %v2690 = vunpack.c.h.b16 %v2392
        %v2691 = vunpack.c.l.b16 %v2393
        %v2692 = vunpack.c.h.b16 %v2393
        %v2693 = vunpack.c.l.b16 %v2394
        %v2694 = vunpack.c.h.b16 %v2394
        %v2695 = vunpack.c.l.b16 %v2395
        %v2696 = vunpack.c.h.b16 %v2395
        %v2697 = vunpack.c.l.b16 %v2396
        %v2698 = vunpack.c.h.b16 %v2396
        %v2699 = vunpack.c.l.b16 %v2397
        %v2700 = vunpack.c.h.b16 %v2397
        %v2701 = vunpack.c.l.b16 %v2398
        %v2702 = vunpack.c.h.b16 %v2398
        %v2703 = vunpack.c.l.b16 %v2399
        %v2704 = vunpack.c.h.b16 %v2399
        %v2705 = vunpack.c.l.b16 %v2400
        %v2706 = vunpack.c.h.b16 %v2400
        %v2707 = vunpack.c.l.b16 %v2401
        %v2708 = vunpack.c.h.b16 %v2401
        %v2709 = vunpack.c.l.b16 %v2402
        %v2710 = vunpack.c.h.b16 %v2402
        %v2711 = vunpack.c.l.b16 %v2403
        %v2712 = vunpack.c.h.b16 %v2403
        %v2713 = vunpack.c.l.b16 %v2404
        %v2714 = vunpack.c.h.b16 %v2404
        %v2715 = vunpack.c.l.b16 %v2405
        %v2716 = vunpack.c.h.b16 %v2405
        %v2717 = vunpack.c.l.b16 %v2406
        %v2718 = vunpack.c.h.b16 %v2406
        %v2719 = vunpack.c.l.b16 %v2407
        %v2720 = vunpack.c.h.b16 %v2407
        %v2721 = vunpack.c.l.b16 %v2408
        %v2722 = vunpack.c.h.b16 %v2408
        %v2723 = vunpack.c.l.b16 %v2409
        %v2724 = vunpack.c.h.b16 %v2409
        %v2725 = vunpack.c.l.b16 %v2410
        %v2726 = vunpack.c.h.b16 %v2410
        %v2727 = vunpack.c.l.b16 %v2411
        %v2728 = vunpack.c.h.b16 %v2411
        %v2729 = vunpack.c.l.b16 %v2412
        %v2730 = vunpack.c.h.b16 %v2412
        %v2731 = vunpack.c.l.b16 %v2413
        %v2732 = vunpack.c.h.b16 %v2413
        %v2733 = vunpack.c.l.b16 %v2414
        %v2734 = vunpack.c.h.b16 %v2414
        %v2735 = vunpack.c.l.b16 %v2415
        %v2736 = vunpack.c.h.b16 %v2415
        %v2737 = vunpack.c.l.b16 %v2416
        %v2738 = vunpack.c.h.b16 %v2416
        %v2739 = vunpack.c.l.b16 %v2417
        %v2740 = vunpack.c.h.b16 %v2417
        %v2741 = vunpack.c.l.b16 %v2418
        %v2742 = vunpack.c.h.b16 %v2418
        %v2743 = vunpack.c.l.b16 %v2419
        %v2744 = vunpack.c.h.b16 %v2419
        %v2745 = vunpack.c.l.b16 %v2420
        %v2746 = vunpack.c.h.b16 %v2420
        %v2747 = vunpack.c.l.b16 %v2421
        %v2748 = vunpack.c.h.b16 %v2421
        %v2749 = vunpack.c.l.b16 %v2422
        %v2750 = vunpack.c.h.b16 %v2422
        %v2751 = vunpack.c.l.b16 %v2423
        %v2752 = vunpack.c.h.b16 %v2423
        %v2753 = vunpack.c.l.b16 %v2424
        %v2754 = vunpack.c.h.b16 %v2424
        %v2755 = vunpack.c.l.b16 %v2425
        %v2756 = vunpack.c.h.b16 %v2425
        %v2757 = vunpack.c.l.b16 %v2426
        %v2758 = vunpack.c.h.b16 %v2426
        %v2759 = vunpack.c.l.b16 %v2427
        %v2760 = vunpack.c.h.b16 %v2427
        %v2761 = vunpack.c.l.b16 %v2428
        %v2762 = vunpack.c.h.b16 %v2428
        %v2763 = vunpack.c.l.b16 %v2429
        %v2764 = vunpack.c.h.b16 %v2429
        %v2765 = vunpack.c.l.b16 %v2430
        %v2766 = vunpack.c.h.b16 %v2430
        %v2767 = vunpack.c.l.b16 %v2431
        %v2768 = vunpack.c.h.b16 %v2431
        %v2769 = vunpack.c.l.b16 %v2432
        %v2770 = vunpack.c.h.b16 %v2432
        %v2771 = vunpack.c.l.b16 %v2433
        %v2772 = vunpack.c.h.b16 %v2433
        %v2773 = vunpack.c.l.b16 %v2434
        %v2774 = vunpack.c.h.b16 %v2434
        %v2775 = vunpack.c.l.b16 %v2435
        %v2776 = vunpack.c.h.b16 %v2435
        %v2777 = vunpack.c.l.b16 %v2436
        %v2778 = vunpack.c.h.b16 %v2436
        %v2779 = vunpack.c.l.b16 %v2437
        %v2780 = vunpack.c.h.b16 %v2437
        %v2781 = vunpack.c.l.b16 %v2438
        %v2782 = vunpack.c.h.b16 %v2438
        %v2783 = vunpack.c.l.b16 %v2439
        %v2784 = vunpack.c.h.b16 %v2439
        %v2785 = vunpack.c.l.b16 %v2440
        %v2786 = vunpack.c.h.b16 %v2440
        %v2787 = vunpack.c.l.b16 %v2441
        %v2788 = vunpack.c.h.b16 %v2441
        %v2789 = vunpack.c.l.b16 %v2442
        %v2790 = vunpack.c.h.b16 %v2442
        %v2791 = vunpack.c.l.b16 %v2443
        %v2792 = vunpack.c.h.b16 %v2443
        %v2793 = vunpack.c.l.b16 %v2444
        %v2794 = vunpack.c.h.b16 %v2444
        %v2795 = vunpack.c.l.b16 %v2445
        %v2796 = vunpack.c.h.b16 %v2445
        %v2797 = vunpack.c.l.b16 %v2446
        %v2798 = vunpack.c.h.b16 %v2446
        %v2799 = vunpack.c.l.b16 %v2447
        %v2800 = vunpack.c.h.b16 %v2447
        %v2801 = vunpack.c.l.b16 %v2448
        %v2802 = vunpack.c.h.b16 %v2448
        %v2803 = vunpack.c.l.b16 %v2449
        %v2804 = vunpack.c.h.b16 %v2449
        %v2805 = vunpack.c.l.b16 %v2450
        %v2806 = vunpack.c.h.b16 %v2450
        %v2807 = vunpack.c.l.b16 %v2451
        %v2808 = vunpack.c.h.b16 %v2451
        %v2809 = vunpack.c.l.b16 %v2452
        %v2810 = vunpack.c.h.b16 %v2452
        %v2811 = vunpack.c.l.b16 %v2453
        %v2812 = vunpack.c.h.b16 %v2453
        %v2813 = vunpack.c.l.b16 %v2454
        %v2814 = vunpack.c.h.b16 %v2454
        %v2815 = vunpack.c.l.b16 %v2455
        %v2816 = vunpack.c.h.b16 %v2455
        %v2817 = vunpack.c.l.b16 %v2456
        %v2818 = vunpack.c.h.b16 %v2456
        %v2819 = vunpack.c.l.b16 %v2457
        %v2820 = vunpack.c.h.b16 %v2457
        %v2821 = vunpack.c.l.b16 %v2458
        %v2822 = vunpack.c.h.b16 %v2458
        %v2823 = vunpack.c.l.b16 %v2459
        %v2824 = vunpack.c.h.b16 %v2459
        %v2825 = vunpack.c.l.b16 %v2460
        %v2826 = vunpack.c.h.b16 %v2460
        %v2827 = vunpack.c.l.b16 %v2461
        %v2828 = vunpack.c.h.b16 %v2461
        %v2829 = vunpack.c.l.b16 %v2462
        %v2830 = vunpack.c.h.b16 %v2462
        %v2831 = vunpack.c.l.b16 %v2463
        %v2832 = vunpack.c.h.b16 %v2463
        %v2833 = vunpack.c.l.b16 %v2464
        %v2834 = vunpack.c.h.b16 %v2464
        %v2835 = vunpack.c.l.b16 %v2465
        %v2836 = vunpack.c.h.b16 %v2465
        %v2837 = vunpack.c.l.b16 %v2466
        %v2838 = vunpack.c.h.b16 %v2466
        %v2839 = vunpack.c.l.b16 %v2467
        %v2840 = vunpack.c.h.b16 %v2467
        %v2841 = vunpack.c.l.b16 %v2468
        %v2842 = vunpack.c.h.b16 %v2468
        %v2843 = vunpack.c.l.b16 %v2469
        %v2844 = vunpack.c.h.b16 %v2469
        %v2845 = vunpack.c.l.b16 %v2470
        %v2846 = vunpack.c.h.b16 %v2470
        %v2847 = vunpack.c.l.b16 %v2471
        %v2848 = vunpack.c.h.b16 %v2471
        %v2849 = vunpack.c.l.b16 %v2472
        %v2850 = vunpack.c.h.b16 %v2472
        %v2851 = vunpack.c.l.b16 %v2473
        %v2852 = vunpack.c.h.b16 %v2473
        %v2853 = vunpack.c.l.b16 %v2474
        %v2854 = vunpack.c.h.b16 %v2474
        %v2855 = vunpack.c.l.b16 %v2475
        %v2856 = vunpack.c.h.b16 %v2475
        %v2857 = vunpack.c.l.b16 %v2476
        %v2858 = vunpack.c.h.b16 %v2476
        %v2859 = vunpack.c.l.b16 %v2477
        %v2860 = vunpack.c.h.b16 %v2477
        %v2861 = vunpack.c.l.b16 %v2478
        %v2862 = vunpack.c.h.b16 %v2478
        %v2863 = vunpack.c.l.b16 %v2479
        %v2864 = vunpack.c.h.b16 %v2479
        %v2865 = vunpack.c.l.b16 %v2480
        %v2866 = vunpack.c.h.b16 %v2480
        %v2867 = vunpack.c.l.b16 %v2481
        %v2868 = vunpack.c.h.b16 %v2481
        %v2869 = vunpack.c.l.b16 %v2482
        %v2870 = vunpack.c.h.b16 %v2482
        %v2871 = vunpack.c.l.b16 %v2483
        %v2872 = vunpack.c.h.b16 %v2483
        %v2873 = vunpack.c.l.b16 %v2484
        %v2874 = vunpack.c.h.b16 %v2484
        %v2875 = vunpack.c.l.b16 %v2485
        %v2876 = vunpack.c.h.b16 %v2485
        %v2877 = vunpack.c.l.b16 %v2486
        %v2878 = vunpack.c.h.b16 %v2486
        %v2879 = vunpack.c.l.b16 %v2487
        %v2880 = vunpack.c.h.b16 %v2487
        %v2881 = vunpack.c.l.b16 %v2488
        %v2882 = vunpack.c.h.b16 %v2488
        %v2883 = vunpack.c.l.b16 %v2489
        %v2884 = vunpack.c.h.b16 %v2489
        %v2885 = vunpack.c.l.b16 %v2490
        %v2886 = vunpack.c.h.b16 %v2490
        %v2887 = vunpack.c.l.b16 %v2491
        %v2888 = vunpack.c.h.b16 %v2491
        %v2889 = vunpack.c.l.b16 %v2492
        %v2890 = vunpack.c.h.b16 %v2492
        %v2891 = vunpack.c.l.b16 %v2493
        %v2892 = vunpack.c.h.b16 %v2493
        %v2893 = vunpack.c.l.b16 %v2494
        %v2894 = vunpack.c.h.b16 %v2494
        %v2895 = vunpack.c.l.b16 %v2495
        %v2896 = vunpack.c.h.b16 %v2495
        %v2897 = vunpack.c.l.b16 %v2496
        %v2898 = vunpack.c.h.b16 %v2496
        %v2899 = vunpack.c.l.b16 %v2497
        %v2900 = vunpack.c.h.b16 %v2497
        %v2901 = vunpack.c.l.b16 %v2498
        %v2902 = vunpack.c.h.b16 %v2498
        %v2903 = vunpack.c.l.b16 %v2499
        %v2904 = vunpack.c.h.b16 %v2499
        %v2905 = vunpack.c.l.b16 %v2500
        %v2906 = vunpack.c.h.b16 %v2500
        %v2907 = vpack.c.b16 %v2655, %v2651
        %v2908 = vpack.c.b16 %v2656, %v2652
        %v2909 = vpack.c.b16 %v2657, %v2653
        %v2910 = vpack.c.b16 %v2658, %v2654
        %v2911 = vpack.c.b16 %v2663, %v2659
        %v2912 = vpack.c.b16 %v2664, %v2660
        %v2913 = vpack.c.b16 %v2665, %v2661
        %v2914 = vpack.c.b16 %v2666, %v2662
        %v2915 = vpack.c.b16 %v2671, %v2667
        %v2916 = vpack.c.b16 %v2672, %v2668
        %v2917 = vpack.c.b16 %v2673, %v2669
        %v2918 = vpack.c.b16 %v2674, %v2670
        %v2919 = vpack.c.b16 %v2679, %v2675
        %v2920 = vpack.c.b16 %v2680, %v2676
        %v2921 = vpack.c.b16 %v2681, %v2677
        %v2922 = vpack.c.b16 %v2682, %v2678
        %v2923 = vpack.c.b16 %v2687, %v2683
        %v2924 = vpack.c.b16 %v2688, %v2684
        %v2925 = vpack.c.b16 %v2689, %v2685
        %v2926 = vpack.c.b16 %v2690, %v2686
        %v2927 = vpack.c.b16 %v2695, %v2691
        %v2928 = vpack.c.b16 %v2696, %v2692
        %v2929 = vpack.c.b16 %v2697, %v2693
        %v2930 = vpack.c.b16 %v2698, %v2694
        %v2931 = vpack.c.b16 %v2703, %v2699
        %v2932 = vpack.c.b16 %v2704, %v2700
        %v2933 = vpack.c.b16 %v2705, %v2701
        %v2934 = vpack.c.b16 %v2706, %v2702
        %v2935 = vpack.c.b16 %v2711, %v2707
        %v2936 = vpack.c.b16 %v2712, %v2708
        %v2937 = vpack.c.b16 %v2713, %v2709
        %v2938 = vpack.c.b16 %v2714, %v2710
        %v2939 = vpack.c.b16 %v2719, %v2715
        %v2940 = vpack.c.b16 %v2720, %v2716
        %v2941 = vpack.c.b16 %v2721, %v2717
        %v2942 = vpack.c.b16 %v2722, %v2718
        %v2943 = vpack.c.b16 %v2727, %v2723
        %v2944 = vpack.c.b16 %v2728, %v2724
        %v2945 = vpack.c.b16 %v2729, %v2725
        %v2946 = vpack.c.b16 %v2730, %v2726
        %v2947 = vpack.c.b16 %v2735, %v2731
        %v2948 = vpack.c.b16 %v2736, %v2732
        %v2949 = vpack.c.b16 %v2737, %v2733
        %v2950 = vpack.c.b16 %v2738, %v2734
        %v2951 = vpack.c.b16 %v2743, %v2739
        %v2952 = vpack.c.b16 %v2744, %v2740
        %v2953 = vpack.c.b16 %v2745, %v2741
        %v2954 = vpack.c.b16 %v2746, %v2742
        %v2955 = vpack.c.b16 %v2751, %v2747
        %v2956 = vpack.c.b16 %v2752, %v2748
        %v2957 = vpack.c.b16 %v2753, %v2749
        %v2958 = vpack.c.b16 %v2754, %v2750
        %v2959 = vpack.c.b16 %v2759, %v2755
        %v2960 = vpack.c.b16 %v2760, %v2756
        %v2961 = vpack.c.b16 %v2761, %v2757
        %v2962 = vpack.c.b16 %v2762, %v2758
        %v2963 = vpack.c.b16 %v2767, %v2763
        %v2964 = vpack.c.b16 %v2768, %v2764
        %v2965 = vpack.c.b16 %v2769, %v2765
        %v2966 = vpack.c.b16 %v2770, %v2766
        %v2967 = vpack.c.b16 %v2775, %v2771
        %v2968 = vpack.c.b16 %v2776, %v2772
        %v2969 = vpack.c.b16 %v2777, %v2773
        %v2970 = vpack.c.b16 %v2778, %v2774
        %v2971 = vpack.c.b16 %v2783, %v2779
        %v2972 = vpack.c.b16 %v2784, %v2780
        %v2973 = vpack.c.b16 %v2785, %v2781
        %v2974 = vpack.c.b16 %v2786, %v2782
        %v2975 = vpack.c.b16 %v2791, %v2787
        %v2976 = vpack.c.b16 %v2792, %v2788
        %v2977 = vpack.c.b16 %v2793, %v2789
        %v2978 = vpack.c.b16 %v2794, %v2790
        %v2979 = vpack.c.b16 %v2799, %v2795
        %v2980 = vpack.c.b16 %v2800, %v2796
        %v2981 = vpack.c.b16 %v2801, %v2797
        %v2982 = vpack.c.b16 %v2802, %v2798
        %v2983 = vpack.c.b16 %v2807, %v2803
        %v2984 = vpack.c.b16 %v2808, %v2804
        %v2985 = vpack.c.b16 %v2809, %v2805
        %v2986 = vpack.c.b16 %v2810, %v2806
        %v2987 = vpack.c.b16 %v2815, %v2811
        %v2988 = vpack.c.b16 %v2816, %v2812
        %v2989 = vpack.c.b16 %v2817, %v2813
        %v2990 = vpack.c.b16 %v2818, %v2814
        %v2991 = vpack.c.b16 %v2823, %v2819
        %v2992 = vpack.c.b16 %v2824, %v2820
        %v2993 = vpack.c.b16 %v2825, %v2821
        %v2994 = vpack.c.b16 %v2826, %v2822
        %v2995 = vpack.c.b16 %v2831, %v2827
        %v2996 = vpack.c.b16 %v2832, %v2828
        %v2997 = vpack.c.b16 %v2833, %v2829
        %v2998 = vpack.c.b16 %v2834, %v2830
        %v2999 = vpack.c.b16 %v2839, %v2835
        %v3000 = vpack.c.b16 %v2840, %v2836
        %v3001 = vpack.c.b16 %v2841, %v2837
        %v3002 = vpack.c.b16 %v2842, %v2838
        %v3003 = vpack.c.b16 %v2847, %v2843
        %v3004 = vpack.c.b16 %v2848, %v2844
        %v3005 = vpack.c.b16 %v2849, %v2845
        %v3006 = vpack.c.b16 %v2850, %v2846
        %v3007 = vpack.c.b16 %v2855, %v2851
        %v3008 = vpack.c.b16 %v2856, %v2852
        %v3009 = vpack.c.b16 %v2857, %v2853
        %v3010 = vpack.c.b16 %v2858, %v2854
        %v3011 = vpack.c.b16 %v2863, %v2859
        %v3012 = vpack.c.b16 %v2864, %v2860
        %v3013 = vpack.c.b16 %v2865, %v2861
        %v3014 = vpack.c.b16 %v2866, %v2862
        %v3015 = vpack.c.b16 %v2871, %v2867
        %v3016 = vpack.c.b16 %v2872, %v2868
        %v3017 = vpack.c.b16 %v2873, %v2869
        %v3018 = vpack.c.b16 %v2874, %v2870
        %v3019 = vpack.c.b16 %v2879, %v2875
        %v3020 = vpack.c.b16 %v2880, %v2876
        %v3021 = vpack.c.b16 %v2881, %v2877
        %v3022 = vpack.c.b16 %v2882, %v2878
        %v3023 = vpack.c.b16 %v2887, %v2883
        %v3024 = vpack.c.b16 %v2888, %v2884
        %v3025 = vpack.c.b16 %v2889, %v2885
        %v3026 = vpack.c.b16 %v2890, %v2886
        %v3027 = vpack.c.b16 %v2895, %v2891
        %v3028 = vpack.c.b16 %v2896, %v2892
        %v3029 = vpack.c.b16 %v2897, %v2893
        %v3030 = vpack.c.b16 %v2898, %v2894
        %v3031 = vpack.c.b16 %v2903, %v2899
        %v3032 = vpack.c.b16 %v2904, %v2900
        %v3033 = vpack.c.b16 %v2905, %v2901
        %v3034 = vpack.c.b16 %v2906, %v2902
        %3163 = vmatprep.subr.bf16.mxu0 %v2908
        %3164 = vmatpush1.bf16.msra.mxu0 %v2907
        %3165 = vmatprep.subr.bf16.mxu0 %v2912
        %3166 = vmatpush1.bf16.msra.mxu0 %v2911
        %3167 = vmatprep.subr.bf16.mxu0 %v2916
        %3168 = vmatpush1.bf16.msra.mxu0 %v2915
        %3169 = vmatprep.subr.bf16.mxu0 %v2920
        %3170 = vmatpush1.bf16.msra.mxu0 %v2919
        %3171 = vmatprep.subr.bf16.mxu0 %v2924
        %3172 = vmatpush1.bf16.msra.mxu0 %v2923
        %3173 = vmatprep.subr.bf16.mxu0 %v2928
        %3174 = vmatpush1.bf16.msra.mxu0 %v2927
        %3175 = vmatprep.subr.bf16.mxu0 %v2932
        %3176 = vmatpush1.bf16.msra.mxu0 %v2931
        %3177 = vmatprep.subr.bf16.mxu0 %v2936
        %3178 = vmatpush1.bf16.msra.mxu0 %v2935
        %3179 = vmatprep.subr.bf16.mxu0 %v2940
        %3180 = vmatpush1.bf16.msra.mxu0 %v2939
        %3181 = vmatprep.subr.bf16.mxu0 %v2944
        %3182 = vmatpush1.bf16.msra.mxu0 %v2943
        %3183 = vmatprep.subr.bf16.mxu0 %v2948
        %3184 = vmatpush1.bf16.msra.mxu0 %v2947
        %3185 = vmatprep.subr.bf16.mxu0 %v2952
        %3186 = vmatpush1.bf16.msra.mxu0 %v2951
        %3187 = vmatprep.subr.bf16.mxu0 %v2956
        %3188 = vmatpush1.bf16.msra.mxu0 %v2955
        %3189 = vmatprep.subr.bf16.mxu0 %v2960
        %3190 = vmatpush1.bf16.msra.mxu0 %v2959
        %3191 = vmatprep.subr.bf16.mxu0 %v2964
        %3192 = vmatpush1.bf16.msra.mxu0 %v2963
        %3193 = vmatprep.subr.bf16.mxu0 %v2968
        %3194 = vmatpush1.bf16.msra.mxu0 %v2967
        %3195 = vmatprep.mubr.bf16.mxu0 %v462
        %3196 = vmatmul.mubr.bf16.gmra.mrb[0].mxu0 %v461
        %v3197 = vpop.f32.mrb[0].mxu0
        %v3198 = vadd.f32 %v2506, %v3197
        %v3199 = vpop.f32.mrb[0].mxu0
        %v3200 = vadd.f32 %v2510, %v3199
        %v3201 = vpop.f32.mrb[0].mxu0
        %v3202 = vpop.f32.mrb[0].mxu0
        %3203 = vdwg.mxu0
        %3204 = vmatprep.subr.bf16.mxu0 %v2972
        %3205 = vmatpush1.bf16.msra.mxu0 %v2971
        %3206 = vmatprep.subr.bf16.mxu0 %v2976
        %3207 = vmatpush1.bf16.msra.mxu0 %v2975
        %3208 = vmatprep.subr.bf16.mxu0 %v2980
        %3209 = vmatpush1.bf16.msra.mxu0 %v2979
        %3210 = vmatprep.subr.bf16.mxu0 %v2984
        %3211 = vmatpush1.bf16.msra.mxu0 %v2983
        %3212 = vmatprep.subr.bf16.mxu0 %v2988
        %3213 = vmatpush1.bf16.msra.mxu0 %v2987
        %3214 = vmatprep.subr.bf16.mxu0 %v2992
        %3215 = vmatpush1.bf16.msra.mxu0 %v2991
        %3216 = vmatprep.subr.bf16.mxu0 %v2996
        %3217 = vmatpush1.bf16.msra.mxu0 %v2995
        %3218 = vmatprep.subr.bf16.mxu0 %v3000
        %3219 = vmatpush1.bf16.msra.mxu0 %v2999
        %3220 = vmatprep.subr.bf16.mxu0 %v3004
        %3221 = vmatpush1.bf16.msra.mxu0 %v3003
        %3222 = vmatprep.subr.bf16.mxu0 %v3008
        %3223 = vmatpush1.bf16.msra.mxu0 %v3007
        %3224 = vmatprep.subr.bf16.mxu0 %v3012
        %3225 = vmatpush1.bf16.msra.mxu0 %v3011
        %3226 = vmatprep.subr.bf16.mxu0 %v3016
        %3227 = vmatpush1.bf16.msra.mxu0 %v3015
        %3228 = vmatprep.subr.bf16.mxu0 %v3020
        %3229 = vmatpush1.bf16.msra.mxu0 %v3019
        %3230 = vmatprep.subr.bf16.mxu0 %v3024
        %3231 = vmatpush1.bf16.msra.mxu0 %v3023
        %3232 = vmatprep.subr.bf16.mxu0 %v3028
        %3233 = vmatpush1.bf16.msra.mxu0 %v3027
        %3234 = vmatprep.subr.bf16.mxu0 %v3032
        %3235 = vmatpush1.bf16.msra.mxu0 %v3031
        %3236 = vmatprep.mubr.bf16.mxu0 %v464
        %3237 = vmatmul.mubr.bf16.gmra.mrb[0].mxu0 %v463
        %v3238 = vpop.f32.mrb[0].mxu0
        %v3239 = vadd.f32 %v3198, %v3238
        %v3240 = vpop.f32.mrb[0].mxu0
        %v3241 = vadd.f32 %v3200, %v3240
        %v3242 = vpop.f32.mrb[0].mxu0
        %v3243 = vpop.f32.mrb[0].mxu0
        %3244 = vdwg.mxu0
        %3245 = vmatprep.subr.bf16.mxu0 %v2910
        %3246 = vmatpush1.bf16.msra.mxu0 %v2909
        %3247 = vmatprep.subr.bf16.mxu0 %v2914
        %3248 = vmatpush1.bf16.msra.mxu0 %v2913
        %3249 = vmatprep.subr.bf16.mxu0 %v2918
        %3250 = vmatpush1.bf16.msra.mxu0 %v2917
        %3251 = vmatprep.subr.bf16.mxu0 %v2922
        %3252 = vmatpush1.bf16.msra.mxu0 %v2921
        %3253 = vmatprep.subr.bf16.mxu0 %v2926
        %3254 = vmatpush1.bf16.msra.mxu0 %v2925
        %3255 = vmatprep.subr.bf16.mxu0 %v2930
        %3256 = vmatpush1.bf16.msra.mxu0 %v2929
        %3257 = vmatprep.subr.bf16.mxu0 %v2934
        %3258 = vmatpush1.bf16.msra.mxu0 %v2933
        %3259 = vmatprep.subr.bf16.mxu0 %v2938
        %3260 = vmatpush1.bf16.msra.mxu0 %v2937
        %3261 = vmatprep.subr.bf16.mxu0 %v2942
        %3262 = vmatpush1.bf16.msra.mxu0 %v2941
        %3263 = vmatprep.subr.bf16.mxu0 %v2946
        %3264 = vmatpush1.bf16.msra.mxu0 %v2945
        %3265 = vmatprep.subr.bf16.mxu0 %v2950
        %3266 = vmatpush1.bf16.msra.mxu0 %v2949
        %3267 = vmatprep.subr.bf16.mxu0 %v2954
        %3268 = vmatpush1.bf16.msra.mxu0 %v2953
        %3269 = vmatprep.subr.bf16.mxu0 %v2958
        %3270 = vmatpush1.bf16.msra.mxu0 %v2957
        %3271 = vmatprep.subr.bf16.mxu0 %v2962
        %3272 = vmatpush1.bf16.msra.mxu0 %v2961
        %3273 = vmatprep.subr.bf16.mxu0 %v2966
        %3274 = vmatpush1.bf16.msra.mxu0 %v2965
        %3275 = vmatprep.subr.bf16.mxu0 %v2970
        %3276 = vmatpush1.bf16.msra.mxu0 %v2969
        %3277 = vmatprep.mubr.bf16.mxu0 %v462
        %3278 = vmatmul.mubr.bf16.gmra.mrb[0].mxu0 %v461
        %v3279 = vpop.f32.mrb[0].mxu0
        %v3280 = vadd.f32 %v2514, %v3279
        %v3281 = vpop.f32.mrb[0].mxu0
        %v3282 = vadd.f32 %v2518, %v3281
        %v3283 = vpop.f32.mrb[0].mxu0
        %v3284 = vpop.f32.mrb[0].mxu0
        %3285 = vdwg.mxu0
        %3286 = vmatprep.subr.bf16.mxu0 %v2974
        %3287 = vmatpush1.bf16.msra.mxu0 %v2973
        %3288 = vmatprep.subr.bf16.mxu0 %v2978
        %3289 = vmatpush1.bf16.msra.mxu0 %v2977
        %3290 = vmatprep.subr.bf16.mxu0 %v2982
        %3291 = vmatpush1.bf16.msra.mxu0 %v2981
        %3292 = vmatprep.subr.bf16.mxu0 %v2986
        %3293 = vmatpush1.bf16.msra.mxu0 %v2985
        %3294 = vmatprep.subr.bf16.mxu0 %v2990
        %3295 = vmatpush1.bf16.msra.mxu0 %v2989
        %3296 = vmatprep.subr.bf16.mxu0 %v2994
        %3297 = vmatpush1.bf16.msra.mxu0 %v2993
        %3298 = vmatprep.subr.bf16.mxu0 %v2998
        %3299 = vmatpush1.bf16.msra.mxu0 %v2997
        %3300 = vmatprep.subr.bf16.mxu0 %v3002
        %3301 = vmatpush1.bf16.msra.mxu0 %v3001
        %3302 = vmatprep.subr.bf16.mxu0 %v3006
        %3303 = vmatpush1.bf16.msra.mxu0 %v3005
        %3304 = vmatprep.subr.bf16.mxu0 %v3010
        %3305 = vmatpush1.bf16.msra.mxu0 %v3009
        %3306 = vmatprep.subr.bf16.mxu0 %v3014
        %3307 = vmatpush1.bf16.msra.mxu0 %v3013
        %3308 = vmatprep.subr.bf16.mxu0 %v3018
        %3309 = vmatpush1.bf16.msra.mxu0 %v3017
        %3310 = vmatprep.subr.bf16.mxu0 %v3022
        %3311 = vmatpush1.bf16.msra.mxu0 %v3021
        %3312 = vmatprep.subr.bf16.mxu0 %v3026
        %3313 = vmatpush1.bf16.msra.mxu0 %v3025
        %3314 = vmatprep.subr.bf16.mxu0 %v3030
        %3315 = vmatpush1.bf16.msra.mxu0 %v3029
        %3316 = vmatprep.subr.bf16.mxu0 %v3034
        %3317 = vmatpush1.bf16.msra.mxu0 %v3033
        %3318 = vmatprep.mubr.bf16.mxu0 %v464
        %3319 = vmatmul.mubr.bf16.gmra.mrb[0].mxu0 %v463
        %v3320 = vpop.f32.mrb[0].mxu0
        %v3321 = vadd.f32 %v3280, %v3320
        %v3322 = vpop.f32.mrb[0].mxu0
        %v3323 = vadd.f32 %v3282, %v3322
        %v3324 = vpop.f32.mrb[0].mxu0
        %v3325 = vpop.f32.mrb[0].mxu0
        %3326 = vdwg.mxu0
        %v3327 = vpack.c.bf16 %v1331, %v1331
        %v3328 = vpack.c.bf16 %v1333, %v1333
        %v3329 = vpack.c.bf16 %v1413, %v1413
        %v3330 = vpack.c.bf16 %v1415, %v1415
        %v3331 = vpack.c.bf16 %v2285, %v2285
        %v3332 = vpack.c.bf16 %v2287, %v2287
        %v3333 = vpack.c.bf16 %v2367, %v2367
        %v3334 = vpack.c.bf16 %v2369, %v2369
        %v3335 = vpack.c.bf16 %v3239, %v3239
        %v3336 = vpack.c.bf16 %v3241, %v3241
        %v3337 = vpack.c.bf16 %v3321, %v3321
        %v3338 = vpack.c.bf16 %v3323, %v3323
        %vm3339 = vcmask 523264
        %v3341 = vsel %vm3339, %v3327, 0
        %v3344 = vsel %vm3339, %v3331, 0
        %3346 = vmatprep.subr.bf16.mxu0 0
        %3347 = vmatpush1.bf16.xpose.msra.mxu0 %v3344
        %3348 = vmatprep.subr.bf16.mxu0 0
        %3349 = vmatpush1.bf16.xpose.msra.mxu0 0
        %3350 = vmatprep.subr.bf16.mxu0 0
        %3351 = vmatpush1.bf16.xpose.msra.mxu0 0
        %3352 = vmatprep.subr.bf16.mxu0 0
        %3353 = vmatpush1.bf16.xpose.msra.mxu0 0
        %3354 = vmatprep.subr.bf16.mxu0 0
        %3355 = vmatpush1.bf16.xpose.msra.mxu0 0
        %3356 = vmatprep.subr.bf16.mxu0 0
        %3357 = vmatpush1.bf16.xpose.msra.mxu0 0
        %3358 = vmatprep.subr.bf16.mxu0 0
        %3359 = vmatpush1.bf16.xpose.msra.mxu0 0
        %3360 = vmatprep.subr.bf16.mxu0 0
        %3361 = vmatpush1.bf16.xpose.msra.mxu0 0
        %3362 = vmatprep.subr.bf16.mxu0 0
        %3363 = vmatpush1.bf16.xpose.msra.mxu0 0
        %3364 = vmatprep.subr.bf16.mxu0 0
        %3365 = vmatpush1.bf16.xpose.msra.mxu0 0
        %3366 = vmatprep.subr.bf16.mxu0 0
        %3367 = vmatpush1.bf16.xpose.msra.mxu0 0
        %3368 = vmatprep.subr.bf16.mxu0 0
        %3369 = vmatpush1.bf16.xpose.msra.mxu0 0
        %3370 = vmatprep.subr.bf16.mxu0 0
        %3371 = vmatpush1.bf16.xpose.msra.mxu0 0
        %3372 = vmatprep.subr.bf16.mxu0 0
        %3373 = vmatpush1.bf16.xpose.msra.mxu0 0
        %3374 = vmatprep.subr.bf16.mxu0 0
        %3375 = vmatpush1.bf16.xpose.msra.mxu0 0
        %3376 = vmatprep.subr.bf16.mxu0 0
        %3377 = vmatpush1.bf16.xpose.msra.mxu0 0
        %3378 = vmatprep.mubr.bf16.mxu0 0
        %3379 = vmatmul.mubr.bf16.gmra.mrb[0].mxu0 %v3341
        %v3380 = vpop.f32.mrb[0].mxu0
        %v3381 = vadd.f32 0.0, %v3380
        %v3382 = vpop.f32.mrb[0].mxu0
        %v3383 = vpop.f32.mrb[0].mxu0
        %v3384 = vpop.f32.mrb[0].mxu0
        %3385 = vdwg.mxu0
        %vm3386 = vcmask 64512
        %v3387 = vsel %vm3386, %v3381, -inf
        %3388 = vmax.xlane.f32.xlu0 %v3387
        %v3389 = vpop.xlane.xlu0 %3388
        %v3390 = vsub.f32 %v3381, %v3389
        %v3391 = vmul.f32 %v3390, 1.442695
        %v3392 = vpow.pop %v3391
        %v3393 = vsel %vm3386, %v3392, 0.0
        %3394 = vadd.xlane.f32.xlu0 %v3393
        %v3395 = vpop.xlane.xlu0 %3394
        %v3396 = vrcp.pop %v3395
        %v3397 = vpack.c.bf16 %v3392, %v3392
        %v3399 = vsel %vm3386, %v3397, 0
        %vm3401 = vcmask 1043456
        %v3403 = vsel %vm3401, %v3335, 0
        %3405 = vmatprep.subr.bf16.mxu0 0
        %3406 = vmatpush1.bf16.msra.mxu0 %v3403
        %3407 = vmatprep.subr.bf16.mxu0 0
        %3408 = vmatpush1.bf16.msra.mxu0 0
        %3409 = vmatprep.subr.bf16.mxu0 0
        %3410 = vmatpush1.bf16.msra.mxu0 0
        %3411 = vmatprep.subr.bf16.mxu0 0
        %3412 = vmatpush1.bf16.msra.mxu0 0
        %3413 = vmatprep.subr.bf16.mxu0 0
        %3414 = vmatpush1.bf16.msra.mxu0 0
        %3415 = vmatprep.subr.bf16.mxu0 0
        %3416 = vmatpush1.bf16.msra.mxu0 0
        %3417 = vmatprep.subr.bf16.mxu0 0
        %3418 = vmatpush1.bf16.msra.mxu0 0
        %3419 = vmatprep.subr.bf16.mxu0 0
        %3420 = vmatpush1.bf16.msra.mxu0 0
        %3421 = vmatprep.subr.bf16.mxu0 0
        %3422 = vmatpush1.bf16.msra.mxu0 0
        %3423 = vmatprep.subr.bf16.mxu0 0
        %3424 = vmatpush1.bf16.msra.mxu0 0
        %3425 = vmatprep.subr.bf16.mxu0 0
        %3426 = vmatpush1.bf16.msra.mxu0 0
        %3427 = vmatprep.subr.bf16.mxu0 0
        %3428 = vmatpush1.bf16.msra.mxu0 0
        %3429 = vmatprep.subr.bf16.mxu0 0
        %3430 = vmatpush1.bf16.msra.mxu0 0
        %3431 = vmatprep.subr.bf16.mxu0 0
        %3432 = vmatpush1.bf16.msra.mxu0 0
        %3433 = vmatprep.subr.bf16.mxu0 0
        %3434 = vmatpush1.bf16.msra.mxu0 0
        %3435 = vmatprep.subr.bf16.mxu0 0
        %3436 = vmatpush1.bf16.msra.mxu0 0
        %3437 = vmatprep.mubr.bf16.mxu0 0
        %3438 = vmatmul.mubr.bf16.gmra.mrb[0].mxu0 %v3399
        %v3439 = vpop.f32.mrb[0].mxu0
        %v3440 = vadd.f32 0.0, %v3439
        %v3441 = vpop.f32.mrb[0].mxu0
        %v3442 = vpop.f32.mrb[0].mxu0
        %v3443 = vpop.f32.mrb[0].mxu0
        %3444 = vdwg.mxu0
        %v3445 = vmul.f32 %v3440, %v3396
        %3447 = vrot.lane.b32.xlu0 %v3327, 64
        %v3448 = vpop.permute.xlu0 %3447
        %3450 = vrot.lane.b32.xlu0 %v3331, 64
        %v3451 = vpop.permute.xlu0 %3450
        %v3453 = vsel %vm3339, %v3448, 0
        %v3456 = vsel %vm3339, %v3451, 0
        %3458 = vmatprep.subr.bf16.mxu0 0
        %3459 = vmatpush1.bf16.xpose.msra.mxu0 %v3456
        %3460 = vmatprep.subr.bf16.mxu0 0
        %3461 = vmatpush1.bf16.xpose.msra.mxu0 0
        %3462 = vmatprep.subr.bf16.mxu0 0
        %3463 = vmatpush1.bf16.xpose.msra.mxu0 0
        %3464 = vmatprep.subr.bf16.mxu0 0
        %3465 = vmatpush1.bf16.xpose.msra.mxu0 0
        %3466 = vmatprep.subr.bf16.mxu0 0
        %3467 = vmatpush1.bf16.xpose.msra.mxu0 0
        %3468 = vmatprep.subr.bf16.mxu0 0
        %3469 = vmatpush1.bf16.xpose.msra.mxu0 0
        %3470 = vmatprep.subr.bf16.mxu0 0
        %3471 = vmatpush1.bf16.xpose.msra.mxu0 0
        %3472 = vmatprep.subr.bf16.mxu0 0
        %3473 = vmatpush1.bf16.xpose.msra.mxu0 0
        %3474 = vmatprep.subr.bf16.mxu0 0
        %3475 = vmatpush1.bf16.xpose.msra.mxu0 0
        %3476 = vmatprep.subr.bf16.mxu0 0
        %3477 = vmatpush1.bf16.xpose.msra.mxu0 0
        %3478 = vmatprep.subr.bf16.mxu0 0
        %3479 = vmatpush1.bf16.xpose.msra.mxu0 0
        %3480 = vmatprep.subr.bf16.mxu0 0
        %3481 = vmatpush1.bf16.xpose.msra.mxu0 0
        %3482 = vmatprep.subr.bf16.mxu0 0
        %3483 = vmatpush1.bf16.xpose.msra.mxu0 0
        %3484 = vmatprep.subr.bf16.mxu0 0
        %3485 = vmatpush1.bf16.xpose.msra.mxu0 0
        %3486 = vmatprep.subr.bf16.mxu0 0
        %3487 = vmatpush1.bf16.xpose.msra.mxu0 0
        %3488 = vmatprep.subr.bf16.mxu0 0
        %3489 = vmatpush1.bf16.xpose.msra.mxu0 0
        %3490 = vmatprep.mubr.bf16.mxu0 0
        %3491 = vmatmul.mubr.bf16.gmra.mrb[0].mxu0 %v3453
        %v3492 = vpop.f32.mrb[0].mxu0
        %v3493 = vadd.f32 0.0, %v3492
        %v3494 = vpop.f32.mrb[0].mxu0
        %v3495 = vpop.f32.mrb[0].mxu0
        %v3496 = vpop.f32.mrb[0].mxu0
        %3497 = vdwg.mxu0
        %v3498 = vsel %vm3386, %v3493, -inf
        %3499 = vmax.xlane.f32.xlu0 %v3498
        %v3500 = vpop.xlane.xlu0 %3499
        %v3501 = vsub.f32 %v3493, %v3500
        %v3502 = vmul.f32 %v3501, 1.442695
        %v3503 = vpow.pop %v3502
        %v3504 = vsel %vm3386, %v3503, 0.0
        %3505 = vadd.xlane.f32.xlu0 %v3504
        %v3506 = vpop.xlane.xlu0 %3505
        %v3507 = vrcp.pop %v3506
        %v3508 = vpack.c.bf16 %v3503, %v3503
        %3510 = vrot.lane.b32.xlu0 %v3335, 64
        %v3511 = vpop.permute.xlu0 %3510
        %v3513 = vsel %vm3386, %v3508, 0
        %v3516 = vsel %vm3401, %v3511, 0
        %3518 = vmatprep.subr.bf16.mxu0 0
        %3519 = vmatpush1.bf16.msra.mxu0 %v3516
        %3520 = vmatprep.subr.bf16.mxu0 0
        %3521 = vmatpush1.bf16.msra.mxu0 0
        %3522 = vmatprep.subr.bf16.mxu0 0
        %3523 = vmatpush1.bf16.msra.mxu0 0
        %3524 = vmatprep.subr.bf16.mxu0 0
        %3525 = vmatpush1.bf16.msra.mxu0 0
        %3526 = vmatprep.subr.bf16.mxu0 0
        %3527 = vmatpush1.bf16.msra.mxu0 0
        %3528 = vmatprep.subr.bf16.mxu0 0
        %3529 = vmatpush1.bf16.msra.mxu0 0
        %3530 = vmatprep.subr.bf16.mxu0 0
        %3531 = vmatpush1.bf16.msra.mxu0 0
        %3532 = vmatprep.subr.bf16.mxu0 0
        %3533 = vmatpush1.bf16.msra.mxu0 0
        %3534 = vmatprep.subr.bf16.mxu0 0
        %3535 = vmatpush1.bf16.msra.mxu0 0
        %3536 = vmatprep.subr.bf16.mxu0 0
        %3537 = vmatpush1.bf16.msra.mxu0 0
        %3538 = vmatprep.subr.bf16.mxu0 0
        %3539 = vmatpush1.bf16.msra.mxu0 0
        %3540 = vmatprep.subr.bf16.mxu0 0
        %3541 = vmatpush1.bf16.msra.mxu0 0
        %3542 = vmatprep.subr.bf16.mxu0 0
        %3543 = vmatpush1.bf16.msra.mxu0 0
        %3544 = vmatprep.subr.bf16.mxu0 0
        %3545 = vmatpush1.bf16.msra.mxu0 0
        %3546 = vmatprep.subr.bf16.mxu0 0
        %3547 = vmatpush1.bf16.msra.mxu0 0
        %3548 = vmatprep.subr.bf16.mxu0 0
        %3549 = vmatpush1.bf16.msra.mxu0 0
        %3550 = vmatprep.mubr.bf16.mxu0 0
        %3551 = vmatmul.mubr.bf16.gmra.mrb[0].mxu0 %v3513
        %v3552 = vpop.f32.mrb[0].mxu0
        %v3553 = vadd.f32 0.0, %v3552
        %v3554 = vpop.f32.mrb[0].mxu0
        %v3555 = vpop.f32.mrb[0].mxu0
        %v3556 = vpop.f32.mrb[0].mxu0
        %3557 = vdwg.mxu0
        %v3558 = vmul.f32 %v3553, %v3507
        %3560 = vrot.lane.b32.xlu0 %v3558, 64
        %v3561 = vpop.permute.xlu0 %3560
        %v3563 = vsel %vm3339, %v3445, %v3561
        %3564 = vst [vmem:[#allocation2] sm:$0xff] %v3563
        %v3566 = vsel %vm3339, %v3328, 0
        %v3569 = vsel %vm3339, %v3332, 0
        %3571 = vmatprep.subr.bf16.mxu0 0
        %3572 = vmatpush1.bf16.xpose.msra.mxu0 %v3569
        %3573 = vmatprep.subr.bf16.mxu0 0
        %3574 = vmatpush1.bf16.xpose.msra.mxu0 0
        %3575 = vmatprep.subr.bf16.mxu0 0
        %3576 = vmatpush1.bf16.xpose.msra.mxu0 0
        %3577 = vmatprep.subr.bf16.mxu0 0
        %3578 = vmatpush1.bf16.xpose.msra.mxu0 0
        %3579 = vmatprep.subr.bf16.mxu0 0
        %3580 = vmatpush1.bf16.xpose.msra.mxu0 0
        %3581 = vmatprep.subr.bf16.mxu0 0
        %3582 = vmatpush1.bf16.xpose.msra.mxu0 0
        %3583 = vmatprep.subr.bf16.mxu0 0
        %3584 = vmatpush1.bf16.xpose.msra.mxu0 0
        %3585 = vmatprep.subr.bf16.mxu0 0
        %3586 = vmatpush1.bf16.xpose.msra.mxu0 0
        %3587 = vmatprep.subr.bf16.mxu0 0
        %3588 = vmatpush1.bf16.xpose.msra.mxu0 0
        %3589 = vmatprep.subr.bf16.mxu0 0
        %3590 = vmatpush1.bf16.xpose.msra.mxu0 0
        %3591 = vmatprep.subr.bf16.mxu0 0
        %3592 = vmatpush1.bf16.xpose.msra.mxu0 0
        %3593 = vmatprep.subr.bf16.mxu0 0
        %3594 = vmatpush1.bf16.xpose.msra.mxu0 0
        %3595 = vmatprep.subr.bf16.mxu0 0
        %3596 = vmatpush1.bf16.xpose.msra.mxu0 0
        %3597 = vmatprep.subr.bf16.mxu0 0
        %3598 = vmatpush1.bf16.xpose.msra.mxu0 0
        %3599 = vmatprep.subr.bf16.mxu0 0
        %3600 = vmatpush1.bf16.xpose.msra.mxu0 0
        %3601 = vmatprep.subr.bf16.mxu0 0
        %3602 = vmatpush1.bf16.xpose.msra.mxu0 0
        %3603 = vmatprep.mubr.bf16.mxu0 0
        %3604 = vmatmul.mubr.bf16.gmra.mrb[0].mxu0 %v3566
        %v3605 = vpop.f32.mrb[0].mxu0
        %v3606 = vadd.f32 0.0, %v3605
        %v3607 = vpop.f32.mrb[0].mxu0
        %v3608 = vpop.f32.mrb[0].mxu0
        %v3609 = vpop.f32.mrb[0].mxu0
        %3610 = vdwg.mxu0
        %v3611 = vsel %vm3386, %v3606, -inf
        %3612 = vmax.xlane.f32.xlu0 %v3611
        %v3613 = vpop.xlane.xlu0 %3612
        %v3614 = vsub.f32 %v3606, %v3613
        %v3615 = vmul.f32 %v3614, 1.442695
        %v3616 = vpow.pop %v3615
        %v3617 = vsel %vm3386, %v3616, 0.0
        %3618 = vadd.xlane.f32.xlu0 %v3617
        %v3619 = vpop.xlane.xlu0 %3618
        %v3620 = vrcp.pop %v3619
        %v3621 = vpack.c.bf16 %v3616, %v3616
        %v3623 = vsel %vm3386, %v3621, 0
        %v3626 = vsel %vm3401, %v3336, 0
        %3628 = vmatprep.subr.bf16.mxu0 0
        %3629 = vmatpush1.bf16.msra.mxu0 %v3626
        %3630 = vmatprep.subr.bf16.mxu0 0
        %3631 = vmatpush1.bf16.msra.mxu0 0
        %3632 = vmatprep.subr.bf16.mxu0 0
        %3633 = vmatpush1.bf16.msra.mxu0 0
        %3634 = vmatprep.subr.bf16.mxu0 0
        %3635 = vmatpush1.bf16.msra.mxu0 0
        %3636 = vmatprep.subr.bf16.mxu0 0
        %3637 = vmatpush1.bf16.msra.mxu0 0
        %3638 = vmatprep.subr.bf16.mxu0 0
        %3639 = vmatpush1.bf16.msra.mxu0 0
        %3640 = vmatprep.subr.bf16.mxu0 0
        %3641 = vmatpush1.bf16.msra.mxu0 0
        %3642 = vmatprep.subr.bf16.mxu0 0
        %3643 = vmatpush1.bf16.msra.mxu0 0
        %3644 = vmatprep.subr.bf16.mxu0 0
        %3645 = vmatpush1.bf16.msra.mxu0 0
        %3646 = vmatprep.subr.bf16.mxu0 0
        %3647 = vmatpush1.bf16.msra.mxu0 0
        %3648 = vmatprep.subr.bf16.mxu0 0
        %3649 = vmatpush1.bf16.msra.mxu0 0
        %3650 = vmatprep.subr.bf16.mxu0 0
        %3651 = vmatpush1.bf16.msra.mxu0 0
        %3652 = vmatprep.subr.bf16.mxu0 0
        %3653 = vmatpush1.bf16.msra.mxu0 0
        %3654 = vmatprep.subr.bf16.mxu0 0
        %3655 = vmatpush1.bf16.msra.mxu0 0
        %3656 = vmatprep.subr.bf16.mxu0 0
        %3657 = vmatpush1.bf16.msra.mxu0 0
        %3658 = vmatprep.subr.bf16.mxu0 0
        %3659 = vmatpush1.bf16.msra.mxu0 0
        %3660 = vmatprep.mubr.bf16.mxu0 0
        %3661 = vmatmul.mubr.bf16.gmra.mrb[0].mxu0 %v3623
        %v3662 = vpop.f32.mrb[0].mxu0
        %v3663 = vadd.f32 0.0, %v3662
        %v3664 = vpop.f32.mrb[0].mxu0
        %v3665 = vpop.f32.mrb[0].mxu0
        %v3666 = vpop.f32.mrb[0].mxu0
        %3667 = vdwg.mxu0
        %v3668 = vmul.f32 %v3663, %v3620
        %3670 = vrot.lane.b32.xlu0 %v3328, 64
        %v3671 = vpop.permute.xlu0 %3670
        %3673 = vrot.lane.b32.xlu0 %v3332, 64
        %v3674 = vpop.permute.xlu0 %3673
        %v3676 = vsel %vm3339, %v3671, 0
        %v3679 = vsel %vm3339, %v3674, 0
        %3681 = vmatprep.subr.bf16.mxu0 0
        %3682 = vmatpush1.bf16.xpose.msra.mxu0 %v3679
        %3683 = vmatprep.subr.bf16.mxu0 0
        %3684 = vmatpush1.bf16.xpose.msra.mxu0 0
        %3685 = vmatprep.subr.bf16.mxu0 0
        %3686 = vmatpush1.bf16.xpose.msra.mxu0 0
        %3687 = vmatprep.subr.bf16.mxu0 0
        %3688 = vmatpush1.bf16.xpose.msra.mxu0 0
        %3689 = vmatprep.subr.bf16.mxu0 0
        %3690 = vmatpush1.bf16.xpose.msra.mxu0 0
        %3691 = vmatprep.subr.bf16.mxu0 0
        %3692 = vmatpush1.bf16.xpose.msra.mxu0 0
        %3693 = vmatprep.subr.bf16.mxu0 0
        %3694 = vmatpush1.bf16.xpose.msra.mxu0 0
        %3695 = vmatprep.subr.bf16.mxu0 0
        %3696 = vmatpush1.bf16.xpose.msra.mxu0 0
        %3697 = vmatprep.subr.bf16.mxu0 0
        %3698 = vmatpush1.bf16.xpose.msra.mxu0 0
        %3699 = vmatprep.subr.bf16.mxu0 0
        %3700 = vmatpush1.bf16.xpose.msra.mxu0 0
        %3701 = vmatprep.subr.bf16.mxu0 0
        %3702 = vmatpush1.bf16.xpose.msra.mxu0 0
        %3703 = vmatprep.subr.bf16.mxu0 0
        %3704 = vmatpush1.bf16.xpose.msra.mxu0 0
        %3705 = vmatprep.subr.bf16.mxu0 0
        %3706 = vmatpush1.bf16.xpose.msra.mxu0 0
        %3707 = vmatprep.subr.bf16.mxu0 0
        %3708 = vmatpush1.bf16.xpose.msra.mxu0 0
        %3709 = vmatprep.subr.bf16.mxu0 0
        %3710 = vmatpush1.bf16.xpose.msra.mxu0 0
        %3711 = vmatprep.subr.bf16.mxu0 0
        %3712 = vmatpush1.bf16.xpose.msra.mxu0 0
        %3713 = vmatprep.mubr.bf16.mxu0 0
        %3714 = vmatmul.mubr.bf16.gmra.mrb[0].mxu0 %v3676
        %v3715 = vpop.f32.mrb[0].mxu0
        %v3716 = vadd.f32 0.0, %v3715
        %v3717 = vpop.f32.mrb[0].mxu0
        %v3718 = vpop.f32.mrb[0].mxu0
        %v3719 = vpop.f32.mrb[0].mxu0
        %3720 = vdwg.mxu0
        %v3721 = vsel %vm3386, %v3716, -inf
        %3722 = vmax.xlane.f32.xlu0 %v3721
        %v3723 = vpop.xlane.xlu0 %3722
        %v3724 = vsub.f32 %v3716, %v3723
        %v3725 = vmul.f32 %v3724, 1.442695
        %v3726 = vpow.pop %v3725
        %v3727 = vsel %vm3386, %v3726, 0.0
        %3728 = vadd.xlane.f32.xlu0 %v3727
        %v3729 = vpop.xlane.xlu0 %3728
        %v3730 = vrcp.pop %v3729
        %v3731 = vpack.c.bf16 %v3726, %v3726
        %3733 = vrot.lane.b32.xlu0 %v3336, 64
        %v3734 = vpop.permute.xlu0 %3733
        %v3736 = vsel %vm3386, %v3731, 0
        %v3739 = vsel %vm3401, %v3734, 0
        %3741 = vmatprep.subr.bf16.mxu0 0
        %3742 = vmatpush1.bf16.msra.mxu0 %v3739
        %3743 = vmatprep.subr.bf16.mxu0 0
        %3744 = vmatpush1.bf16.msra.mxu0 0
        %3745 = vmatprep.subr.bf16.mxu0 0
        %3746 = vmatpush1.bf16.msra.mxu0 0
        %3747 = vmatprep.subr.bf16.mxu0 0
        %3748 = vmatpush1.bf16.msra.mxu0 0
        %3749 = vmatprep.subr.bf16.mxu0 0
        %3750 = vmatpush1.bf16.msra.mxu0 0
        %3751 = vmatprep.subr.bf16.mxu0 0
        %3752 = vmatpush1.bf16.msra.mxu0 0
        %3753 = vmatprep.subr.bf16.mxu0 0
        %3754 = vmatpush1.bf16.msra.mxu0 0
        %3755 = vmatprep.subr.bf16.mxu0 0
        %3756 = vmatpush1.bf16.msra.mxu0 0
        %3757 = vmatprep.subr.bf16.mxu0 0
        %3758 = vmatpush1.bf16.msra.mxu0 0
        %3759 = vmatprep.subr.bf16.mxu0 0
        %3760 = vmatpush1.bf16.msra.mxu0 0
        %3761 = vmatprep.subr.bf16.mxu0 0
        %3762 = vmatpush1.bf16.msra.mxu0 0
        %3763 = vmatprep.subr.bf16.mxu0 0
        %3764 = vmatpush1.bf16.msra.mxu0 0
        %3765 = vmatprep.subr.bf16.mxu0 0
        %3766 = vmatpush1.bf16.msra.mxu0 0
        %3767 = vmatprep.subr.bf16.mxu0 0
        %3768 = vmatpush1.bf16.msra.mxu0 0
        %3769 = vmatprep.subr.bf16.mxu0 0
        %3770 = vmatpush1.bf16.msra.mxu0 0
        %3771 = vmatprep.subr.bf16.mxu0 0
        %3772 = vmatpush1.bf16.msra.mxu0 0
        %3773 = vmatprep.mubr.bf16.mxu0 0
        %3774 = vmatmul.mubr.bf16.gmra.mrb[0].mxu0 %v3736
        %v3775 = vpop.f32.mrb[0].mxu0
        %v3776 = vadd.f32 0.0, %v3775
        %v3777 = vpop.f32.mrb[0].mxu0
        %v3778 = vpop.f32.mrb[0].mxu0
        %v3779 = vpop.f32.mrb[0].mxu0
        %3780 = vdwg.mxu0
        %v3781 = vmul.f32 %v3776, %v3730
        %3783 = vrot.lane.b32.xlu0 %v3781, 64
        %v3784 = vpop.permute.xlu0 %3783
        %v3786 = vsel %vm3339, %v3668, %v3784
        %3787 = vst [vmem:[#allocation2 + $0x8] sm:$0xff] %v3786
        %v3789 = vsel %vm3339, %v3329, 0
        %v3792 = vsel %vm3339, %v3333, 0
        %3794 = vmatprep.subr.bf16.mxu0 0
        %3795 = vmatpush1.bf16.xpose.msra.mxu0 %v3792
        %3796 = vmatprep.subr.bf16.mxu0 0
        %3797 = vmatpush1.bf16.xpose.msra.mxu0 0
        %3798 = vmatprep.subr.bf16.mxu0 0
        %3799 = vmatpush1.bf16.xpose.msra.mxu0 0
        %3800 = vmatprep.subr.bf16.mxu0 0
        %3801 = vmatpush1.bf16.xpose.msra.mxu0 0
        %3802 = vmatprep.subr.bf16.mxu0 0
        %3803 = vmatpush1.bf16.xpose.msra.mxu0 0
        %3804 = vmatprep.subr.bf16.mxu0 0
        %3805 = vmatpush1.bf16.xpose.msra.mxu0 0
        %3806 = vmatprep.subr.bf16.mxu0 0
        %3807 = vmatpush1.bf16.xpose.msra.mxu0 0
        %3808 = vmatprep.subr.bf16.mxu0 0
        %3809 = vmatpush1.bf16.xpose.msra.mxu0 0
        %3810 = vmatprep.subr.bf16.mxu0 0
        %3811 = vmatpush1.bf16.xpose.msra.mxu0 0
        %3812 = vmatprep.subr.bf16.mxu0 0
        %3813 = vmatpush1.bf16.xpose.msra.mxu0 0
        %3814 = vmatprep.subr.bf16.mxu0 0
        %3815 = vmatpush1.bf16.xpose.msra.mxu0 0
        %3816 = vmatprep.subr.bf16.mxu0 0
        %3817 = vmatpush1.bf16.xpose.msra.mxu0 0
        %3818 = vmatprep.subr.bf16.mxu0 0
        %3819 = vmatpush1.bf16.xpose.msra.mxu0 0
        %3820 = vmatprep.subr.bf16.mxu0 0
        %3821 = vmatpush1.bf16.xpose.msra.mxu0 0
        %3822 = vmatprep.subr.bf16.mxu0 0
        %3823 = vmatpush1.bf16.xpose.msra.mxu0 0
        %3824 = vmatprep.subr.bf16.mxu0 0
        %3825 = vmatpush1.bf16.xpose.msra.mxu0 0
        %3826 = vmatprep.mubr.bf16.mxu0 0
        %3827 = vmatmul.mubr.bf16.gmra.mrb[0].mxu0 %v3789
        %v3828 = vpop.f32.mrb[0].mxu0
        %v3829 = vadd.f32 0.0, %v3828
        %v3830 = vpop.f32.mrb[0].mxu0
        %v3831 = vpop.f32.mrb[0].mxu0
        %v3832 = vpop.f32.mrb[0].mxu0
        %3833 = vdwg.mxu0
        %v3834 = vsel %vm3386, %v3829, -inf
        %3835 = vmax.xlane.f32.xlu0 %v3834
        %v3836 = vpop.xlane.xlu0 %3835
        %v3837 = vsub.f32 %v3829, %v3836
        %v3838 = vmul.f32 %v3837, 1.442695
        %v3839 = vpow.pop %v3838
        %v3840 = vsel %vm3386, %v3839, 0.0
        %3841 = vadd.xlane.f32.xlu0 %v3840
        %v3842 = vpop.xlane.xlu0 %3841
        %v3843 = vrcp.pop %v3842
        %v3844 = vpack.c.bf16 %v3839, %v3839
        %v3846 = vsel %vm3386, %v3844, 0
        %v3849 = vsel %vm3401, %v3337, 0
        %3851 = vmatprep.subr.bf16.mxu0 0
        %3852 = vmatpush1.bf16.msra.mxu0 %v3849
        %3853 = vmatprep.subr.bf16.mxu0 0
        %3854 = vmatpush1.bf16.msra.mxu0 0
        %3855 = vmatprep.subr.bf16.mxu0 0
        %3856 = vmatpush1.bf16.msra.mxu0 0
        %3857 = vmatprep.subr.bf16.mxu0 0
        %3858 = vmatpush1.bf16.msra.mxu0 0
        %3859 = vmatprep.subr.bf16.mxu0 0
        %3860 = vmatpush1.bf16.msra.mxu0 0
        %3861 = vmatprep.subr.bf16.mxu0 0
        %3862 = vmatpush1.bf16.msra.mxu0 0
        %3863 = vmatprep.subr.bf16.mxu0 0
        %3864 = vmatpush1.bf16.msra.mxu0 0
        %3865 = vmatprep.subr.bf16.mxu0 0
        %3866 = vmatpush1.bf16.msra.mxu0 0
        %3867 = vmatprep.subr.bf16.mxu0 0
        %3868 = vmatpush1.bf16.msra.mxu0 0
        %3869 = vmatprep.subr.bf16.mxu0 0
        %3870 = vmatpush1.bf16.msra.mxu0 0
        %3871 = vmatprep.subr.bf16.mxu0 0
        %3872 = vmatpush1.bf16.msra.mxu0 0
        %3873 = vmatprep.subr.bf16.mxu0 0
        %3874 = vmatpush1.bf16.msra.mxu0 0
        %3875 = vmatprep.subr.bf16.mxu0 0
        %3876 = vmatpush1.bf16.msra.mxu0 0
        %3877 = vmatprep.subr.bf16.mxu0 0
        %3878 = vmatpush1.bf16.msra.mxu0 0
        %3879 = vmatprep.subr.bf16.mxu0 0
        %3880 = vmatpush1.bf16.msra.mxu0 0
        %3881 = vmatprep.subr.bf16.mxu0 0
        %3882 = vmatpush1.bf16.msra.mxu0 0
        %3883 = vmatprep.mubr.bf16.mxu0 0
        %3884 = vmatmul.mubr.bf16.gmra.mrb[0].mxu0 %v3846
        %v3885 = vpop.f32.mrb[0].mxu0
        %v3886 = vadd.f32 0.0, %v3885
        %v3887 = vpop.f32.mrb[0].mxu0
        %v3888 = vpop.f32.mrb[0].mxu0
        %v3889 = vpop.f32.mrb[0].mxu0
        %3890 = vdwg.mxu0
        %v3891 = vmul.f32 %v3886, %v3843
        %3893 = vrot.lane.b32.xlu0 %v3329, 64
        %v3894 = vpop.permute.xlu0 %3893
        %3896 = vrot.lane.b32.xlu0 %v3333, 64
        %v3897 = vpop.permute.xlu0 %3896
        %v3899 = vsel %vm3339, %v3894, 0
        %v3902 = vsel %vm3339, %v3897, 0
        %3904 = vmatprep.subr.bf16.mxu0 0
        %3905 = vmatpush1.bf16.xpose.msra.mxu0 %v3902
        %3906 = vmatprep.subr.bf16.mxu0 0
        %3907 = vmatpush1.bf16.xpose.msra.mxu0 0
        %3908 = vmatprep.subr.bf16.mxu0 0
        %3909 = vmatpush1.bf16.xpose.msra.mxu0 0
        %3910 = vmatprep.subr.bf16.mxu0 0
        %3911 = vmatpush1.bf16.xpose.msra.mxu0 0
        %3912 = vmatprep.subr.bf16.mxu0 0
        %3913 = vmatpush1.bf16.xpose.msra.mxu0 0
        %3914 = vmatprep.subr.bf16.mxu0 0
        %3915 = vmatpush1.bf16.xpose.msra.mxu0 0
        %3916 = vmatprep.subr.bf16.mxu0 0
        %3917 = vmatpush1.bf16.xpose.msra.mxu0 0
        %3918 = vmatprep.subr.bf16.mxu0 0
        %3919 = vmatpush1.bf16.xpose.msra.mxu0 0
        %3920 = vmatprep.subr.bf16.mxu0 0
        %3921 = vmatpush1.bf16.xpose.msra.mxu0 0
        %3922 = vmatprep.subr.bf16.mxu0 0
        %3923 = vmatpush1.bf16.xpose.msra.mxu0 0
        %3924 = vmatprep.subr.bf16.mxu0 0
        %3925 = vmatpush1.bf16.xpose.msra.mxu0 0
        %3926 = vmatprep.subr.bf16.mxu0 0
        %3927 = vmatpush1.bf16.xpose.msra.mxu0 0
        %3928 = vmatprep.subr.bf16.mxu0 0
        %3929 = vmatpush1.bf16.xpose.msra.mxu0 0
        %3930 = vmatprep.subr.bf16.mxu0 0
        %3931 = vmatpush1.bf16.xpose.msra.mxu0 0
        %3932 = vmatprep.subr.bf16.mxu0 0
        %3933 = vmatpush1.bf16.xpose.msra.mxu0 0
        %3934 = vmatprep.subr.bf16.mxu0 0
        %3935 = vmatpush1.bf16.xpose.msra.mxu0 0
        %3936 = vmatprep.mubr.bf16.mxu0 0
        %3937 = vmatmul.mubr.bf16.gmra.mrb[0].mxu0 %v3899
        %v3938 = vpop.f32.mrb[0].mxu0
        %v3939 = vadd.f32 0.0, %v3938
        %v3940 = vpop.f32.mrb[0].mxu0
        %v3941 = vpop.f32.mrb[0].mxu0
        %v3942 = vpop.f32.mrb[0].mxu0
        %3943 = vdwg.mxu0
        %v3944 = vsel %vm3386, %v3939, -inf
        %3945 = vmax.xlane.f32.xlu0 %v3944
        %v3946 = vpop.xlane.xlu0 %3945
        %v3947 = vsub.f32 %v3939, %v3946
        %v3948 = vmul.f32 %v3947, 1.442695
        %v3949 = vpow.pop %v3948
        %v3950 = vsel %vm3386, %v3949, 0.0
        %3951 = vadd.xlane.f32.xlu0 %v3950
        %v3952 = vpop.xlane.xlu0 %3951
        %v3953 = vrcp.pop %v3952
        %v3954 = vpack.c.bf16 %v3949, %v3949
        %3956 = vrot.lane.b32.xlu0 %v3337, 64
        %v3957 = vpop.permute.xlu0 %3956
        %v3959 = vsel %vm3386, %v3954, 0
        %v3962 = vsel %vm3401, %v3957, 0
        %3964 = vmatprep.subr.bf16.mxu0 0
        %3965 = vmatpush1.bf16.msra.mxu0 %v3962
        %3966 = vmatprep.subr.bf16.mxu0 0
        %3967 = vmatpush1.bf16.msra.mxu0 0
        %3968 = vmatprep.subr.bf16.mxu0 0
        %3969 = vmatpush1.bf16.msra.mxu0 0
        %3970 = vmatprep.subr.bf16.mxu0 0
        %3971 = vmatpush1.bf16.msra.mxu0 0
        %3972 = vmatprep.subr.bf16.mxu0 0
        %3973 = vmatpush1.bf16.msra.mxu0 0
        %3974 = vmatprep.subr.bf16.mxu0 0
        %3975 = vmatpush1.bf16.msra.mxu0 0
        %3976 = vmatprep.subr.bf16.mxu0 0
        %3977 = vmatpush1.bf16.msra.mxu0 0
        %3978 = vmatprep.subr.bf16.mxu0 0
        %3979 = vmatpush1.bf16.msra.mxu0 0
        %3980 = vmatprep.subr.bf16.mxu0 0
        %3981 = vmatpush1.bf16.msra.mxu0 0
        %3982 = vmatprep.subr.bf16.mxu0 0
        %3983 = vmatpush1.bf16.msra.mxu0 0
        %3984 = vmatprep.subr.bf16.mxu0 0
        %3985 = vmatpush1.bf16.msra.mxu0 0
        %3986 = vmatprep.subr.bf16.mxu0 0
        %3987 = vmatpush1.bf16.msra.mxu0 0
        %3988 = vmatprep.subr.bf16.mxu0 0
        %3989 = vmatpush1.bf16.msra.mxu0 0
        %3990 = vmatprep.subr.bf16.mxu0 0
        %3991 = vmatpush1.bf16.msra.mxu0 0
        %3992 = vmatprep.subr.bf16.mxu0 0
        %3993 = vmatpush1.bf16.msra.mxu0 0
        %3994 = vmatprep.subr.bf16.mxu0 0
        %3995 = vmatpush1.bf16.msra.mxu0 0
        %3996 = vmatprep.mubr.bf16.mxu0 0
        %3997 = vmatmul.mubr.bf16.gmra.mrb[0].mxu0 %v3959
        %v3998 = vpop.f32.mrb[0].mxu0
        %v3999 = vadd.f32 0.0, %v3998
        %v4000 = vpop.f32.mrb[0].mxu0
        %v4001 = vpop.f32.mrb[0].mxu0
        %v4002 = vpop.f32.mrb[0].mxu0
        %4003 = vdwg.mxu0
        %v4004 = vmul.f32 %v3999, %v3953
        %4006 = vrot.lane.b32.xlu0 %v4004, 64
        %v4007 = vpop.permute.xlu0 %4006
        %v4009 = vsel %vm3339, %v3891, %v4007
        %4010 = vst [vmem:[#allocation2 + $0x10] sm:$0xff] %v4009
        %v4012 = vsel %vm3339, %v3330, 0
        %v4015 = vsel %vm3339, %v3334, 0
        %4017 = vmatprep.subr.bf16.mxu0 0
        %4018 = vmatpush1.bf16.xpose.msra.mxu0 %v4015
        %4019 = vmatprep.subr.bf16.mxu0 0
        %4020 = vmatpush1.bf16.xpose.msra.mxu0 0
        %4021 = vmatprep.subr.bf16.mxu0 0
        %4022 = vmatpush1.bf16.xpose.msra.mxu0 0
        %4023 = vmatprep.subr.bf16.mxu0 0
        %4024 = vmatpush1.bf16.xpose.msra.mxu0 0
        %4025 = vmatprep.subr.bf16.mxu0 0
        %4026 = vmatpush1.bf16.xpose.msra.mxu0 0
        %4027 = vmatprep.subr.bf16.mxu0 0
        %4028 = vmatpush1.bf16.xpose.msra.mxu0 0
        %4029 = vmatprep.subr.bf16.mxu0 0
        %4030 = vmatpush1.bf16.xpose.msra.mxu0 0
        %4031 = vmatprep.subr.bf16.mxu0 0
        %4032 = vmatpush1.bf16.xpose.msra.mxu0 0
        %4033 = vmatprep.subr.bf16.mxu0 0
        %4034 = vmatpush1.bf16.xpose.msra.mxu0 0
        %4035 = vmatprep.subr.bf16.mxu0 0
        %4036 = vmatpush1.bf16.xpose.msra.mxu0 0
        %4037 = vmatprep.subr.bf16.mxu0 0
        %4038 = vmatpush1.bf16.xpose.msra.mxu0 0
        %4039 = vmatprep.subr.bf16.mxu0 0
        %4040 = vmatpush1.bf16.xpose.msra.mxu0 0
        %4041 = vmatprep.subr.bf16.mxu0 0
        %4042 = vmatpush1.bf16.xpose.msra.mxu0 0
        %4043 = vmatprep.subr.bf16.mxu0 0
        %4044 = vmatpush1.bf16.xpose.msra.mxu0 0
        %4045 = vmatprep.subr.bf16.mxu0 0
        %4046 = vmatpush1.bf16.xpose.msra.mxu0 0
        %4047 = vmatprep.subr.bf16.mxu0 0
        %4048 = vmatpush1.bf16.xpose.msra.mxu0 0
        %4049 = vmatprep.mubr.bf16.mxu0 0
        %4050 = vmatmul.mubr.bf16.gmra.mrb[0].mxu0 %v4012
        %v4051 = vpop.f32.mrb[0].mxu0
        %v4052 = vadd.f32 0.0, %v4051
        %v4053 = vpop.f32.mrb[0].mxu0
        %v4054 = vpop.f32.mrb[0].mxu0
        %v4055 = vpop.f32.mrb[0].mxu0
        %4056 = vdwg.mxu0
        %v4057 = vsel %vm3386, %v4052, -inf
        %4058 = vmax.xlane.f32.xlu0 %v4057
        %v4059 = vpop.xlane.xlu0 %4058
        %v4060 = vsub.f32 %v4052, %v4059
        %v4061 = vmul.f32 %v4060, 1.442695
        %v4062 = vpow.pop %v4061
        %v4063 = vsel %vm3386, %v4062, 0.0
        %4064 = vadd.xlane.f32.xlu0 %v4063
        %v4065 = vpop.xlane.xlu0 %4064
        %v4066 = vrcp.pop %v4065
        %v4067 = vpack.c.bf16 %v4062, %v4062
        %v4069 = vsel %vm3386, %v4067, 0
        %v4072 = vsel %vm3401, %v3338, 0
        %4074 = vmatprep.subr.bf16.mxu0 0
        %4075 = vmatpush1.bf16.msra.mxu0 %v4072
        %4076 = vmatprep.subr.bf16.mxu0 0
        %4077 = vmatpush1.bf16.msra.mxu0 0
        %4078 = vmatprep.subr.bf16.mxu0 0
        %4079 = vmatpush1.bf16.msra.mxu0 0
        %4080 = vmatprep.subr.bf16.mxu0 0
        %4081 = vmatpush1.bf16.msra.mxu0 0
        %4082 = vmatprep.subr.bf16.mxu0 0
        %4083 = vmatpush1.bf16.msra.mxu0 0
        %4084 = vmatprep.subr.bf16.mxu0 0
        %4085 = vmatpush1.bf16.msra.mxu0 0
        %4086 = vmatprep.subr.bf16.mxu0 0
        %4087 = vmatpush1.bf16.msra.mxu0 0
        %4088 = vmatprep.subr.bf16.mxu0 0
        %4089 = vmatpush1.bf16.msra.mxu0 0
        %4090 = vmatprep.subr.bf16.mxu0 0
        %4091 = vmatpush1.bf16.msra.mxu0 0
        %4092 = vmatprep.subr.bf16.mxu0 0
        %4093 = vmatpush1.bf16.msra.mxu0 0
        %4094 = vmatprep.subr.bf16.mxu0 0
        %4095 = vmatpush1.bf16.msra.mxu0 0
        %4096 = vmatprep.subr.bf16.mxu0 0
        %4097 = vmatpush1.bf16.msra.mxu0 0
        %4098 = vmatprep.subr.bf16.mxu0 0
        %4099 = vmatpush1.bf16.msra.mxu0 0
        %4100 = vmatprep.subr.bf16.mxu0 0
        %4101 = vmatpush1.bf16.msra.mxu0 0
        %4102 = vmatprep.subr.bf16.mxu0 0
        %4103 = vmatpush1.bf16.msra.mxu0 0
        %4104 = vmatprep.subr.bf16.mxu0 0
        %4105 = vmatpush1.bf16.msra.mxu0 0
        %4106 = vmatprep.mubr.bf16.mxu0 0
        %4107 = vmatmul.mubr.bf16.gmra.mrb[0].mxu0 %v4069
        %v4108 = vpop.f32.mrb[0].mxu0
        %v4109 = vadd.f32 0.0, %v4108
        %v4110 = vpop.f32.mrb[0].mxu0
        %v4111 = vpop.f32.mrb[0].mxu0
        %v4112 = vpop.f32.mrb[0].mxu0
        %4113 = vdwg.mxu0
        %v4114 = vmul.f32 %v4109, %v4066
        %4116 = vrot.lane.b32.xlu0 %v3330, 64
        %v4117 = vpop.permute.xlu0 %4116
        %4119 = vrot.lane.b32.xlu0 %v3334, 64
        %v4120 = vpop.permute.xlu0 %4119
        %v4122 = vsel %vm3339, %v4117, 0
        %v4125 = vsel %vm3339, %v4120, 0
        %4127 = vmatprep.subr.bf16.mxu0 0
        %4128 = vmatpush1.bf16.xpose.msra.mxu0 %v4125
        %4129 = vmatprep.subr.bf16.mxu0 0
        %4130 = vmatpush1.bf16.xpose.msra.mxu0 0
        %4131 = vmatprep.subr.bf16.mxu0 0
        %4132 = vmatpush1.bf16.xpose.msra.mxu0 0
        %4133 = vmatprep.subr.bf16.mxu0 0
        %4134 = vmatpush1.bf16.xpose.msra.mxu0 0
        %4135 = vmatprep.subr.bf16.mxu0 0
        %4136 = vmatpush1.bf16.xpose.msra.mxu0 0
        %4137 = vmatprep.subr.bf16.mxu0 0
        %4138 = vmatpush1.bf16.xpose.msra.mxu0 0
        %4139 = vmatprep.subr.bf16.mxu0 0
        %4140 = vmatpush1.bf16.xpose.msra.mxu0 0
        %4141 = vmatprep.subr.bf16.mxu0 0
        %4142 = vmatpush1.bf16.xpose.msra.mxu0 0
        %4143 = vmatprep.subr.bf16.mxu0 0
        %4144 = vmatpush1.bf16.xpose.msra.mxu0 0
        %4145 = vmatprep.subr.bf16.mxu0 0
        %4146 = vmatpush1.bf16.xpose.msra.mxu0 0
        %4147 = vmatprep.subr.bf16.mxu0 0
        %4148 = vmatpush1.bf16.xpose.msra.mxu0 0
        %4149 = vmatprep.subr.bf16.mxu0 0
        %4150 = vmatpush1.bf16.xpose.msra.mxu0 0
        %4151 = vmatprep.subr.bf16.mxu0 0
        %4152 = vmatpush1.bf16.xpose.msra.mxu0 0
        %4153 = vmatprep.subr.bf16.mxu0 0
        %4154 = vmatpush1.bf16.xpose.msra.mxu0 0
        %4155 = vmatprep.subr.bf16.mxu0 0
        %4156 = vmatpush1.bf16.xpose.msra.mxu0 0
        %4157 = vmatprep.subr.bf16.mxu0 0
        %4158 = vmatpush1.bf16.xpose.msra.mxu0 0
        %4159 = vmatprep.mubr.bf16.mxu0 0
        %4160 = vmatmul.mubr.bf16.gmra.mrb[0].mxu0 %v4122
        %v4161 = vpop.f32.mrb[0].mxu0
        %v4162 = vadd.f32 0.0, %v4161
        %v4163 = vpop.f32.mrb[0].mxu0
        %v4164 = vpop.f32.mrb[0].mxu0
        %v4165 = vpop.f32.mrb[0].mxu0
        %4166 = vdwg.mxu0
        %v4167 = vsel %vm3386, %v4162, -inf
        %4168 = vmax.xlane.f32.xlu0 %v4167
        %v4169 = vpop.xlane.xlu0 %4168
        %v4170 = vsub.f32 %v4162, %v4169
        %v4171 = vmul.f32 %v4170, 1.442695
        %v4172 = vpow.pop %v4171
        %v4173 = vsel %vm3386, %v4172, 0.0
        %4174 = vadd.xlane.f32.xlu0 %v4173
        %v4175 = vpop.xlane.xlu0 %4174
        %v4176 = vrcp.pop %v4175
        %v4177 = vpack.c.bf16 %v4172, %v4172
        %4179 = vrot.lane.b32.xlu0 %v3338, 64
        %v4180 = vpop.permute.xlu0 %4179
        %v4182 = vsel %vm3386, %v4177, 0
        %v4185 = vsel %vm3401, %v4180, 0
        %4187 = vmatprep.subr.bf16.mxu0 0
        %4188 = vmatpush1.bf16.msra.mxu0 %v4185
        %4189 = vmatprep.subr.bf16.mxu0 0
        %4190 = vmatpush1.bf16.msra.mxu0 0
        %4191 = vmatprep.subr.bf16.mxu0 0
        %4192 = vmatpush1.bf16.msra.mxu0 0
        %4193 = vmatprep.subr.bf16.mxu0 0
        %4194 = vmatpush1.bf16.msra.mxu0 0
        %4195 = vmatprep.subr.bf16.mxu0 0
        %4196 = vmatpush1.bf16.msra.mxu0 0
        %4197 = vmatprep.subr.bf16.mxu0 0
        %4198 = vmatpush1.bf16.msra.mxu0 0
        %4199 = vmatprep.subr.bf16.mxu0 0
        %4200 = vmatpush1.bf16.msra.mxu0 0
        %4201 = vmatprep.subr.bf16.mxu0 0
        %4202 = vmatpush1.bf16.msra.mxu0 0
        %4203 = vmatprep.subr.bf16.mxu0 0
        %4204 = vmatpush1.bf16.msra.mxu0 0
        %4205 = vmatprep.subr.bf16.mxu0 0
        %4206 = vmatpush1.bf16.msra.mxu0 0
        %4207 = vmatprep.subr.bf16.mxu0 0
        %4208 = vmatpush1.bf16.msra.mxu0 0
        %4209 = vmatprep.subr.bf16.mxu0 0
        %4210 = vmatpush1.bf16.msra.mxu0 0
        %4211 = vmatprep.subr.bf16.mxu0 0
        %4212 = vmatpush1.bf16.msra.mxu0 0
        %4213 = vmatprep.subr.bf16.mxu0 0
        %4214 = vmatpush1.bf16.msra.mxu0 0
        %4215 = vmatprep.subr.bf16.mxu0 0
        %4216 = vmatpush1.bf16.msra.mxu0 0
        %4217 = vmatprep.subr.bf16.mxu0 0
        %4218 = vmatpush1.bf16.msra.mxu0 0
        %4219 = vmatprep.mubr.bf16.mxu0 0
        %4220 = vmatmul.mubr.bf16.gmra.mrb[0].mxu0 %v4182
        %v4221 = vpop.f32.mrb[0].mxu0
        %v4222 = vadd.f32 0.0, %v4221
        %v4223 = vpop.f32.mrb[0].mxu0
        %v4224 = vpop.f32.mrb[0].mxu0
        %v4225 = vpop.f32.mrb[0].mxu0
        %4226 = vdwg.mxu0
        %v4227 = vmul.f32 %v4222, %v4176
        %4229 = vrot.lane.b32.xlu0 %v4227, 64
        %v4230 = vpop.permute.xlu0 %4229
        %v4232 = vsel %vm3339, %v4114, %v4230
        %4233 = vst [vmem:[#allocation2 + $0x18] sm:$0xff] %v4232
        %v4234 = vld [vmem:[#allocation2] sm:$0xff]
        %v4235 = vld [vmem:[#allocation2 + $0x8] sm:$0xff]
        %v4236 = vld [vmem:[#allocation2 + $0x10] sm:$0xff]
        %v4237 = vld [vmem:[#allocation2 + $0x18] sm:$0xff]
        %v4238 = vpack.c.bf16 %v4234, %v4234
        %v4239 = vpack.c.bf16 %v4235, %v4235
        %v4240 = vpack.c.bf16 %v4236, %v4236
        %v4241 = vpack.c.bf16 %v4237, %v4237
        %v4242 = vld [vmem:[#allocation12] sm:$0xff]
        %v4243 = vld [vmem:[#allocation12 + $0x8] sm:$0xff]
        %v4244 = vld [vmem:[#allocation12 + $0x10] sm:$0xff]
        %v4245 = vld [vmem:[#allocation12 + $0x18] sm:$0xff]
        %v4246 = vld [vmem:[#allocation12 + $0x20] sm:$0xff]
        %v4247 = vld [vmem:[#allocation12 + $0x28] sm:$0xff]
        %v4248 = vld [vmem:[#allocation12 + $0x30] sm:$0xff]
        %v4249 = vld [vmem:[#allocation12 + $0x38] sm:$0xff]
        %v4250 = vld [vmem:[#allocation12 + $0x40] sm:$0xff]
        %v4251 = vld [vmem:[#allocation12 + $0x48] sm:$0xff]
        %v4252 = vld [vmem:[#allocation12 + $0x50] sm:$0xff]
        %v4253 = vld [vmem:[#allocation12 + $0x58] sm:$0xff]
        %v4254 = vld [vmem:[#allocation12 + $0x60] sm:$0xff]
        %v4255 = vld [vmem:[#allocation12 + $0x68] sm:$0xff]
        %v4256 = vld [vmem:[#allocation12 + $0x70] sm:$0xff]
        %v4257 = vld [vmem:[#allocation12 + $0x78] sm:$0xff]
        %v4258 = vld [vmem:[#allocation12 + $0x80] sm:$0xff]
        %v4259 = vld [vmem:[#allocation12 + $0x88] sm:$0xff]
        %v4260 = vld [vmem:[#allocation12 + $0x90] sm:$0xff]
        %v4261 = vld [vmem:[#allocation12 + $0x98] sm:$0xff]
        %v4262 = vld [vmem:[#allocation12 + $0xa0] sm:$0xff]
        %v4263 = vld [vmem:[#allocation12 + $0xa8] sm:$0xff]
        %v4264 = vld [vmem:[#allocation12 + $0xb0] sm:$0xff]
        %v4265 = vld [vmem:[#allocation12 + $0xb8] sm:$0xff]
        %v4266 = vld [vmem:[#allocation12 + $0xc0] sm:$0xff]
        %v4267 = vld [vmem:[#allocation12 + $0xc8] sm:$0xff]
        %v4268 = vld [vmem:[#allocation12 + $0xd0] sm:$0xff]
        %v4269 = vld [vmem:[#allocation12 + $0xd8] sm:$0xff]
        %v4270 = vld [vmem:[#allocation12 + $0xe0] sm:$0xff]
        %v4271 = vld [vmem:[#allocation12 + $0xe8] sm:$0xff]
        %v4272 = vld [vmem:[#allocation12 + $0xf0] sm:$0xff]
        %v4273 = vld [vmem:[#allocation12 + $0xf8] sm:$0xff]
        %v4274 = vld [vmem:[#allocation12 + $0x100] sm:$0xff]
        %v4275 = vld [vmem:[#allocation12 + $0x108] sm:$0xff]
        %v4276 = vld [vmem:[#allocation12 + $0x110] sm:$0xff]
        %v4277 = vld [vmem:[#allocation12 + $0x118] sm:$0xff]
        %v4278 = vld [vmem:[#allocation12 + $0x120] sm:$0xff]
        %v4279 = vld [vmem:[#allocation12 + $0x128] sm:$0xff]
        %v4280 = vld [vmem:[#allocation12 + $0x130] sm:$0xff]
        %v4281 = vld [vmem:[#allocation12 + $0x138] sm:$0xff]
        %v4282 = vld [vmem:[#allocation12 + $0x140] sm:$0xff]
        %v4283 = vld [vmem:[#allocation12 + $0x148] sm:$0xff]
        %v4284 = vld [vmem:[#allocation12 + $0x150] sm:$0xff]
        %v4285 = vld [vmem:[#allocation12 + $0x158] sm:$0xff]
        %v4286 = vld [vmem:[#allocation12 + $0x160] sm:$0xff]
        %v4287 = vld [vmem:[#allocation12 + $0x168] sm:$0xff]
        %v4288 = vld [vmem:[#allocation12 + $0x170] sm:$0xff]
        %v4289 = vld [vmem:[#allocation12 + $0x178] sm:$0xff]
        %v4290 = vld [vmem:[#allocation12 + $0x180] sm:$0xff]
        %v4291 = vld [vmem:[#allocation12 + $0x188] sm:$0xff]
        %v4292 = vld [vmem:[#allocation12 + $0x190] sm:$0xff]
        %v4293 = vld [vmem:[#allocation12 + $0x198] sm:$0xff]
        %v4294 = vld [vmem:[#allocation12 + $0x1a0] sm:$0xff]
        %v4295 = vld [vmem:[#allocation12 + $0x1a8] sm:$0xff]
        %v4296 = vld [vmem:[#allocation12 + $0x1b0] sm:$0xff]
        %v4297 = vld [vmem:[#allocation12 + $0x1b8] sm:$0xff]
        %v4298 = vld [vmem:[#allocation12 + $0x1c0] sm:$0xff]
        %v4299 = vld [vmem:[#allocation12 + $0x1c8] sm:$0xff]
        %v4300 = vld [vmem:[#allocation12 + $0x1d0] sm:$0xff]
        %v4301 = vld [vmem:[#allocation12 + $0x1d8] sm:$0xff]
        %v4302 = vld [vmem:[#allocation12 + $0x1e0] sm:$0xff]
        %v4303 = vld [vmem:[#allocation12 + $0x1e8] sm:$0xff]
        %v4304 = vld [vmem:[#allocation12 + $0x1f0] sm:$0xff]
        %v4305 = vld [vmem:[#allocation12 + $0x1f8] sm:$0xff]
        %v4306 = vld [vmem:[#allocation12 + $0x200] sm:$0xff]
        %v4307 = vld [vmem:[#allocation12 + $0x208] sm:$0xff]
        %v4308 = vld [vmem:[#allocation12 + $0x210] sm:$0xff]
        %v4309 = vld [vmem:[#allocation12 + $0x218] sm:$0xff]
        %v4310 = vld [vmem:[#allocation12 + $0x220] sm:$0xff]
        %v4311 = vld [vmem:[#allocation12 + $0x228] sm:$0xff]
        %v4312 = vld [vmem:[#allocation12 + $0x230] sm:$0xff]
        %v4313 = vld [vmem:[#allocation12 + $0x238] sm:$0xff]
        %v4314 = vld [vmem:[#allocation12 + $0x240] sm:$0xff]
        %v4315 = vld [vmem:[#allocation12 + $0x248] sm:$0xff]
        %v4316 = vld [vmem:[#allocation12 + $0x250] sm:$0xff]
        %v4317 = vld [vmem:[#allocation12 + $0x258] sm:$0xff]
        %v4318 = vld [vmem:[#allocation12 + $0x260] sm:$0xff]
        %v4319 = vld [vmem:[#allocation12 + $0x268] sm:$0xff]
        %v4320 = vld [vmem:[#allocation12 + $0x270] sm:$0xff]
        %v4321 = vld [vmem:[#allocation12 + $0x278] sm:$0xff]
        %v4322 = vld [vmem:[#allocation12 + $0x280] sm:$0xff]
        %v4323 = vld [vmem:[#allocation12 + $0x288] sm:$0xff]
        %v4324 = vld [vmem:[#allocation12 + $0x290] sm:$0xff]
        %v4325 = vld [vmem:[#allocation12 + $0x298] sm:$0xff]
        %v4326 = vld [vmem:[#allocation12 + $0x2a0] sm:$0xff]
        %v4327 = vld [vmem:[#allocation12 + $0x2a8] sm:$0xff]
        %v4328 = vld [vmem:[#allocation12 + $0x2b0] sm:$0xff]
        %v4329 = vld [vmem:[#allocation12 + $0x2b8] sm:$0xff]
        %v4330 = vld [vmem:[#allocation12 + $0x2c0] sm:$0xff]
        %v4331 = vld [vmem:[#allocation12 + $0x2c8] sm:$0xff]
        %v4332 = vld [vmem:[#allocation12 + $0x2d0] sm:$0xff]
        %v4333 = vld [vmem:[#allocation12 + $0x2d8] sm:$0xff]
        %v4334 = vld [vmem:[#allocation12 + $0x2e0] sm:$0xff]
        %v4335 = vld [vmem:[#allocation12 + $0x2e8] sm:$0xff]
        %v4336 = vld [vmem:[#allocation12 + $0x2f0] sm:$0xff]
        %v4337 = vld [vmem:[#allocation12 + $0x2f8] sm:$0xff]
        %v4338 = vld [vmem:[#allocation12 + $0x300] sm:$0xff]
        %v4339 = vld [vmem:[#allocation12 + $0x308] sm:$0xff]
        %v4340 = vld [vmem:[#allocation12 + $0x310] sm:$0xff]
        %v4341 = vld [vmem:[#allocation12 + $0x318] sm:$0xff]
        %v4342 = vld [vmem:[#allocation12 + $0x320] sm:$0xff]
        %v4343 = vld [vmem:[#allocation12 + $0x328] sm:$0xff]
        %v4344 = vld [vmem:[#allocation12 + $0x330] sm:$0xff]
        %v4345 = vld [vmem:[#allocation12 + $0x338] sm:$0xff]
        %v4346 = vld [vmem:[#allocation12 + $0x340] sm:$0xff]
        %v4347 = vld [vmem:[#allocation12 + $0x348] sm:$0xff]
        %v4348 = vld [vmem:[#allocation12 + $0x350] sm:$0xff]
        %v4349 = vld [vmem:[#allocation12 + $0x358] sm:$0xff]
        %v4350 = vld [vmem:[#allocation12 + $0x360] sm:$0xff]
        %v4351 = vld [vmem:[#allocation12 + $0x368] sm:$0xff]
        %v4352 = vld [vmem:[#allocation12 + $0x370] sm:$0xff]
        %v4353 = vld [vmem:[#allocation12 + $0x378] sm:$0xff]
        %v4354 = vld [vmem:[#allocation12 + $0x380] sm:$0xff]
        %v4355 = vld [vmem:[#allocation12 + $0x388] sm:$0xff]
        %v4356 = vld [vmem:[#allocation12 + $0x390] sm:$0xff]
        %v4357 = vld [vmem:[#allocation12 + $0x398] sm:$0xff]
        %v4358 = vld [vmem:[#allocation12 + $0x3a0] sm:$0xff]
        %v4359 = vld [vmem:[#allocation12 + $0x3a8] sm:$0xff]
        %v4360 = vld [vmem:[#allocation12 + $0x3b0] sm:$0xff]
        %v4361 = vld [vmem:[#allocation12 + $0x3b8] sm:$0xff]
        %v4362 = vld [vmem:[#allocation12 + $0x3c0] sm:$0xff]
        %v4363 = vld [vmem:[#allocation12 + $0x3c8] sm:$0xff]
        %v4364 = vld [vmem:[#allocation12 + $0x3d0] sm:$0xff]
        %v4365 = vld [vmem:[#allocation12 + $0x3d8] sm:$0xff]
        %v4366 = vld [vmem:[#allocation12 + $0x3e0] sm:$0xff]
        %v4367 = vld [vmem:[#allocation12 + $0x3e8] sm:$0xff]
        %v4368 = vld [vmem:[#allocation12 + $0x3f0] sm:$0xff]
        %v4369 = vld [vmem:[#allocation12 + $0x3f8] sm:$0xff]
        %v4370 = vld [vmem:[#allocation14] sm:$0xf]
        %v4372 = vlaneseq
        %v4373 = vshrl.u32 %v4372, 7
        %v4374 = vsub.s32 0, %v4373
        %v4375 = vrot.slane %v4370, %v4374
        %v4376 = vlaneseq
        %v4377 = vshrl.u32 %v4376, 7
        %v4378 = vsub.s32 1, %v4377
        %v4379 = vrot.slane %v4370, %v4378
        %v4380 = vlaneseq
        %v4381 = vshrl.u32 %v4380, 7
        %v4382 = vsub.s32 2, %v4381
        %v4383 = vrot.slane %v4370, %v4382
        %v4384 = vlaneseq
        %v4385 = vshrl.u32 %v4384, 7
        %v4386 = vsub.s32 3, %v4385
        %v4387 = vrot.slane %v4370, %v4386
        %v4520 = vunpack.c.l.b16 %v4242
        %v4521 = vunpack.c.h.b16 %v4242
        %v4522 = vunpack.c.l.b16 %v4243
        %v4523 = vunpack.c.h.b16 %v4243
        %v4524 = vunpack.c.l.b16 %v4244
        %v4525 = vunpack.c.h.b16 %v4244
        %v4526 = vunpack.c.l.b16 %v4245
        %v4527 = vunpack.c.h.b16 %v4245
        %v4528 = vunpack.c.l.b16 %v4246
        %v4529 = vunpack.c.h.b16 %v4246
        %v4530 = vunpack.c.l.b16 %v4247
        %v4531 = vunpack.c.h.b16 %v4247
        %v4532 = vunpack.c.l.b16 %v4248
        %v4533 = vunpack.c.h.b16 %v4248
        %v4534 = vunpack.c.l.b16 %v4249
        %v4535 = vunpack.c.h.b16 %v4249
        %v4536 = vunpack.c.l.b16 %v4250
        %v4537 = vunpack.c.h.b16 %v4250
        %v4538 = vunpack.c.l.b16 %v4251
        %v4539 = vunpack.c.h.b16 %v4251
        %v4540 = vunpack.c.l.b16 %v4252
        %v4541 = vunpack.c.h.b16 %v4252
        %v4542 = vunpack.c.l.b16 %v4253
        %v4543 = vunpack.c.h.b16 %v4253
        %v4544 = vunpack.c.l.b16 %v4254
        %v4545 = vunpack.c.h.b16 %v4254
        %v4546 = vunpack.c.l.b16 %v4255
        %v4547 = vunpack.c.h.b16 %v4255
        %v4548 = vunpack.c.l.b16 %v4256
        %v4549 = vunpack.c.h.b16 %v4256
        %v4550 = vunpack.c.l.b16 %v4257
        %v4551 = vunpack.c.h.b16 %v4257
        %v4552 = vunpack.c.l.b16 %v4258
        %v4553 = vunpack.c.h.b16 %v4258
        %v4554 = vunpack.c.l.b16 %v4259
        %v4555 = vunpack.c.h.b16 %v4259
        %v4556 = vunpack.c.l.b16 %v4260
        %v4557 = vunpack.c.h.b16 %v4260
        %v4558 = vunpack.c.l.b16 %v4261
        %v4559 = vunpack.c.h.b16 %v4261
        %v4560 = vunpack.c.l.b16 %v4262
        %v4561 = vunpack.c.h.b16 %v4262
        %v4562 = vunpack.c.l.b16 %v4263
        %v4563 = vunpack.c.h.b16 %v4263
        %v4564 = vunpack.c.l.b16 %v4264
        %v4565 = vunpack.c.h.b16 %v4264
        %v4566 = vunpack.c.l.b16 %v4265
        %v4567 = vunpack.c.h.b16 %v4265
        %v4568 = vunpack.c.l.b16 %v4266
        %v4569 = vunpack.c.h.b16 %v4266
        %v4570 = vunpack.c.l.b16 %v4267
        %v4571 = vunpack.c.h.b16 %v4267
        %v4572 = vunpack.c.l.b16 %v4268
        %v4573 = vunpack.c.h.b16 %v4268
        %v4574 = vunpack.c.l.b16 %v4269
        %v4575 = vunpack.c.h.b16 %v4269
        %v4576 = vunpack.c.l.b16 %v4270
        %v4577 = vunpack.c.h.b16 %v4270
        %v4578 = vunpack.c.l.b16 %v4271
        %v4579 = vunpack.c.h.b16 %v4271
        %v4580 = vunpack.c.l.b16 %v4272
        %v4581 = vunpack.c.h.b16 %v4272
        %v4582 = vunpack.c.l.b16 %v4273
        %v4583 = vunpack.c.h.b16 %v4273
        %v4584 = vunpack.c.l.b16 %v4274
        %v4585 = vunpack.c.h.b16 %v4274
        %v4586 = vunpack.c.l.b16 %v4275
        %v4587 = vunpack.c.h.b16 %v4275
        %v4588 = vunpack.c.l.b16 %v4276
        %v4589 = vunpack.c.h.b16 %v4276
        %v4590 = vunpack.c.l.b16 %v4277
        %v4591 = vunpack.c.h.b16 %v4277
        %v4592 = vunpack.c.l.b16 %v4278
        %v4593 = vunpack.c.h.b16 %v4278
        %v4594 = vunpack.c.l.b16 %v4279
        %v4595 = vunpack.c.h.b16 %v4279
        %v4596 = vunpack.c.l.b16 %v4280
        %v4597 = vunpack.c.h.b16 %v4280
        %v4598 = vunpack.c.l.b16 %v4281
        %v4599 = vunpack.c.h.b16 %v4281
        %v4600 = vunpack.c.l.b16 %v4282
        %v4601 = vunpack.c.h.b16 %v4282
        %v4602 = vunpack.c.l.b16 %v4283
        %v4603 = vunpack.c.h.b16 %v4283
        %v4604 = vunpack.c.l.b16 %v4284
        %v4605 = vunpack.c.h.b16 %v4284
        %v4606 = vunpack.c.l.b16 %v4285
        %v4607 = vunpack.c.h.b16 %v4285
        %v4608 = vunpack.c.l.b16 %v4286
        %v4609 = vunpack.c.h.b16 %v4286
        %v4610 = vunpack.c.l.b16 %v4287
        %v4611 = vunpack.c.h.b16 %v4287
        %v4612 = vunpack.c.l.b16 %v4288
        %v4613 = vunpack.c.h.b16 %v4288
        %v4614 = vunpack.c.l.b16 %v4289
        %v4615 = vunpack.c.h.b16 %v4289
        %v4616 = vunpack.c.l.b16 %v4290
        %v4617 = vunpack.c.h.b16 %v4290
        %v4618 = vunpack.c.l.b16 %v4291
        %v4619 = vunpack.c.h.b16 %v4291
        %v4620 = vunpack.c.l.b16 %v4292
        %v4621 = vunpack.c.h.b16 %v4292
        %v4622 = vunpack.c.l.b16 %v4293
        %v4623 = vunpack.c.h.b16 %v4293
        %v4624 = vunpack.c.l.b16 %v4294
        %v4625 = vunpack.c.h.b16 %v4294
        %v4626 = vunpack.c.l.b16 %v4295
        %v4627 = vunpack.c.h.b16 %v4295
        %v4628 = vunpack.c.l.b16 %v4296
        %v4629 = vunpack.c.h.b16 %v4296
        %v4630 = vunpack.c.l.b16 %v4297
        %v4631 = vunpack.c.h.b16 %v4297
        %v4632 = vunpack.c.l.b16 %v4298
        %v4633 = vunpack.c.h.b16 %v4298
        %v4634 = vunpack.c.l.b16 %v4299
        %v4635 = vunpack.c.h.b16 %v4299
        %v4636 = vunpack.c.l.b16 %v4300
        %v4637 = vunpack.c.h.b16 %v4300
        %v4638 = vunpack.c.l.b16 %v4301
        %v4639 = vunpack.c.h.b16 %v4301
        %v4640 = vunpack.c.l.b16 %v4302
        %v4641 = vunpack.c.h.b16 %v4302
        %v4642 = vunpack.c.l.b16 %v4303
        %v4643 = vunpack.c.h.b16 %v4303
        %v4644 = vunpack.c.l.b16 %v4304
        %v4645 = vunpack.c.h.b16 %v4304
        %v4646 = vunpack.c.l.b16 %v4305
        %v4647 = vunpack.c.h.b16 %v4305
        %v4648 = vunpack.c.l.b16 %v4306
        %v4649 = vunpack.c.h.b16 %v4306
        %v4650 = vunpack.c.l.b16 %v4307
        %v4651 = vunpack.c.h.b16 %v4307
        %v4652 = vunpack.c.l.b16 %v4308
        %v4653 = vunpack.c.h.b16 %v4308
        %v4654 = vunpack.c.l.b16 %v4309
        %v4655 = vunpack.c.h.b16 %v4309
        %v4656 = vunpack.c.l.b16 %v4310
        %v4657 = vunpack.c.h.b16 %v4310
        %v4658 = vunpack.c.l.b16 %v4311
        %v4659 = vunpack.c.h.b16 %v4311
        %v4660 = vunpack.c.l.b16 %v4312
        %v4661 = vunpack.c.h.b16 %v4312
        %v4662 = vunpack.c.l.b16 %v4313
        %v4663 = vunpack.c.h.b16 %v4313
        %v4664 = vunpack.c.l.b16 %v4314
        %v4665 = vunpack.c.h.b16 %v4314
        %v4666 = vunpack.c.l.b16 %v4315
        %v4667 = vunpack.c.h.b16 %v4315
        %v4668 = vunpack.c.l.b16 %v4316
        %v4669 = vunpack.c.h.b16 %v4316
        %v4670 = vunpack.c.l.b16 %v4317
        %v4671 = vunpack.c.h.b16 %v4317
        %v4672 = vunpack.c.l.b16 %v4318
        %v4673 = vunpack.c.h.b16 %v4318
        %v4674 = vunpack.c.l.b16 %v4319
        %v4675 = vunpack.c.h.b16 %v4319
        %v4676 = vunpack.c.l.b16 %v4320
        %v4677 = vunpack.c.h.b16 %v4320
        %v4678 = vunpack.c.l.b16 %v4321
        %v4679 = vunpack.c.h.b16 %v4321
        %v4680 = vunpack.c.l.b16 %v4322
        %v4681 = vunpack.c.h.b16 %v4322
        %v4682 = vunpack.c.l.b16 %v4323
        %v4683 = vunpack.c.h.b16 %v4323
        %v4684 = vunpack.c.l.b16 %v4324
        %v4685 = vunpack.c.h.b16 %v4324
        %v4686 = vunpack.c.l.b16 %v4325
        %v4687 = vunpack.c.h.b16 %v4325
        %v4688 = vunpack.c.l.b16 %v4326
        %v4689 = vunpack.c.h.b16 %v4326
        %v4690 = vunpack.c.l.b16 %v4327
        %v4691 = vunpack.c.h.b16 %v4327
        %v4692 = vunpack.c.l.b16 %v4328
        %v4693 = vunpack.c.h.b16 %v4328
        %v4694 = vunpack.c.l.b16 %v4329
        %v4695 = vunpack.c.h.b16 %v4329
        %v4696 = vunpack.c.l.b16 %v4330
        %v4697 = vunpack.c.h.b16 %v4330
        %v4698 = vunpack.c.l.b16 %v4331
        %v4699 = vunpack.c.h.b16 %v4331
        %v4700 = vunpack.c.l.b16 %v4332
        %v4701 = vunpack.c.h.b16 %v4332
        %v4702 = vunpack.c.l.b16 %v4333
        %v4703 = vunpack.c.h.b16 %v4333
        %v4704 = vunpack.c.l.b16 %v4334
        %v4705 = vunpack.c.h.b16 %v4334
        %v4706 = vunpack.c.l.b16 %v4335
        %v4707 = vunpack.c.h.b16 %v4335
        %v4708 = vunpack.c.l.b16 %v4336
        %v4709 = vunpack.c.h.b16 %v4336
        %v4710 = vunpack.c.l.b16 %v4337
        %v4711 = vunpack.c.h.b16 %v4337
        %v4712 = vunpack.c.l.b16 %v4338
        %v4713 = vunpack.c.h.b16 %v4338
        %v4714 = vunpack.c.l.b16 %v4339
        %v4715 = vunpack.c.h.b16 %v4339
        %v4716 = vunpack.c.l.b16 %v4340
        %v4717 = vunpack.c.h.b16 %v4340
        %v4718 = vunpack.c.l.b16 %v4341
        %v4719 = vunpack.c.h.b16 %v4341
        %v4720 = vunpack.c.l.b16 %v4342
        %v4721 = vunpack.c.h.b16 %v4342
        %v4722 = vunpack.c.l.b16 %v4343
        %v4723 = vunpack.c.h.b16 %v4343
        %v4724 = vunpack.c.l.b16 %v4344
        %v4725 = vunpack.c.h.b16 %v4344
        %v4726 = vunpack.c.l.b16 %v4345
        %v4727 = vunpack.c.h.b16 %v4345
        %v4728 = vunpack.c.l.b16 %v4346
        %v4729 = vunpack.c.h.b16 %v4346
        %v4730 = vunpack.c.l.b16 %v4347
        %v4731 = vunpack.c.h.b16 %v4347
        %v4732 = vunpack.c.l.b16 %v4348
        %v4733 = vunpack.c.h.b16 %v4348
        %v4734 = vunpack.c.l.b16 %v4349
        %v4735 = vunpack.c.h.b16 %v4349
        %v4736 = vunpack.c.l.b16 %v4350
        %v4737 = vunpack.c.h.b16 %v4350
        %v4738 = vunpack.c.l.b16 %v4351
        %v4739 = vunpack.c.h.b16 %v4351
        %v4740 = vunpack.c.l.b16 %v4352
        %v4741 = vunpack.c.h.b16 %v4352
        %v4742 = vunpack.c.l.b16 %v4353
        %v4743 = vunpack.c.h.b16 %v4353
        %v4744 = vunpack.c.l.b16 %v4354
        %v4745 = vunpack.c.h.b16 %v4354
        %v4746 = vunpack.c.l.b16 %v4355
        %v4747 = vunpack.c.h.b16 %v4355
        %v4748 = vunpack.c.l.b16 %v4356
        %v4749 = vunpack.c.h.b16 %v4356
        %v4750 = vunpack.c.l.b16 %v4357
        %v4751 = vunpack.c.h.b16 %v4357
        %v4752 = vunpack.c.l.b16 %v4358
        %v4753 = vunpack.c.h.b16 %v4358
        %v4754 = vunpack.c.l.b16 %v4359
        %v4755 = vunpack.c.h.b16 %v4359
        %v4756 = vunpack.c.l.b16 %v4360
        %v4757 = vunpack.c.h.b16 %v4360
        %v4758 = vunpack.c.l.b16 %v4361
        %v4759 = vunpack.c.h.b16 %v4361
        %v4760 = vunpack.c.l.b16 %v4362
        %v4761 = vunpack.c.h.b16 %v4362
        %v4762 = vunpack.c.l.b16 %v4363
        %v4763 = vunpack.c.h.b16 %v4363
        %v4764 = vunpack.c.l.b16 %v4364
        %v4765 = vunpack.c.h.b16 %v4364
        %v4766 = vunpack.c.l.b16 %v4365
        %v4767 = vunpack.c.h.b16 %v4365
        %v4768 = vunpack.c.l.b16 %v4366
        %v4769 = vunpack.c.h.b16 %v4366
        %v4770 = vunpack.c.l.b16 %v4367
        %v4771 = vunpack.c.h.b16 %v4367
        %v4772 = vunpack.c.l.b16 %v4368
        %v4773 = vunpack.c.h.b16 %v4368
        %v4774 = vunpack.c.l.b16 %v4369
        %v4775 = vunpack.c.h.b16 %v4369
        %v4776 = vpack.c.b16 %v4524, %v4520
        %v4777 = vpack.c.b16 %v4525, %v4521
        %v4778 = vpack.c.b16 %v4526, %v4522
        %v4779 = vpack.c.b16 %v4527, %v4523
        %v4780 = vpack.c.b16 %v4532, %v4528
        %v4781 = vpack.c.b16 %v4533, %v4529
        %v4782 = vpack.c.b16 %v4534, %v4530
        %v4783 = vpack.c.b16 %v4535, %v4531
        %v4784 = vpack.c.b16 %v4540, %v4536
        %v4785 = vpack.c.b16 %v4541, %v4537
        %v4786 = vpack.c.b16 %v4542, %v4538
        %v4787 = vpack.c.b16 %v4543, %v4539
        %v4788 = vpack.c.b16 %v4548, %v4544
        %v4789 = vpack.c.b16 %v4549, %v4545
        %v4790 = vpack.c.b16 %v4550, %v4546
        %v4791 = vpack.c.b16 %v4551, %v4547
        %v4792 = vpack.c.b16 %v4556, %v4552
        %v4793 = vpack.c.b16 %v4557, %v4553
        %v4794 = vpack.c.b16 %v4558, %v4554
        %v4795 = vpack.c.b16 %v4559, %v4555
        %v4796 = vpack.c.b16 %v4564, %v4560
        %v4797 = vpack.c.b16 %v4565, %v4561
        %v4798 = vpack.c.b16 %v4566, %v4562
        %v4799 = vpack.c.b16 %v4567, %v4563
        %v4800 = vpack.c.b16 %v4572, %v4568
        %v4801 = vpack.c.b16 %v4573, %v4569
        %v4802 = vpack.c.b16 %v4574, %v4570
        %v4803 = vpack.c.b16 %v4575, %v4571
        %v4804 = vpack.c.b16 %v4580, %v4576
        %v4805 = vpack.c.b16 %v4581, %v4577
        %v4806 = vpack.c.b16 %v4582, %v4578
        %v4807 = vpack.c.b16 %v4583, %v4579
        %v4808 = vpack.c.b16 %v4588, %v4584
        %v4809 = vpack.c.b16 %v4589, %v4585
        %v4810 = vpack.c.b16 %v4590, %v4586
        %v4811 = vpack.c.b16 %v4591, %v4587
        %v4812 = vpack.c.b16 %v4596, %v4592
        %v4813 = vpack.c.b16 %v4597, %v4593
        %v4814 = vpack.c.b16 %v4598, %v4594
        %v4815 = vpack.c.b16 %v4599, %v4595
        %v4816 = vpack.c.b16 %v4604, %v4600
        %v4817 = vpack.c.b16 %v4605, %v4601
        %v4818 = vpack.c.b16 %v4606, %v4602
        %v4819 = vpack.c.b16 %v4607, %v4603
        %v4820 = vpack.c.b16 %v4612, %v4608
        %v4821 = vpack.c.b16 %v4613, %v4609
        %v4822 = vpack.c.b16 %v4614, %v4610
        %v4823 = vpack.c.b16 %v4615, %v4611
        %v4824 = vpack.c.b16 %v4620, %v4616
        %v4825 = vpack.c.b16 %v4621, %v4617
        %v4826 = vpack.c.b16 %v4622, %v4618
        %v4827 = vpack.c.b16 %v4623, %v4619
        %v4828 = vpack.c.b16 %v4628, %v4624
        %v4829 = vpack.c.b16 %v4629, %v4625
        %v4830 = vpack.c.b16 %v4630, %v4626
        %v4831 = vpack.c.b16 %v4631, %v4627
        %v4832 = vpack.c.b16 %v4636, %v4632
        %v4833 = vpack.c.b16 %v4637, %v4633
        %v4834 = vpack.c.b16 %v4638, %v4634
        %v4835 = vpack.c.b16 %v4639, %v4635
        %v4836 = vpack.c.b16 %v4644, %v4640
        %v4837 = vpack.c.b16 %v4645, %v4641
        %v4838 = vpack.c.b16 %v4646, %v4642
        %v4839 = vpack.c.b16 %v4647, %v4643
        %v4840 = vpack.c.b16 %v4652, %v4648
        %v4841 = vpack.c.b16 %v4653, %v4649
        %v4842 = vpack.c.b16 %v4654, %v4650
        %v4843 = vpack.c.b16 %v4655, %v4651
        %v4844 = vpack.c.b16 %v4660, %v4656
        %v4845 = vpack.c.b16 %v4661, %v4657
        %v4846 = vpack.c.b16 %v4662, %v4658
        %v4847 = vpack.c.b16 %v4663, %v4659
        %v4848 = vpack.c.b16 %v4668, %v4664
        %v4849 = vpack.c.b16 %v4669, %v4665
        %v4850 = vpack.c.b16 %v4670, %v4666
        %v4851 = vpack.c.b16 %v4671, %v4667
        %v4852 = vpack.c.b16 %v4676, %v4672
        %v4853 = vpack.c.b16 %v4677, %v4673
        %v4854 = vpack.c.b16 %v4678, %v4674
        %v4855 = vpack.c.b16 %v4679, %v4675
        %v4856 = vpack.c.b16 %v4684, %v4680
        %v4857 = vpack.c.b16 %v4685, %v4681
        %v4858 = vpack.c.b16 %v4686, %v4682
        %v4859 = vpack.c.b16 %v4687, %v4683
        %v4860 = vpack.c.b16 %v4692, %v4688
        %v4861 = vpack.c.b16 %v4693, %v4689
        %v4862 = vpack.c.b16 %v4694, %v4690
        %v4863 = vpack.c.b16 %v4695, %v4691
        %v4864 = vpack.c.b16 %v4700, %v4696
        %v4865 = vpack.c.b16 %v4701, %v4697
        %v4866 = vpack.c.b16 %v4702, %v4698
        %v4867 = vpack.c.b16 %v4703, %v4699
        %v4868 = vpack.c.b16 %v4708, %v4704
        %v4869 = vpack.c.b16 %v4709, %v4705
        %v4870 = vpack.c.b16 %v4710, %v4706
        %v4871 = vpack.c.b16 %v4711, %v4707
        %v4872 = vpack.c.b16 %v4716, %v4712
        %v4873 = vpack.c.b16 %v4717, %v4713
        %v4874 = vpack.c.b16 %v4718, %v4714
        %v4875 = vpack.c.b16 %v4719, %v4715
        %v4876 = vpack.c.b16 %v4724, %v4720
        %v4877 = vpack.c.b16 %v4725, %v4721
        %v4878 = vpack.c.b16 %v4726, %v4722
        %v4879 = vpack.c.b16 %v4727, %v4723
        %v4880 = vpack.c.b16 %v4732, %v4728
        %v4881 = vpack.c.b16 %v4733, %v4729
        %v4882 = vpack.c.b16 %v4734, %v4730
        %v4883 = vpack.c.b16 %v4735, %v4731
        %v4884 = vpack.c.b16 %v4740, %v4736
        %v4885 = vpack.c.b16 %v4741, %v4737
        %v4886 = vpack.c.b16 %v4742, %v4738
        %v4887 = vpack.c.b16 %v4743, %v4739
        %v4888 = vpack.c.b16 %v4748, %v4744
        %v4889 = vpack.c.b16 %v4749, %v4745
        %v4890 = vpack.c.b16 %v4750, %v4746
        %v4891 = vpack.c.b16 %v4751, %v4747
        %v4892 = vpack.c.b16 %v4756, %v4752
        %v4893 = vpack.c.b16 %v4757, %v4753
        %v4894 = vpack.c.b16 %v4758, %v4754
        %v4895 = vpack.c.b16 %v4759, %v4755
        %v4896 = vpack.c.b16 %v4764, %v4760
        %v4897 = vpack.c.b16 %v4765, %v4761
        %v4898 = vpack.c.b16 %v4766, %v4762
        %v4899 = vpack.c.b16 %v4767, %v4763
        %v4900 = vpack.c.b16 %v4772, %v4768
        %v4901 = vpack.c.b16 %v4773, %v4769
        %v4902 = vpack.c.b16 %v4774, %v4770
        %v4903 = vpack.c.b16 %v4775, %v4771
        %5032 = vmatprep.subr.bf16.mxu0 %v4777
        %5033 = vmatpush1.bf16.msra.mxu0 %v4776
        %5034 = vmatprep.subr.bf16.mxu0 %v4781
        %5035 = vmatpush1.bf16.msra.mxu0 %v4780
        %5036 = vmatprep.subr.bf16.mxu0 %v4785
        %5037 = vmatpush1.bf16.msra.mxu0 %v4784
        %5038 = vmatprep.subr.bf16.mxu0 %v4789
        %5039 = vmatpush1.bf16.msra.mxu0 %v4788
        %5040 = vmatprep.subr.bf16.mxu0 %v4793
        %5041 = vmatpush1.bf16.msra.mxu0 %v4792
        %5042 = vmatprep.subr.bf16.mxu0 %v4797
        %5043 = vmatpush1.bf16.msra.mxu0 %v4796
        %5044 = vmatprep.subr.bf16.mxu0 %v4801
        %5045 = vmatpush1.bf16.msra.mxu0 %v4800
        %5046 = vmatprep.subr.bf16.mxu0 %v4805
        %5047 = vmatpush1.bf16.msra.mxu0 %v4804
        %5048 = vmatprep.subr.bf16.mxu0 %v4809
        %5049 = vmatpush1.bf16.msra.mxu0 %v4808
        %5050 = vmatprep.subr.bf16.mxu0 %v4813
        %5051 = vmatpush1.bf16.msra.mxu0 %v4812
        %5052 = vmatprep.subr.bf16.mxu0 %v4817
        %5053 = vmatpush1.bf16.msra.mxu0 %v4816
        %5054 = vmatprep.subr.bf16.mxu0 %v4821
        %5055 = vmatpush1.bf16.msra.mxu0 %v4820
        %5056 = vmatprep.subr.bf16.mxu0 %v4825
        %5057 = vmatpush1.bf16.msra.mxu0 %v4824
        %5058 = vmatprep.subr.bf16.mxu0 %v4829
        %5059 = vmatpush1.bf16.msra.mxu0 %v4828
        %5060 = vmatprep.subr.bf16.mxu0 %v4833
        %5061 = vmatpush1.bf16.msra.mxu0 %v4832
        %5062 = vmatprep.subr.bf16.mxu0 %v4837
        %5063 = vmatpush1.bf16.msra.mxu0 %v4836
        %5064 = vmatprep.mubr.bf16.mxu0 %v4239
        %5065 = vmatmul.mubr.bf16.gmra.mrb[0].mxu0 %v4238
        %v5066 = vpop.f32.mrb[0].mxu0
        %v5067 = vadd.f32 %v4375, %v5066
        %v5068 = vpop.f32.mrb[0].mxu0
        %v5069 = vadd.f32 %v4379, %v5068
        %v5070 = vpop.f32.mrb[0].mxu0
        %v5071 = vpop.f32.mrb[0].mxu0
        %5072 = vdwg.mxu0
        %5073 = vmatprep.subr.bf16.mxu0 %v4841
        %5074 = vmatpush1.bf16.msra.mxu0 %v4840
        %5075 = vmatprep.subr.bf16.mxu0 %v4845
        %5076 = vmatpush1.bf16.msra.mxu0 %v4844
        %5077 = vmatprep.subr.bf16.mxu0 %v4849
        %5078 = vmatpush1.bf16.msra.mxu0 %v4848
        %5079 = vmatprep.subr.bf16.mxu0 %v4853
        %5080 = vmatpush1.bf16.msra.mxu0 %v4852
        %5081 = vmatprep.subr.bf16.mxu0 %v4857
        %5082 = vmatpush1.bf16.msra.mxu0 %v4856
        %5083 = vmatprep.subr.bf16.mxu0 %v4861
        %5084 = vmatpush1.bf16.msra.mxu0 %v4860
        %5085 = vmatprep.subr.bf16.mxu0 %v4865
        %5086 = vmatpush1.bf16.msra.mxu0 %v4864
        %5087 = vmatprep.subr.bf16.mxu0 %v4869
        %5088 = vmatpush1.bf16.msra.mxu0 %v4868
        %5089 = vmatprep.subr.bf16.mxu0 %v4873
        %5090 = vmatpush1.bf16.msra.mxu0 %v4872
        %5091 = vmatprep.subr.bf16.mxu0 %v4877
        %5092 = vmatpush1.bf16.msra.mxu0 %v4876
        %5093 = vmatprep.subr.bf16.mxu0 %v4881
        %5094 = vmatpush1.bf16.msra.mxu0 %v4880
        %5095 = vmatprep.subr.bf16.mxu0 %v4885
        %5096 = vmatpush1.bf16.msra.mxu0 %v4884
        %5097 = vmatprep.subr.bf16.mxu0 %v4889
        %5098 = vmatpush1.bf16.msra.mxu0 %v4888
        %5099 = vmatprep.subr.bf16.mxu0 %v4893
        %5100 = vmatpush1.bf16.msra.mxu0 %v4892
        %5101 = vmatprep.subr.bf16.mxu0 %v4897
        %5102 = vmatpush1.bf16.msra.mxu0 %v4896
        %5103 = vmatprep.subr.bf16.mxu0 %v4901
        %5104 = vmatpush1.bf16.msra.mxu0 %v4900
        %5105 = vmatprep.mubr.bf16.mxu0 %v4241
        %5106 = vmatmul.mubr.bf16.gmra.mrb[0].mxu0 %v4240
        %v5107 = vpop.f32.mrb[0].mxu0
        %v5108 = vadd.f32 %v5067, %v5107
        %v5109 = vpop.f32.mrb[0].mxu0
        %v5110 = vadd.f32 %v5069, %v5109
        %v5111 = vpop.f32.mrb[0].mxu0
        %v5112 = vpop.f32.mrb[0].mxu0
        %5113 = vdwg.mxu0
        %5114 = vmatprep.subr.bf16.mxu0 %v4779
        %5115 = vmatpush1.bf16.msra.mxu0 %v4778
        %5116 = vmatprep.subr.bf16.mxu0 %v4783
        %5117 = vmatpush1.bf16.msra.mxu0 %v4782
        %5118 = vmatprep.subr.bf16.mxu0 %v4787
        %5119 = vmatpush1.bf16.msra.mxu0 %v4786
        %5120 = vmatprep.subr.bf16.mxu0 %v4791
        %5121 = vmatpush1.bf16.msra.mxu0 %v4790
        %5122 = vmatprep.subr.bf16.mxu0 %v4795
        %5123 = vmatpush1.bf16.msra.mxu0 %v4794
        %5124 = vmatprep.subr.bf16.mxu0 %v4799
        %5125 = vmatpush1.bf16.msra.mxu0 %v4798
        %5126 = vmatprep.subr.bf16.mxu0 %v4803
        %5127 = vmatpush1.bf16.msra.mxu0 %v4802
        %5128 = vmatprep.subr.bf16.mxu0 %v4807
        %5129 = vmatpush1.bf16.msra.mxu0 %v4806
        %5130 = vmatprep.subr.bf16.mxu0 %v4811
        %5131 = vmatpush1.bf16.msra.mxu0 %v4810
        %5132 = vmatprep.subr.bf16.mxu0 %v4815
        %5133 = vmatpush1.bf16.msra.mxu0 %v4814
        %5134 = vmatprep.subr.bf16.mxu0 %v4819
        %5135 = vmatpush1.bf16.msra.mxu0 %v4818
        %5136 = vmatprep.subr.bf16.mxu0 %v4823
        %5137 = vmatpush1.bf16.msra.mxu0 %v4822
        %5138 = vmatprep.subr.bf16.mxu0 %v4827
        %5139 = vmatpush1.bf16.msra.mxu0 %v4826
        %5140 = vmatprep.subr.bf16.mxu0 %v4831
        %5141 = vmatpush1.bf16.msra.mxu0 %v4830
        %5142 = vmatprep.subr.bf16.mxu0 %v4835
        %5143 = vmatpush1.bf16.msra.mxu0 %v4834
        %5144 = vmatprep.subr.bf16.mxu0 %v4839
        %5145 = vmatpush1.bf16.msra.mxu0 %v4838
        %5146 = vmatprep.mubr.bf16.mxu0 %v4239
        %5147 = vmatmul.mubr.bf16.gmra.mrb[0].mxu0 %v4238
        %v5148 = vpop.f32.mrb[0].mxu0
        %v5149 = vadd.f32 %v4383, %v5148
        %v5150 = vpop.f32.mrb[0].mxu0
        %v5151 = vadd.f32 %v4387, %v5150
        %v5152 = vpop.f32.mrb[0].mxu0
        %v5153 = vpop.f32.mrb[0].mxu0
        %5154 = vdwg.mxu0
        %5155 = vmatprep.subr.bf16.mxu0 %v4843
        %5156 = vmatpush1.bf16.msra.mxu0 %v4842
        %5157 = vmatprep.subr.bf16.mxu0 %v4847
        %5158 = vmatpush1.bf16.msra.mxu0 %v4846
        %5159 = vmatprep.subr.bf16.mxu0 %v4851
        %5160 = vmatpush1.bf16.msra.mxu0 %v4850
        %5161 = vmatprep.subr.bf16.mxu0 %v4855
        %5162 = vmatpush1.bf16.msra.mxu0 %v4854
        %5163 = vmatprep.subr.bf16.mxu0 %v4859
        %5164 = vmatpush1.bf16.msra.mxu0 %v4858
        %5165 = vmatprep.subr.bf16.mxu0 %v4863
        %5166 = vmatpush1.bf16.msra.mxu0 %v4862
        %5167 = vmatprep.subr.bf16.mxu0 %v4867
        %5168 = vmatpush1.bf16.msra.mxu0 %v4866
        %5169 = vmatprep.subr.bf16.mxu0 %v4871
        %5170 = vmatpush1.bf16.msra.mxu0 %v4870
        %5171 = vmatprep.subr.bf16.mxu0 %v4875
        %5172 = vmatpush1.bf16.msra.mxu0 %v4874
        %5173 = vmatprep.subr.bf16.mxu0 %v4879
        %5174 = vmatpush1.bf16.msra.mxu0 %v4878
        %5175 = vmatprep.subr.bf16.mxu0 %v4883
        %5176 = vmatpush1.bf16.msra.mxu0 %v4882
        %5177 = vmatprep.subr.bf16.mxu0 %v4887
        %5178 = vmatpush1.bf16.msra.mxu0 %v4886
        %5179 = vmatprep.subr.bf16.mxu0 %v4891
        %5180 = vmatpush1.bf16.msra.mxu0 %v4890
        %5181 = vmatprep.subr.bf16.mxu0 %v4895
        %5182 = vmatpush1.bf16.msra.mxu0 %v4894
        %5183 = vmatprep.subr.bf16.mxu0 %v4899
        %5184 = vmatpush1.bf16.msra.mxu0 %v4898
        %5185 = vmatprep.subr.bf16.mxu0 %v4903
        %5186 = vmatpush1.bf16.msra.mxu0 %v4902
        %5187 = vmatprep.mubr.bf16.mxu0 %v4241
        %5188 = vmatmul.mubr.bf16.gmra.mrb[0].mxu0 %v4240
        %v5189 = vpop.f32.mrb[0].mxu0
        %v5190 = vadd.f32 %v5149, %v5189
        %v5191 = vpop.f32.mrb[0].mxu0
        %v5192 = vadd.f32 %v5151, %v5191
        %v5193 = vpop.f32.mrb[0].mxu0
        %v5194 = vpop.f32.mrb[0].mxu0
        %5195 = vdwg.mxu0
        %5196 = vst [vmem:[%s439] sm:$0xff] %v5108
        %5197 = vst [vmem:[%s439 + $0x8] sm:$0xff] %v5110
        %5198 = vst [vmem:[%s439 + $0x10] sm:$0xff] %v5190
        %5199 = vst [vmem:[%s439 + $0x18] sm:$0xff] %v5192
        %s5200 = sand.u32 %s215, 1
        %s5201 = scalar_lea.sflag [#allocation5], %s5200
        %s5202 = sand.u32 %s215, 1
        %s5203 = smul.addr %s5202, 32
        %s5204 = scalar_lea.vmem [#allocation15], %s5203
        // Predicated region
        $region77: #{tpu_custom_call.1} parent=47 // pred_check
          %p5205 = pneg %p225
        $region78: #{tpu_custom_call.1} parent=47 // pred_check_branch
          %5207 = sbr.rel (%p5205) target = $region80
        $region79: #{tpu_custom_call.1} parent=47 // pred_region
          %s5209 = ssub.s32 512, 512
          %5210 = vsyncadd %s5201, %s5209
          %s5211 = smul.addr %s34, 4
          %s5212 = smul.addr %s33, 4
          %s5213 = sadd.s32 %s5211, %s5212
          %s5214 = smul.addr %s5213, 128
          %s5215 = scalar_lea.hbm %s7, %s5214
          %s5217 = sshll.u32 %s5204, 4
          %s5218 = int_to_ptr.vmem [resolvable:$true] %s5217
          %5220 = dma.vmem_to_hbm [thread:$0]  %s5218, 512, %s5215, %s5201
        $region80: #{tpu_custom_call.1} parent=47 // pred_fallthru
          _
      $region48: #{tpu_custom_call.1} parent=5 // pred_fallthru
        _
      %p5221 = scmp.le.s32.totalorder 2, %s24
      // Predicated region
      $region81: #{tpu_custom_call.1} parent=5 // pred_check
        %p5222 = pneg %p5221
      $region82: #{tpu_custom_call.1} parent=5 // pred_check_branch
        %5224 = sbr.rel (%p5222) target = $region84
      $region83: #{tpu_custom_call.1} parent=5 // pred_region
        %s5225 = ssub.s32 %s24, 2
        // Predicated region
        $region85: #{tpu_custom_call.1} parent=83 // pred_check
          %p5226 = pneg %p231
        $region86: #{tpu_custom_call.1} parent=83 // pred_check_branch
          %5228 = sbr.rel (%p5226) target = $region88
        $region87: #{tpu_custom_call.1} parent=83 // pred_region
          %s5229 = sand.u32 %s216, 1
          %s5230 = scalar_lea.sflag [#allocation5], %s5229
          %s5231 = sand.u32 %s216, 1
          %s5232 = smul.addr %s5231, 32
          %s5233 = scalar_lea.vmem [#allocation15], %s5232
          %5234 = dma.done %s5230, 512
        $region88: #{tpu_custom_call.1} parent=83 // pred_fallthru
          _
      $region84: #{tpu_custom_call.1} parent=5 // pred_fallthru
        _
    $region6: #{tpu_custom_call.1} parent=1 // loop_footer
      %s28 = sadd.s32 1, %s24
    $region7: #{tpu_custom_call.1} parent=1 // loop_footer_branch
      %23 = sbr.rel target = $region3
    $region8: #{tpu_custom_call.1} parent=1 // loop_exit
      _
    %5235 = vsyncpa [#allocation4], 1
    %s5236 = scalar_lea.sflag [#allocation4], 1
    %5237 = vsyncpa %s5236, 1
    %5238 = vsyncpa [#allocation7], 1
    %s5239 = scalar_lea.sflag [#allocation7], 1
    %5240 = vsyncpa %s5239, 1
    %5241 = vsyncpa [#allocation10], 1
    %5242 = vsyncpa [#allocation13], 1
    %5243 = vsyncpa [#allocation5], 1
    %s5244 = scalar_lea.sflag [#allocation5], 1
    %5245 = vsyncpa %s5244, 1

</llo_original>
